<compile_context>
chip_gen: v6e
topology: v6e:2x2x1
jax: 0.10.0
libtpu: 0.0.40
codegen_flags: <defaults>
</compile_context>

<pallas_src>
import functools

import jax
import jax.numpy as jnp
from jax import lax
from jax.experimental import pallas as pl
from jax.experimental.pallas import tpu as pltpu

# ----------------------------- hyper-params (from kwargs) -----------------------------
MSE_LAMB = 0.5
COS_LAMB = 0.5
MSE_COEF = 5.0
NOISE_STD = 0.1  # training-only; eval forward implemented

_KEY = 256.0  # packed corner-key multiplier; must exceed local_resol and global_resol


# ===================================== fused kernel =====================================

def _grad_fused_kernel(fa_ref, qglob_ref, qloc_ref,
                       l1w_ref, l1b_ref, l2w_ref, l2b_ref,
                       c1w_ref, c1b_ref, c2w_ref, c2b_ref,
                       w1_ref, b1_ref, w2_ref, b2_ref,
                       wrec_ref, cw_ref, ah_ref,
                       rec_ref, pred_ref,
                       *, H, W, L, G, mse_coef, mse_lamb, cos_lamb):
    """Per-batch fully fused GRAD forward.  Working layout (C, HW), pixels in lanes."""
    f32 = jnp.float32
    fa = fa_ref[0].astype(f32)                       # (C, HW)
    C, HW = fa.shape

    # ---- per-pixel row/col indices (lanes), reused for conv masks and the upsample ----
    pcol = lax.broadcasted_iota(jnp.int32, (1, HW), 1).astype(f32)
    hh = jnp.floor((pcol + 0.5) * (1.0 / W))         # pixel row index, (1, HW)
    ww = pcol - hh * W                               # pixel col index, (1, HW)

    # ---- coord_ : adaptive_avg_pool -> Linear(C,C) -> Tanh -> Linear(C,2) -> Tanh ----
    pooled = jnp.mean(fa, axis=1, keepdims=True)                                     # (C, 1)
    hvec = jnp.tanh(jnp.dot(l1w_ref[...], pooled, preferred_element_type=f32) + l1b_ref[...])
    cvec = jnp.tanh(jnp.dot(l2w_ref[...], hvec, preferred_element_type=f32) + l2b_ref[...])
    gxg = cvec[0:1, :]                               # (1,1) grid x (width coord)
    gyg = cvec[1:2, :]                               # (1,1) grid y (height coord)

    # ---- global query: one bilinear sample of the (G,G) table per batch, as a one-hot
    #      (1, G*G) weight row contracted against C lane-dense (G*G, HW) slabs ----
    GG = G * G
    gpos = lax.broadcasted_iota(jnp.int32, (1, GG), 1).astype(f32)
    gy_s = jnp.floor((gpos + 0.5) * (1.0 / G))
    gx_s = gpos - gy_s * G
    gkey = gy_s * _KEY + gx_s                                                        # (1, GG)
    ixg = (gxg + 1.0) * (G * 0.5) - 0.5              # align_corners=False unnormalize
    iyg = (gyg + 1.0) * (G * 0.5) - 0.5
    ix0g = jnp.floor(ixg)
    iy0g = jnp.floor(iyg)
    fxg = ixg - ix0g
    fyg = iyg - iy0g

    def gcorner(cx, cy, wgt):
        # out-of-range corners never match a valid key -> zeros padding for free
        return jnp.where(gkey == cy * _KEY + cx, wgt, 0.0)

    wg = (gcorner(ix0g,       iy0g,       (1.0 - fxg) * (1.0 - fyg))
          + gcorner(ix0g + 1.0, iy0g,       fxg * (1.0 - fyg))
          + gcorner(ix0g,       iy0g + 1.0, (1.0 - fxg) * fyg)
          + gcorner(ix0g + 1.0, iy0g + 1.0, fxg * fyg))                              # (1, GG)

    qg = jnp.concatenate(
        [jnp.dot(wg, qglob_ref[c], preferred_element_type=f32) for c in range(C)],
        axis=0)                                                                      # (C, HW)

    # ---- coord : per-pixel Conv1x1(C,C) -> Tanh -> Conv1x1(C,2) -> Tanh ----
    h = jnp.tanh(jnp.dot(c1w_ref[...], fa, preferred_element_type=f32) + c1b_ref[...])
    cm = jnp.tanh(jnp.dot(c2w_ref[...], h, preferred_element_type=f32) + c2b_ref[...])
    gx = cm[0:1, :]                                  # (1, HW)
    gy = cm[1:2, :]                                  # (1, HW)

    # ---- local query: per-pixel bilinear sample of the (L,L) table via a one-hot-keyed
    #      (L*L, HW) weight matrix and a single MXU dot ----
    LL = L * L
    spos = lax.broadcasted_iota(jnp.int32, (LL, 1), 0).astype(f32)
    sy = jnp.floor((spos + 0.5) * (1.0 / L))
    sx = spos - sy * L
    skey = sy * _KEY + sx                                                            # (LL, 1)
    ix = (gx + 1.0) * (L * 0.5) - 0.5
    iy = (gy + 1.0) * (L * 0.5) - 0.5
    ix0 = jnp.floor(ix)
    iy0 = jnp.floor(iy)
    fx = ix - ix0
    fy = iy - iy0

    def lcorner(cx, cy, wgt):
        return jnp.where(skey == cy * _KEY + cx, wgt, 0.0)                           # (LL, HW)

    wloc_t = (lcorner(ix0,       iy0,       (1.0 - fx) * (1.0 - fy))
              + lcorner(ix0 + 1.0, iy0,       fx * (1.0 - fy))
              + lcorner(ix0,       iy0 + 1.0, (1.0 - fx) * fy)
              + lcorner(ix0 + 1.0, iy0 + 1.0, fx * fy))                              # (LL, HW)

    ql = jnp.dot(qloc_ref[...], wloc_t, preferred_element_type=f32)                  # (C, HW)

    query = jnp.concatenate([qg, ql], axis=0)                                        # (2C, HW)

    # ---- 3x3 conv boundary masks (built once from iota, shared by both convs) ----
    masks = []
    for t in range(9):
        dy, dx = t // 3 - 1, t % 3 - 1
        if dy == 0 and dx == 0:
            masks.append(None)
        else:
            m = ((hh + dy >= 0.0) & (hh + dy <= H - 1.0)
                 & (ww + dx >= 0.0) & (ww + dx <= W - 1.0)).astype(f32)              # (1, HW)
            masks.append(m)

    # ---- BasicBlock: two 3x3 convs (eval BN folded), one K=9*Cin MXU dot each ----
    # TODO(synk): `block` is unresolved in the source (globals()[block]); assumed torchvision
    # BasicBlock with layers=[1] and eval-mode BatchNorm folded into weights/bias.
    def conv3x3(x, w_ref_, b_ref_, relu):
        taps = []
        for t in range(9):
            dy, dx = t // 3 - 1, t % 3 - 1
            s = dy * W + dx
            if s == 0:
                xt = x
            else:
                xt = pltpu.roll(x, (-s) % HW, axis=1) * masks[t]
            taps.append(xt)
        xg = jnp.concatenate(taps, axis=0)                                           # (9*Cin, HW)
        y = jnp.dot(w_ref_[...], xg, preferred_element_type=f32) + b_ref_[...]
        return jnp.maximum(y, 0.0) if relu else y

    y1 = conv3x3(query, w1_ref, b1_ref, True)
    y2 = conv3x3(y1, w2_ref, b2_ref, False)
    y = jnp.maximum(y2 + query, 0.0)                                                 # residual + ReLU

    rec = jnp.dot(wrec_ref[...], y, preferred_element_type=f32)                      # (C, HW)

    # ---- mse/cos gating, blend (channel reductions over sublanes) ----
    diff = rec - fa
    mse = jnp.mean(diff * diff, axis=0, keepdims=True)                               # (1, HW)
    mse = 1.0 - jnp.round(jnp.clip(mse * mse_coef, 0.0, 1.0))
    num = jnp.sum(rec * fa, axis=0, keepdims=True)
    ssr = jnp.sum(rec * rec, axis=0, keepdims=True)
    ssf = jnp.sum(fa * fa, axis=0, keepdims=True)
    cos = num * lax.rsqrt(jnp.maximum(ssr * ssf, 1e-16))                             # one EUP rsqrt
    sim = mse_lamb * mse + cos_lamb * cos

    rec_final = sim * fa + (1.0 - sim) * rec
    rec_ref[0] = rec_final.astype(rec_ref.dtype)

    d = rec_final - fa
    pred = jnp.sqrt(jnp.sum(d * d, axis=0, keepdims=True))                           # (1, HW)

    # ---- fused x8 bilinear upsample (align_corners=True), no in-kernel reshape:
    #      scatter pred into per-row sublanes with a row-indicator select, then
    #      (H,HW)@(HW,Wo) and (Ho,H)@(H,Wo) MXU dots -> lane-dense (Ho, Wo) output ----
    rr = lax.broadcasted_iota(jnp.int32, (H, 1), 0).astype(f32)                      # (H, 1)
    pred_rows = jnp.where(hh == rr, pred, 0.0)                                       # (H, HW)
    tmp = jnp.dot(pred_rows, cw_ref[...], preferred_element_type=f32)                # (H, Wo)
    up = jnp.dot(ah_ref[...], tmp, preferred_element_type=f32)                       # (Ho, Wo)
    pred_ref[0, 0] = up.astype(pred_ref.dtype)


def grad_fused(fa3, qglob, qloc, l1w, l1b, l2w, l2b, c1w, c1b, c2w, c2b,
               w1f, b1, w2f, b2, wrec, cw, ah, *, H, W, L, G):
    B, C, HW = fa3.shape
    Ho, Wo = 8 * H, 8 * W
    kernel = functools.partial(_grad_fused_kernel, H=H, W=W, L=L, G=G,
                               mse_coef=MSE_COEF, mse_lamb=MSE_LAMB, cos_lamb=COS_LAMB)

    def shared(a):
        nd = a.ndim
        return pl.BlockSpec(tuple(a.shape), lambda i, _nd=nd: (0,) * _nd)

    return pl.pallas_call(
        kernel,
        out_shape=(jax.ShapeDtypeStruct((B, C, HW), jnp.float32),
                   jax.ShapeDtypeStruct((B, 1, Ho, Wo), jnp.float32)),
        grid=(B,),
        in_specs=[
            pl.BlockSpec((1, C, HW), lambda i: (i, 0, 0)),   # feature_align (per batch)
            shared(qglob),                                   # (C, G*G, HW) global query table
            shared(qloc),                                    # (C, L*L)     local query table
            shared(l1w), shared(l1b), shared(l2w), shared(l2b),
            shared(c1w), shared(c1b), shared(c2w), shared(c2b),
            shared(w1f), shared(b1), shared(w2f), shared(b2),
            shared(wrec),
            shared(cw), shared(ah),                          # upsample interp matrices
        ],
        out_specs=(pl.BlockSpec((1, C, HW), lambda i: (i, 0, 0)),
                   pl.BlockSpec((1, 1, Ho, Wo), lambda i: (i, 0, 0, 0))),
        compiler_params=pltpu.CompilerParams(dimension_semantics=("parallel",)),
    )(fa3, qglob, qloc, l1w, l1b, l2w, l2b, c1w, c1b, c2w, c2b,
      w1f, b1, w2f, b2, wrec, cw, ah)


# =============================== wrapper (weight prep only) ===============================

def _interp_matrix(n_in, n_out):
    # bilinear, align_corners=True (nn.UpsamplingBilinear2d semantics)
    scale = (n_in - 1) / max(n_out - 1, 1)
    src = jnp.arange(n_out, dtype=jnp.float32) * scale
    i0 = jnp.clip(jnp.floor(src), 0, n_in - 1)
    i1 = jnp.minimum(i0 + 1, n_in - 1)
    w1 = src - i0
    return (jax.nn.one_hot(i0.astype(jnp.int32), n_in) * (1.0 - w1)[:, None]
            + jax.nn.one_hot(i1.astype(jnp.int32), n_in) * w1[:, None])   # (n_out, n_in)


def init_params(key, C, H, W, local_resol, global_resol):
    """Deterministic synthetic parameters (shapes match the module's __init__)."""
    Cf = 2 * C
    keys = jax.random.split(key, 20)

    def nrm(k, shape, scale):
        return jax.random.normal(k, shape, jnp.float32) * scale

    p = {}
    # coord_ : Linear(C,C) -> Tanh -> Linear(C,2) -> Tanh   (stored (in, out))
    p['lin1_w'] = nrm(keys[0], (C, C), 0.5)
    p['lin1_b'] = nrm(keys[1], (C,), 0.1)
    p['lin2_w'] = nrm(keys[2], (C, 2), 0.5)
    p['lin2_b'] = nrm(keys[3], (2,), 0.1)
    # coord : Conv1x1(C,C) -> Tanh -> Conv1x1(C,2) -> Tanh   (stored (out, in))
    p['c1_w'] = nrm(keys[4], (C, C), 0.5)
    p['c1_b'] = nrm(keys[5], (C,), 0.1)
    p['c2_w'] = nrm(keys[6], (2, C), 0.5)
    p['c2_b'] = nrm(keys[7], (2,), 0.1)
    # query ParameterList: [ (1, C, L, L), (1, C*H*W, G, G) ]
    p['query_local'] = nrm(keys[8], (1, C, local_resol, local_resol), 1.0)
    p['query_global'] = nrm(keys[9], (1, C * H * W, global_resol, global_resol), 1.0)
    # TODO(synk): block class is unresolved in the source (globals()[block]); assumed a
    # torchvision BasicBlock, layers=[1], eval-mode BatchNorm (rm=0, rv=1) folded in.
    eps = 1e-5
    w1 = nrm(keys[10], (3, 3, Cf, Cf), 0.2)
    g1 = 1.0 + nrm(keys[11], (Cf,), 0.05)
    be1 = nrm(keys[12], (Cf,), 0.05)
    p['blk_w1'] = w1 * (g1 / jnp.sqrt(1.0 + eps))
    p['blk_b1'] = be1
    w2 = nrm(keys[13], (3, 3, Cf, Cf), 0.2)
    g2 = 1.0 + nrm(keys[14], (Cf,), 0.05)
    be2 = nrm(keys[15], (Cf,), 0.05)
    p['blk_w2'] = w2 * (g2 / jnp.sqrt(1.0 + eps))
    p['blk_b2'] = be2
    # recover: conv1x1(2C -> C), no bias, stored (out, in)
    p['rec_w'] = nrm(keys[16], (C, Cf), 0.3)
    return p


def grad_forward(params, feature_align):
    """Eval-mode GRAD.forward.  feature_align: NCHW (B, C, H, W) like the PyTorch module."""
    B, C, H, W = feature_align.shape
    HW = H * W
    Cf = 2 * C
    L = params['query_local'].shape[-1]
    G = params['query_global'].shape[-1]
    assert max(L, G) < int(_KEY), "corner-key multiplier must exceed grid resolutions"

    # channels-in-sublanes / pixels-in-lanes working layout: NCHW -> (B, C, HW), no transpose
    fa3 = feature_align.reshape(B, C, HW)

    # --- weight preprocessing (input-independent; constant-folded under jit) ---
    # global query table as C lane-dense slabs of (G*G, HW)
    # TODO(synk): at large H,W this table should move to memory_space=pl.ANY + manual DMA
    # of only the 4 weighted columns (v7x VMEM is 64 MiB); at 16x16 it is 256 KiB.
    qglob = params['query_global'].reshape(C, HW, G * G).transpose(0, 2, 1)          # (C, GG, HW)
    qloc = params['query_local'].reshape(C, L * L)                                   # (C, LL)

    # coord_ Linear weights in (out, in) column form for in-kernel W @ x
    l1w = params['lin1_w'].T
    l1b = params['lin1_b'].reshape(C, 1)
    l2w = params['lin2_w'].T
    l2b = params['lin2_b'].reshape(2, 1)
    c1b = params['c1_b'].reshape(C, 1)
    c2b = params['c2_b'].reshape(2, 1)

    # conv weights (3,3,Cin,Cout) -> (Cout, 9*Cin), tap-major rows matching in-kernel taps
    def flat_w(w):
        return jnp.transpose(w, (3, 0, 1, 2)).reshape(w.shape[3], 9 * w.shape[2])

    w1f = flat_w(params['blk_w1'])
    b1 = params['blk_b1'].reshape(Cf, 1)
    w2f = flat_w(params['blk_w2'])
    b2 = params['blk_b2'].reshape(Cf, 1)

    # x8 bilinear upsample matrices: cw[p, X] = Aw[X, p % W]  (column interp applied to flat HW),
    # ah = row interp (Ho, H)
    Ho, Wo = 8 * H, 8 * W
    awt = _interp_matrix(W, Wo).T                                                    # (W, Wo)
    cw = jnp.tile(awt, (H, 1))                                                       # (HW, Wo)
    ah = _interp_matrix(H, Ho)                                                       # (Ho, H)

    # --- single fused Pallas kernel for the entire forward (training-noise branch skipped) ---
    rec3, pred_up = grad_fused(fa3, qglob, qloc,
                               l1w, l1b, l2w, l2b,
                               params['c1_w'], c1b, params['c2_w'], c2b,
                               w1f, b1, w2f, b2, params['rec_w'],
                               cw, ah, H=H, W=W, L=L, G=G)

    feature_rec = rec3.reshape(B, C, H, W)                                           # NCHW

    # (save_recon disk I/O omitted)
    return {'feature_rec': feature_rec,
            'feature_align': feature_align,
            'pred': pred_up}


if __name__ == "__main__":
    B, C, H, W = 2, 4, 16, 16
    key = jax.random.PRNGKey(0)
    kp, kx = jax.random.split(key)
    params = init_params(kp, C, H, W, local_resol=8, global_resol=8)
    feature_align = jax.random.normal(kx, (B, C, H, W), jnp.float32)

    fwd = jax.jit(grad_forward)
    out = fwd(params, feature_align)
    out = jax.tree_util.tree_map(jax.block_until_ready, out)

    assert out['feature_rec'].shape == (B, C, H, W)
    assert out['feature_align'].shape == (B, C, H, W)
    assert out['pred'].shape == (B, 1, 8 * H, 8 * W)
    assert all(bool(jnp.all(jnp.isfinite(v))) for v in out.values())
    print("KERNEL_OK")
</pallas_src>

<mosaic_0001>
module attributes {stable_mosaic.version = 11 : i64} {
  func.func @_grad_fused_kernel(%arg0: i32, %arg1: memref<1x4x256xf32, #tpu.memory_space<vmem>>, %arg2: memref<4x64x256xf32, #tpu.memory_space<vmem>>, %arg3: memref<4x64xf32, #tpu.memory_space<vmem>>, %arg4: memref<4x4xf32, #tpu.memory_space<vmem>>, %arg5: memref<4x1xf32, #tpu.memory_space<vmem>>, %arg6: memref<2x4xf32, #tpu.memory_space<vmem>>, %arg7: memref<2x1xf32, #tpu.memory_space<vmem>>, %arg8: memref<4x4xf32, #tpu.memory_space<vmem>>, %arg9: memref<4x1xf32, #tpu.memory_space<vmem>>, %arg10: memref<2x4xf32, #tpu.memory_space<vmem>>, %arg11: memref<2x1xf32, #tpu.memory_space<vmem>>, %arg12: memref<8x72xf32, #tpu.memory_space<vmem>>, %arg13: memref<8x1xf32, #tpu.memory_space<vmem>>, %arg14: memref<8x72xf32, #tpu.memory_space<vmem>>, %arg15: memref<8x1xf32, #tpu.memory_space<vmem>>, %arg16: memref<4x8xf32, #tpu.memory_space<vmem>>, %arg17: memref<256x128xf32, #tpu.memory_space<vmem>>, %arg18: memref<128x16xf32, #tpu.memory_space<vmem>>, %arg19: memref<1x4x256xf32, #tpu.memory_space<vmem>>, %arg20: memref<1x1x128x128xf32, #tpu.memory_space<vmem>>) attributes {dimension_semantics = [#tpu.dimension_semantics<parallel>], iteration_bounds = array<i64: 2>, scalar_prefetch = 0 : i64, scratch_operands = 0 : i64, tpu.core_type = #tpu.core_type<tc>, window_params = [{transform_indices = @transform_0, window_bounds = array<i64: 1, 4, 256>}, {pipeline_mode = #tpu.pipeline_mode<synchronous>, transform_indices = @transform_1, window_bounds = array<i64: 4, 64, 256>}, {pipeline_mode = #tpu.pipeline_mode<synchronous>, transform_indices = @transform_2, window_bounds = array<i64: 4, 64>}, {pipeline_mode = #tpu.pipeline_mode<synchronous>, transform_indices = @transform_3, window_bounds = array<i64: 4, 4>}, {pipeline_mode = #tpu.pipeline_mode<synchronous>, transform_indices = @transform_4, window_bounds = array<i64: 4, 1>}, {pipeline_mode = #tpu.pipeline_mode<synchronous>, transform_indices = @transform_5, window_bounds = array<i64: 2, 4>}, {pipeline_mode = #tpu.pipeline_mode<synchronous>, transform_indices = @transform_6, window_bounds = array<i64: 2, 1>}, {pipeline_mode = #tpu.pipeline_mode<synchronous>, transform_indices = @transform_7, window_bounds = array<i64: 4, 4>}, {pipeline_mode = #tpu.pipeline_mode<synchronous>, transform_indices = @transform_8, window_bounds = array<i64: 4, 1>}, {pipeline_mode = #tpu.pipeline_mode<synchronous>, transform_indices = @transform_9, window_bounds = array<i64: 2, 4>}, {pipeline_mode = #tpu.pipeline_mode<synchronous>, transform_indices = @transform_10, window_bounds = array<i64: 2, 1>}, {pipeline_mode = #tpu.pipeline_mode<synchronous>, transform_indices = @transform_11, window_bounds = array<i64: 8, 72>}, {pipeline_mode = #tpu.pipeline_mode<synchronous>, transform_indices = @transform_12, window_bounds = array<i64: 8, 1>}, {pipeline_mode = #tpu.pipeline_mode<synchronous>, transform_indices = @transform_13, window_bounds = array<i64: 8, 72>}, {pipeline_mode = #tpu.pipeline_mode<synchronous>, transform_indices = @transform_14, window_bounds = array<i64: 8, 1>}, {pipeline_mode = #tpu.pipeline_mode<synchronous>, transform_indices = @transform_15, window_bounds = array<i64: 4, 8>}, {pipeline_mode = #tpu.pipeline_mode<synchronous>, transform_indices = @transform_16, window_bounds = array<i64: 256, 128>}, {pipeline_mode = #tpu.pipeline_mode<synchronous>, transform_indices = @transform_17, window_bounds = array<i64: 128, 16>}, {transform_indices = @transform_18, window_bounds = array<i64: 1, 4, 256>}, {transform_indices = @transform_19, window_bounds = array<i64: 1, 1, 128, 128>}]} {
    %c0 = arith.constant 0 : index
    %c0_0 = arith.constant 0 : index
    %c0_1 = arith.constant 0 : index
    %0 = vector.load %arg1[%c0, %c0_0, %c0_1] : memref<1x4x256xf32, #tpu.memory_space<vmem>>, vector<1x4x256xf32>
    %1 = vector.shape_cast %0 : vector<1x4x256xf32> to vector<4x256xf32>
    %2 = tpu.iota {dimensions = array<i32: 1>} : vector<1x256xi32>
    %3 = arith.sitofp %2 : vector<1x256xi32> to vector<1x256xf32>
    %cst = arith.constant 5.000000e-01 : f32
    %4 = vector.broadcast %cst : f32 to vector<1x256xf32>
    %5 = arith.addf %3, %4 : vector<1x256xf32>
    %cst_2 = arith.constant 6.250000e-02 : f32
    %6 = vector.broadcast %cst_2 : f32 to vector<1x256xf32>
    %7 = arith.mulf %5, %6 : vector<1x256xf32>
    %8 = math.floor %7 : vector<1x256xf32>
    %cst_3 = arith.constant 1.600000e+01 : f32
    %9 = vector.broadcast %cst_3 : f32 to vector<1x256xf32>
    %10 = arith.mulf %8, %9 : vector<1x256xf32>
    %11 = arith.subf %3, %10 : vector<1x256xf32>
    %cst_4 = arith.constant dense<0.000000e+00> : vector<4xf32>
    %12 = vector.multi_reduction <add>, %1, %cst_4 [1] : vector<4x256xf32> to vector<4xf32>
    %13 = vector.shape_cast %12 : vector<4xf32> to vector<4x1xf32>
    %cst_5 = arith.constant 2.560000e+02 : f32
    %14 = vector.broadcast %cst_5 : f32 to vector<4x1xf32>
    %15 = arith.divf %13, %14 : vector<4x1xf32>
    %c0_6 = arith.constant 0 : index
    %c0_7 = arith.constant 0 : index
    %16 = vector.load %arg4[%c0_6, %c0_7] : memref<4x4xf32, #tpu.memory_space<vmem>>, vector<4x4xf32>
    %cst_8 = arith.constant dense<0.000000e+00> : vector<4x1xf32>
    %17 = tpu.matmul %16, %15, %cst_8 {dimension_numbers = #tpu.dot_dimension_numbers<[1], [0], [0], [1], [0, 0, 1, 1], [], []>} : vector<4x4xf32>, vector<4x1xf32>, vector<4x1xf32> -> vector<4x1xf32>
    %c0_9 = arith.constant 0 : index
    %c0_10 = arith.constant 0 : index
    %18 = vector.load %arg5[%c0_9, %c0_10] : memref<4x1xf32, #tpu.memory_space<vmem>>, vector<4x1xf32>
    %19 = arith.addf %17, %18 : vector<4x1xf32>
    %20 = math.tanh %19 : vector<4x1xf32>
    %c0_11 = arith.constant 0 : index
    %c0_12 = arith.constant 0 : index
    %21 = vector.load %arg6[%c0_11, %c0_12] : memref<2x4xf32, #tpu.memory_space<vmem>>, vector<2x4xf32>
    %cst_13 = arith.constant dense<0.000000e+00> : vector<2x1xf32>
    %22 = tpu.matmul %21, %20, %cst_13 {dimension_numbers = #tpu.dot_dimension_numbers<[1], [0], [0], [1], [0, 0, 1, 1], [], []>} : vector<2x4xf32>, vector<4x1xf32>, vector<2x1xf32> -> vector<2x1xf32>
    %c0_14 = arith.constant 0 : index
    %c0_15 = arith.constant 0 : index
    %23 = vector.load %arg7[%c0_14, %c0_15] : memref<2x1xf32, #tpu.memory_space<vmem>>, vector<2x1xf32>
    %24 = arith.addf %22, %23 : vector<2x1xf32>
    %25 = math.tanh %24 : vector<2x1xf32>
    %26 = vector.extract_strided_slice %25 {offsets = [0, 0], sizes = [1, 1], strides = [1, 1]} : vector<2x1xf32> to vector<1x1xf32>
    %27 = vector.extract_strided_slice %25 {offsets = [1, 0], sizes = [1, 1], strides = [1, 1]} : vector<2x1xf32> to vector<1x1xf32>
    %28 = tpu.iota {dimensions = array<i32: 1>} : vector<1x64xi32>
    %29 = arith.sitofp %28 : vector<1x64xi32> to vector<1x64xf32>
    %cst_16 = arith.constant 5.000000e-01 : f32
    %30 = vector.broadcast %cst_16 : f32 to vector<1x64xf32>
    %31 = arith.addf %29, %30 : vector<1x64xf32>
    %cst_17 = arith.constant 1.250000e-01 : f32
    %32 = vector.broadcast %cst_17 : f32 to vector<1x64xf32>
    %33 = arith.mulf %31, %32 : vector<1x64xf32>
    %34 = math.floor %33 : vector<1x64xf32>
    %cst_18 = arith.constant 8.000000e+00 : f32
    %35 = vector.broadcast %cst_18 : f32 to vector<1x64xf32>
    %36 = arith.mulf %34, %35 : vector<1x64xf32>
    %37 = arith.subf %29, %36 : vector<1x64xf32>
    %cst_19 = arith.constant 2.560000e+02 : f32
    %38 = vector.broadcast %cst_19 : f32 to vector<1x64xf32>
    %39 = arith.mulf %34, %38 : vector<1x64xf32>
    %40 = arith.addf %39, %37 : vector<1x64xf32>
    %cst_20 = arith.constant 1.000000e+00 : f32
    %41 = vector.broadcast %cst_20 : f32 to vector<1x1xf32>
    %42 = arith.addf %26, %41 : vector<1x1xf32>
    %cst_21 = arith.constant 4.000000e+00 : f32
    %43 = vector.broadcast %cst_21 : f32 to vector<1x1xf32>
    %44 = arith.mulf %42, %43 : vector<1x1xf32>
    %cst_22 = arith.constant 5.000000e-01 : f32
    %45 = vector.broadcast %cst_22 : f32 to vector<1x1xf32>
    %46 = arith.subf %44, %45 : vector<1x1xf32>
    %cst_23 = arith.constant 1.000000e+00 : f32
    %47 = vector.broadcast %cst_23 : f32 to vector<1x1xf32>
    %48 = arith.addf %27, %47 : vector<1x1xf32>
    %cst_24 = arith.constant 4.000000e+00 : f32
    %49 = vector.broadcast %cst_24 : f32 to vector<1x1xf32>
    %50 = arith.mulf %48, %49 : vector<1x1xf32>
    %cst_25 = arith.constant 5.000000e-01 : f32
    %51 = vector.broadcast %cst_25 : f32 to vector<1x1xf32>
    %52 = arith.subf %50, %51 : vector<1x1xf32>
    %53 = math.floor %46 : vector<1x1xf32>
    %54 = math.floor %52 : vector<1x1xf32>
    %55 = arith.subf %46, %53 : vector<1x1xf32>
    %56 = arith.subf %52, %54 : vector<1x1xf32>
    %cst_26 = arith.constant 1.000000e+00 : f32
    %57 = vector.broadcast %cst_26 : f32 to vector<1x1xf32>
    %58 = arith.subf %57, %55 : vector<1x1xf32>
    %cst_27 = arith.constant 1.000000e+00 : f32
    %59 = vector.broadcast %cst_27 : f32 to vector<1x1xf32>
    %60 = arith.subf %59, %56 : vector<1x1xf32>
    %61 = arith.mulf %58, %60 : vector<1x1xf32>
    %cst_28 = arith.constant 2.560000e+02 : f32
    %62 = vector.broadcast %cst_28 : f32 to vector<1x1xf32>
    %63 = arith.mulf %54, %62 : vector<1x1xf32>
    %64 = arith.addf %63, %53 : vector<1x1xf32>
    %65 = vector.broadcast %64 : vector<1x1xf32> to vector<1x64xf32>
    %66 = arith.cmpf oeq, %40, %65 : vector<1x64xf32>
    %cst_29 = arith.constant 0.000000e+00 : f32
    %67 = vector.shape_cast %61 : vector<1x1xf32> to vector<1x1xf32>
    %68 = vector.broadcast %67 : vector<1x1xf32> to vector<1x64xf32>
    %69 = vector.broadcast %cst_29 : f32 to vector<1x64xf32>
    %70 = arith.select %66, %68, %69 : vector<1x64xi1>, vector<1x64xf32>
    %cst_30 = arith.constant 1.000000e+00 : f32
    %71 = vector.broadcast %cst_30 : f32 to vector<1x1xf32>
    %72 = arith.addf %53, %71 : vector<1x1xf32>
    %cst_31 = arith.constant 1.000000e+00 : f32
    %73 = vector.broadcast %cst_31 : f32 to vector<1x1xf32>
    %74 = arith.subf %73, %56 : vector<1x1xf32>
    %75 = arith.mulf %55, %74 : vector<1x1xf32>
    %cst_32 = arith.constant 2.560000e+02 : f32
    %76 = vector.broadcast %cst_32 : f32 to vector<1x1xf32>
    %77 = arith.mulf %54, %76 : vector<1x1xf32>
    %78 = arith.addf %77, %72 : vector<1x1xf32>
    %79 = vector.broadcast %78 : vector<1x1xf32> to vector<1x64xf32>
    %80 = arith.cmpf oeq, %40, %79 : vector<1x64xf32>
    %cst_33 = arith.constant 0.000000e+00 : f32
    %81 = vector.shape_cast %75 : vector<1x1xf32> to vector<1x1xf32>
    %82 = vector.broadcast %81 : vector<1x1xf32> to vector<1x64xf32>
    %83 = vector.broadcast %cst_33 : f32 to vector<1x64xf32>
    %84 = arith.select %80, %82, %83 : vector<1x64xi1>, vector<1x64xf32>
    %85 = arith.addf %70, %84 : vector<1x64xf32>
    %cst_34 = arith.constant 1.000000e+00 : f32
    %86 = vector.broadcast %cst_34 : f32 to vector<1x1xf32>
    %87 = arith.addf %54, %86 : vector<1x1xf32>
    %cst_35 = arith.constant 1.000000e+00 : f32
    %88 = vector.broadcast %cst_35 : f32 to vector<1x1xf32>
    %89 = arith.subf %88, %55 : vector<1x1xf32>
    %90 = arith.mulf %89, %56 : vector<1x1xf32>
    %cst_36 = arith.constant 2.560000e+02 : f32
    %91 = vector.broadcast %cst_36 : f32 to vector<1x1xf32>
    %92 = arith.mulf %87, %91 : vector<1x1xf32>
    %93 = arith.addf %92, %53 : vector<1x1xf32>
    %94 = vector.broadcast %93 : vector<1x1xf32> to vector<1x64xf32>
    %95 = arith.cmpf oeq, %40, %94 : vector<1x64xf32>
    %cst_37 = arith.constant 0.000000e+00 : f32
    %96 = vector.shape_cast %90 : vector<1x1xf32> to vector<1x1xf32>
    %97 = vector.broadcast %96 : vector<1x1xf32> to vector<1x64xf32>
    %98 = vector.broadcast %cst_37 : f32 to vector<1x64xf32>
    %99 = arith.select %95, %97, %98 : vector<1x64xi1>, vector<1x64xf32>
    %100 = arith.addf %85, %99 : vector<1x64xf32>
    %cst_38 = arith.constant 1.000000e+00 : f32
    %101 = vector.broadcast %cst_38 : f32 to vector<1x1xf32>
    %102 = arith.addf %53, %101 : vector<1x1xf32>
    %cst_39 = arith.constant 1.000000e+00 : f32
    %103 = vector.broadcast %cst_39 : f32 to vector<1x1xf32>
    %104 = arith.addf %54, %103 : vector<1x1xf32>
    %105 = arith.mulf %55, %56 : vector<1x1xf32>
    %cst_40 = arith.constant 2.560000e+02 : f32
    %106 = vector.broadcast %cst_40 : f32 to vector<1x1xf32>
    %107 = arith.mulf %104, %106 : vector<1x1xf32>
    %108 = arith.addf %107, %102 : vector<1x1xf32>
    %109 = vector.broadcast %108 : vector<1x1xf32> to vector<1x64xf32>
    %110 = arith.cmpf oeq, %40, %109 : vector<1x64xf32>
    %cst_41 = arith.constant 0.000000e+00 : f32
    %111 = vector.shape_cast %105 : vector<1x1xf32> to vector<1x1xf32>
    %112 = vector.broadcast %111 : vector<1x1xf32> to vector<1x64xf32>
    %113 = vector.broadcast %cst_41 : f32 to vector<1x64xf32>
    %114 = arith.select %110, %112, %113 : vector<1x64xi1>, vector<1x64xf32>
    %115 = arith.addf %100, %114 : vector<1x64xf32>
    %c0_42 = arith.constant 0 : index
    %c0_43 = arith.constant 0 : index
    %c0_44 = arith.constant 0 : index
    %116 = vector.load %arg2[%c0_42, %c0_43, %c0_44] : memref<4x64x256xf32, #tpu.memory_space<vmem>>, vector<1x64x256xf32>
    %117 = vector.shape_cast %116 : vector<1x64x256xf32> to vector<64x256xf32>
    %cst_45 = arith.constant dense<0.000000e+00> : vector<1x256xf32>
    %118 = tpu.matmul %115, %117, %cst_45 {dimension_numbers = #tpu.dot_dimension_numbers<[1], [0], [0], [1], [0, 0, 1, 1], [], []>} : vector<1x64xf32>, vector<64x256xf32>, vector<1x256xf32> -> vector<1x256xf32>
    %c1 = arith.constant 1 : index
    %c0_46 = arith.constant 0 : index
    %c0_47 = arith.constant 0 : index
    %119 = vector.load %arg2[%c1, %c0_46, %c0_47] : memref<4x64x256xf32, #tpu.memory_space<vmem>>, vector<1x64x256xf32>
    %120 = vector.shape_cast %119 : vector<1x64x256xf32> to vector<64x256xf32>
    %cst_48 = arith.constant dense<0.000000e+00> : vector<1x256xf32>
    %121 = tpu.matmul %115, %120, %cst_48 {dimension_numbers = #tpu.dot_dimension_numbers<[1], [0], [0], [1], [0, 0, 1, 1], [], []>} : vector<1x64xf32>, vector<64x256xf32>, vector<1x256xf32> -> vector<1x256xf32>
    %c2 = arith.constant 2 : index
    %c0_49 = arith.constant 0 : index
    %c0_50 = arith.constant 0 : index
    %122 = vector.load %arg2[%c2, %c0_49, %c0_50] : memref<4x64x256xf32, #tpu.memory_space<vmem>>, vector<1x64x256xf32>
    %123 = vector.shape_cast %122 : vector<1x64x256xf32> to vector<64x256xf32>
    %cst_51 = arith.constant dense<0.000000e+00> : vector<1x256xf32>
    %124 = tpu.matmul %115, %123, %cst_51 {dimension_numbers = #tpu.dot_dimension_numbers<[1], [0], [0], [1], [0, 0, 1, 1], [], []>} : vector<1x64xf32>, vector<64x256xf32>, vector<1x256xf32> -> vector<1x256xf32>
    %c3 = arith.constant 3 : index
    %c0_52 = arith.constant 0 : index
    %c0_53 = arith.constant 0 : index
    %125 = vector.load %arg2[%c3, %c0_52, %c0_53] : memref<4x64x256xf32, #tpu.memory_space<vmem>>, vector<1x64x256xf32>
    %126 = vector.shape_cast %125 : vector<1x64x256xf32> to vector<64x256xf32>
    %cst_54 = arith.constant dense<0.000000e+00> : vector<1x256xf32>
    %127 = tpu.matmul %115, %126, %cst_54 {dimension_numbers = #tpu.dot_dimension_numbers<[1], [0], [0], [1], [0, 0, 1, 1], [], []>} : vector<1x64xf32>, vector<64x256xf32>, vector<1x256xf32> -> vector<1x256xf32>
    %128 = tpu.concatenate %118, %121, %124, %127 in 0 : vector<1x256xf32>, vector<1x256xf32>, vector<1x256xf32>, vector<1x256xf32> -> vector<4x256xf32>
    %c0_55 = arith.constant 0 : index
    %c0_56 = arith.constant 0 : index
    %129 = vector.load %arg8[%c0_55, %c0_56] : memref<4x4xf32, #tpu.memory_space<vmem>>, vector<4x4xf32>
    %cst_57 = arith.constant dense<0.000000e+00> : vector<4x256xf32>
    %130 = tpu.matmul %129, %1, %cst_57 {dimension_numbers = #tpu.dot_dimension_numbers<[1], [0], [0], [1], [0, 0, 1, 1], [], []>} : vector<4x4xf32>, vector<4x256xf32>, vector<4x256xf32> -> vector<4x256xf32>
    %c0_58 = arith.constant 0 : index
    %c0_59 = arith.constant 0 : index
    %131 = vector.load %arg9[%c0_58, %c0_59] : memref<4x1xf32, #tpu.memory_space<vmem>>, vector<4x1xf32>
    %132 = vector.broadcast %131 : vector<4x1xf32> to vector<4x256xf32>
    %133 = arith.addf %130, %132 : vector<4x256xf32>
    %134 = math.tanh %133 : vector<4x256xf32>
    %c0_60 = arith.constant 0 : index
    %c0_61 = arith.constant 0 : index
    %135 = vector.load %arg10[%c0_60, %c0_61] : memref<2x4xf32, #tpu.memory_space<vmem>>, vector<2x4xf32>
    %cst_62 = arith.constant dense<0.000000e+00> : vector<2x256xf32>
    %136 = tpu.matmul %135, %134, %cst_62 {dimension_numbers = #tpu.dot_dimension_numbers<[1], [0], [0], [1], [0, 0, 1, 1], [], []>} : vector<2x4xf32>, vector<4x256xf32>, vector<2x256xf32> -> vector<2x256xf32>
    %c0_63 = arith.constant 0 : index
    %c0_64 = arith.constant 0 : index
    %137 = vector.load %arg11[%c0_63, %c0_64] : memref<2x1xf32, #tpu.memory_space<vmem>>, vector<2x1xf32>
    %138 = vector.broadcast %137 : vector<2x1xf32> to vector<2x256xf32>
    %139 = arith.addf %136, %138 : vector<2x256xf32>
    %140 = math.tanh %139 : vector<2x256xf32>
    %141 = vector.extract_strided_slice %140 {offsets = [0, 0], sizes = [1, 256], strides = [1, 1]} : vector<2x256xf32> to vector<1x256xf32>
    %142 = vector.extract_strided_slice %140 {offsets = [1, 0], sizes = [1, 256], strides = [1, 1]} : vector<2x256xf32> to vector<1x256xf32>
    %143 = tpu.iota {dimensions = array<i32: 0>} : vector<64x1xi32>
    %144 = arith.sitofp %143 : vector<64x1xi32> to vector<64x1xf32>
    %cst_65 = arith.constant 5.000000e-01 : f32
    %145 = vector.broadcast %cst_65 : f32 to vector<64x1xf32>
    %146 = arith.addf %144, %145 : vector<64x1xf32>
    %cst_66 = arith.constant 1.250000e-01 : f32
    %147 = vector.broadcast %cst_66 : f32 to vector<64x1xf32>
    %148 = arith.mulf %146, %147 : vector<64x1xf32>
    %149 = math.floor %148 : vector<64x1xf32>
    %cst_67 = arith.constant 8.000000e+00 : f32
    %150 = vector.broadcast %cst_67 : f32 to vector<64x1xf32>
    %151 = arith.mulf %149, %150 : vector<64x1xf32>
    %152 = arith.subf %144, %151 : vector<64x1xf32>
    %cst_68 = arith.constant 2.560000e+02 : f32
    %153 = vector.broadcast %cst_68 : f32 to vector<64x1xf32>
    %154 = arith.mulf %149, %153 : vector<64x1xf32>
    %155 = arith.addf %154, %152 : vector<64x1xf32>
    %cst_69 = arith.constant 1.000000e+00 : f32
    %156 = vector.broadcast %cst_69 : f32 to vector<1x256xf32>
    %157 = arith.addf %141, %156 : vector<1x256xf32>
    %cst_70 = arith.constant 4.000000e+00 : f32
    %158 = vector.broadcast %cst_70 : f32 to vector<1x256xf32>
    %159 = arith.mulf %157, %158 : vector<1x256xf32>
    %cst_71 = arith.constant 5.000000e-01 : f32
    %160 = vector.broadcast %cst_71 : f32 to vector<1x256xf32>
    %161 = arith.subf %159, %160 : vector<1x256xf32>
    %cst_72 = arith.constant 1.000000e+00 : f32
    %162 = vector.broadcast %cst_72 : f32 to vector<1x256xf32>
    %163 = arith.addf %142, %162 : vector<1x256xf32>
    %cst_73 = arith.constant 4.000000e+00 : f32
    %164 = vector.broadcast %cst_73 : f32 to vector<1x256xf32>
    %165 = arith.mulf %163, %164 : vector<1x256xf32>
    %cst_74 = arith.constant 5.000000e-01 : f32
    %166 = vector.broadcast %cst_74 : f32 to vector<1x256xf32>
    %167 = arith.subf %165, %166 : vector<1x256xf32>
    %168 = math.floor %161 : vector<1x256xf32>
    %169 = math.floor %167 : vector<1x256xf32>
    %170 = arith.subf %161, %168 : vector<1x256xf32>
    %171 = arith.subf %167, %169 : vector<1x256xf32>
    %cst_75 = arith.constant 1.000000e+00 : f32
    %172 = vector.broadcast %cst_75 : f32 to vector<1x256xf32>
    %173 = arith.subf %172, %170 : vector<1x256xf32>
    %cst_76 = arith.constant 1.000000e+00 : f32
    %174 = vector.broadcast %cst_76 : f32 to vector<1x256xf32>
    %175 = arith.subf %174, %171 : vector<1x256xf32>
    %176 = arith.mulf %173, %175 : vector<1x256xf32>
    %cst_77 = arith.constant 2.560000e+02 : f32
    %177 = vector.broadcast %cst_77 : f32 to vector<1x256xf32>
    %178 = arith.mulf %169, %177 : vector<1x256xf32>
    %179 = arith.addf %178, %168 : vector<1x256xf32>
    %180 = vector.broadcast %155 : vector<64x1xf32> to vector<64x256xf32>
    %181 = vector.broadcast %179 : vector<1x256xf32> to vector<64x256xf32>
    %182 = arith.cmpf oeq, %180, %181 : vector<64x256xf32>
    %cst_78 = arith.constant 0.000000e+00 : f32
    %183 = vector.shape_cast %176 : vector<1x256xf32> to vector<1x256xf32>
    %184 = vector.broadcast %183 : vector<1x256xf32> to vector<64x256xf32>
    %185 = vector.broadcast %cst_78 : f32 to vector<64x256xf32>
    %186 = arith.select %182, %184, %185 : vector<64x256xi1>, vector<64x256xf32>
    %cst_79 = arith.constant 1.000000e+00 : f32
    %187 = vector.broadcast %cst_79 : f32 to vector<1x256xf32>
    %188 = arith.addf %168, %187 : vector<1x256xf32>
    %cst_80 = arith.constant 1.000000e+00 : f32
    %189 = vector.broadcast %cst_80 : f32 to vector<1x256xf32>
    %190 = arith.subf %189, %171 : vector<1x256xf32>
    %191 = arith.mulf %170, %190 : vector<1x256xf32>
    %cst_81 = arith.constant 2.560000e+02 : f32
    %192 = vector.broadcast %cst_81 : f32 to vector<1x256xf32>
    %193 = arith.mulf %169, %192 : vector<1x256xf32>
    %194 = arith.addf %193, %188 : vector<1x256xf32>
    %195 = vector.broadcast %155 : vector<64x1xf32> to vector<64x256xf32>
    %196 = vector.broadcast %194 : vector<1x256xf32> to vector<64x256xf32>
    %197 = arith.cmpf oeq, %195, %196 : vector<64x256xf32>
    %cst_82 = arith.constant 0.000000e+00 : f32
    %198 = vector.shape_cast %191 : vector<1x256xf32> to vector<1x256xf32>
    %199 = vector.broadcast %198 : vector<1x256xf32> to vector<64x256xf32>
    %200 = vector.broadcast %cst_82 : f32 to vector<64x256xf32>
    %201 = arith.select %197, %199, %200 : vector<64x256xi1>, vector<64x256xf32>
    %202 = arith.addf %186, %201 : vector<64x256xf32>
    %cst_83 = arith.constant 1.000000e+00 : f32
    %203 = vector.broadcast %cst_83 : f32 to vector<1x256xf32>
    %204 = arith.addf %169, %203 : vector<1x256xf32>
    %cst_84 = arith.constant 1.000000e+00 : f32
    %205 = vector.broadcast %cst_84 : f32 to vector<1x256xf32>
    %206 = arith.subf %205, %170 : vector<1x256xf32>
    %207 = arith.mulf %206, %171 : vector<1x256xf32>
    %cst_85 = arith.constant 2.560000e+02 : f32
    %208 = vector.broadcast %cst_85 : f32 to vector<1x256xf32>
    %209 = arith.mulf %204, %208 : vector<1x256xf32>
    %210 = arith.addf %209, %168 : vector<1x256xf32>
    %211 = vector.broadcast %155 : vector<64x1xf32> to vector<64x256xf32>
    %212 = vector.broadcast %210 : vector<1x256xf32> to vector<64x256xf32>
    %213 = arith.cmpf oeq, %211, %212 : vector<64x256xf32>
    %cst_86 = arith.constant 0.000000e+00 : f32
    %214 = vector.shape_cast %207 : vector<1x256xf32> to vector<1x256xf32>
    %215 = vector.broadcast %214 : vector<1x256xf32> to vector<64x256xf32>
    %216 = vector.broadcast %cst_86 : f32 to vector<64x256xf32>
    %217 = arith.select %213, %215, %216 : vector<64x256xi1>, vector<64x256xf32>
    %218 = arith.addf %202, %217 : vector<64x256xf32>
    %cst_87 = arith.constant 1.000000e+00 : f32
    %219 = vector.broadcast %cst_87 : f32 to vector<1x256xf32>
    %220 = arith.addf %168, %219 : vector<1x256xf32>
    %cst_88 = arith.constant 1.000000e+00 : f32
    %221 = vector.broadcast %cst_88 : f32 to vector<1x256xf32>
    %222 = arith.addf %169, %221 : vector<1x256xf32>
    %223 = arith.mulf %170, %171 : vector<1x256xf32>
    %cst_89 = arith.constant 2.560000e+02 : f32
    %224 = vector.broadcast %cst_89 : f32 to vector<1x256xf32>
    %225 = arith.mulf %222, %224 : vector<1x256xf32>
    %226 = arith.addf %225, %220 : vector<1x256xf32>
    %227 = vector.broadcast %155 : vector<64x1xf32> to vector<64x256xf32>
    %228 = vector.broadcast %226 : vector<1x256xf32> to vector<64x256xf32>
    %229 = arith.cmpf oeq, %227, %228 : vector<64x256xf32>
    %cst_90 = arith.constant 0.000000e+00 : f32
    %230 = vector.shape_cast %223 : vector<1x256xf32> to vector<1x256xf32>
    %231 = vector.broadcast %230 : vector<1x256xf32> to vector<64x256xf32>
    %232 = vector.broadcast %cst_90 : f32 to vector<64x256xf32>
    %233 = arith.select %229, %231, %232 : vector<64x256xi1>, vector<64x256xf32>
    %234 = arith.addf %218, %233 : vector<64x256xf32>
    %c0_91 = arith.constant 0 : index
    %c0_92 = arith.constant 0 : index
    %235 = vector.load %arg3[%c0_91, %c0_92] : memref<4x64xf32, #tpu.memory_space<vmem>>, vector<4x64xf32>
    %cst_93 = arith.constant dense<0.000000e+00> : vector<4x256xf32>
    %236 = tpu.matmul %235, %234, %cst_93 {dimension_numbers = #tpu.dot_dimension_numbers<[1], [0], [0], [1], [0, 0, 1, 1], [], []>} : vector<4x64xf32>, vector<64x256xf32>, vector<4x256xf32> -> vector<4x256xf32>
    %237 = tpu.concatenate %128, %236 in 0 : vector<4x256xf32>, vector<4x256xf32> -> vector<8x256xf32>
    %cst_94 = arith.constant -1.000000e+00 : f32
    %238 = vector.broadcast %cst_94 : f32 to vector<1x256xf32>
    %239 = arith.addf %8, %238 : vector<1x256xf32>
    %cst_95 = arith.constant 0.000000e+00 : f32
    %240 = vector.broadcast %cst_95 : f32 to vector<1x256xf32>
    %241 = arith.cmpf oge, %239, %240 : vector<1x256xf32>
    %cst_96 = arith.constant -1.000000e+00 : f32
    %242 = vector.broadcast %cst_96 : f32 to vector<1x256xf32>
    %243 = arith.addf %8, %242 : vector<1x256xf32>
    %cst_97 = arith.constant 1.500000e+01 : f32
    %244 = vector.broadcast %cst_97 : f32 to vector<1x256xf32>
    %245 = arith.cmpf ole, %243, %244 : vector<1x256xf32>
    %246 = arith.andi %241, %245 : vector<1x256xi1>
    %cst_98 = arith.constant -1.000000e+00 : f32
    %247 = vector.broadcast %cst_98 : f32 to vector<1x256xf32>
    %248 = arith.addf %11, %247 : vector<1x256xf32>
    %cst_99 = arith.constant 0.000000e+00 : f32
    %249 = vector.broadcast %cst_99 : f32 to vector<1x256xf32>
    %250 = arith.cmpf oge, %248, %249 : vector<1x256xf32>
    %251 = arith.andi %246, %250 : vector<1x256xi1>
    %cst_100 = arith.constant -1.000000e+00 : f32
    %252 = vector.broadcast %cst_100 : f32 to vector<1x256xf32>
    %253 = arith.addf %11, %252 : vector<1x256xf32>
    %cst_101 = arith.constant 1.500000e+01 : f32
    %254 = vector.broadcast %cst_101 : f32 to vector<1x256xf32>
    %255 = arith.cmpf ole, %253, %254 : vector<1x256xf32>
    %256 = arith.andi %251, %255 : vector<1x256xi1>
    %257 = arith.extui %256 : vector<1x256xi1> to vector<1x256xi32>
    %258 = arith.sitofp %257 : vector<1x256xi32> to vector<1x256xf32>
    %cst_102 = arith.constant -1.000000e+00 : f32
    %259 = vector.broadcast %cst_102 : f32 to vector<1x256xf32>
    %260 = arith.addf %8, %259 : vector<1x256xf32>
    %cst_103 = arith.constant 0.000000e+00 : f32
    %261 = vector.broadcast %cst_103 : f32 to vector<1x256xf32>
    %262 = arith.cmpf oge, %260, %261 : vector<1x256xf32>
    %cst_104 = arith.constant -1.000000e+00 : f32
    %263 = vector.broadcast %cst_104 : f32 to vector<1x256xf32>
    %264 = arith.addf %8, %263 : vector<1x256xf32>
    %cst_105 = arith.constant 1.500000e+01 : f32
    %265 = vector.broadcast %cst_105 : f32 to vector<1x256xf32>
    %266 = arith.cmpf ole, %264, %265 : vector<1x256xf32>
    %267 = arith.andi %262, %266 : vector<1x256xi1>
    %cst_106 = arith.constant 0.000000e+00 : f32
    %268 = vector.broadcast %cst_106 : f32 to vector<1x256xf32>
    %269 = arith.addf %11, %268 : vector<1x256xf32>
    %cst_107 = arith.constant 0.000000e+00 : f32
    %270 = vector.broadcast %cst_107 : f32 to vector<1x256xf32>
    %271 = arith.cmpf oge, %269, %270 : vector<1x256xf32>
    %272 = arith.andi %267, %271 : vector<1x256xi1>
    %cst_108 = arith.constant 0.000000e+00 : f32
    %273 = vector.broadcast %cst_108 : f32 to vector<1x256xf32>
    %274 = arith.addf %11, %273 : vector<1x256xf32>
    %cst_109 = arith.constant 1.500000e+01 : f32
    %275 = vector.broadcast %cst_109 : f32 to vector<1x256xf32>
    %276 = arith.cmpf ole, %274, %275 : vector<1x256xf32>
    %277 = arith.andi %272, %276 : vector<1x256xi1>
    %278 = arith.extui %277 : vector<1x256xi1> to vector<1x256xi32>
    %279 = arith.sitofp %278 : vector<1x256xi32> to vector<1x256xf32>
    %cst_110 = arith.constant -1.000000e+00 : f32
    %280 = vector.broadcast %cst_110 : f32 to vector<1x256xf32>
    %281 = arith.addf %8, %280 : vector<1x256xf32>
    %cst_111 = arith.constant 0.000000e+00 : f32
    %282 = vector.broadcast %cst_111 : f32 to vector<1x256xf32>
    %283 = arith.cmpf oge, %281, %282 : vector<1x256xf32>
    %cst_112 = arith.constant -1.000000e+00 : f32
    %284 = vector.broadcast %cst_112 : f32 to vector<1x256xf32>
    %285 = arith.addf %8, %284 : vector<1x256xf32>
    %cst_113 = arith.constant 1.500000e+01 : f32
    %286 = vector.broadcast %cst_113 : f32 to vector<1x256xf32>
    %287 = arith.cmpf ole, %285, %286 : vector<1x256xf32>
    %288 = arith.andi %283, %287 : vector<1x256xi1>
    %cst_114 = arith.constant 1.000000e+00 : f32
    %289 = vector.broadcast %cst_114 : f32 to vector<1x256xf32>
    %290 = arith.addf %11, %289 : vector<1x256xf32>
    %cst_115 = arith.constant 0.000000e+00 : f32
    %291 = vector.broadcast %cst_115 : f32 to vector<1x256xf32>
    %292 = arith.cmpf oge, %290, %291 : vector<1x256xf32>
    %293 = arith.andi %288, %292 : vector<1x256xi1>
    %cst_116 = arith.constant 1.000000e+00 : f32
    %294 = vector.broadcast %cst_116 : f32 to vector<1x256xf32>
    %295 = arith.addf %11, %294 : vector<1x256xf32>
    %cst_117 = arith.constant 1.500000e+01 : f32
    %296 = vector.broadcast %cst_117 : f32 to vector<1x256xf32>
    %297 = arith.cmpf ole, %295, %296 : vector<1x256xf32>
    %298 = arith.andi %293, %297 : vector<1x256xi1>
    %299 = arith.extui %298 : vector<1x256xi1> to vector<1x256xi32>
    %300 = arith.sitofp %299 : vector<1x256xi32> to vector<1x256xf32>
    %cst_118 = arith.constant 0.000000e+00 : f32
    %301 = vector.broadcast %cst_118 : f32 to vector<1x256xf32>
    %302 = arith.addf %8, %301 : vector<1x256xf32>
    %cst_119 = arith.constant 0.000000e+00 : f32
    %303 = vector.broadcast %cst_119 : f32 to vector<1x256xf32>
    %304 = arith.cmpf oge, %302, %303 : vector<1x256xf32>
    %cst_120 = arith.constant 0.000000e+00 : f32
    %305 = vector.broadcast %cst_120 : f32 to vector<1x256xf32>
    %306 = arith.addf %8, %305 : vector<1x256xf32>
    %cst_121 = arith.constant 1.500000e+01 : f32
    %307 = vector.broadcast %cst_121 : f32 to vector<1x256xf32>
    %308 = arith.cmpf ole, %306, %307 : vector<1x256xf32>
    %309 = arith.andi %304, %308 : vector<1x256xi1>
    %cst_122 = arith.constant -1.000000e+00 : f32
    %310 = vector.broadcast %cst_122 : f32 to vector<1x256xf32>
    %311 = arith.addf %11, %310 : vector<1x256xf32>
    %cst_123 = arith.constant 0.000000e+00 : f32
    %312 = vector.broadcast %cst_123 : f32 to vector<1x256xf32>
    %313 = arith.cmpf oge, %311, %312 : vector<1x256xf32>
    %314 = arith.andi %309, %313 : vector<1x256xi1>
    %cst_124 = arith.constant -1.000000e+00 : f32
    %315 = vector.broadcast %cst_124 : f32 to vector<1x256xf32>
    %316 = arith.addf %11, %315 : vector<1x256xf32>
    %cst_125 = arith.constant 1.500000e+01 : f32
    %317 = vector.broadcast %cst_125 : f32 to vector<1x256xf32>
    %318 = arith.cmpf ole, %316, %317 : vector<1x256xf32>
    %319 = arith.andi %314, %318 : vector<1x256xi1>
    %320 = arith.extui %319 : vector<1x256xi1> to vector<1x256xi32>
    %321 = arith.sitofp %320 : vector<1x256xi32> to vector<1x256xf32>
    %cst_126 = arith.constant 0.000000e+00 : f32
    %322 = vector.broadcast %cst_126 : f32 to vector<1x256xf32>
    %323 = arith.addf %8, %322 : vector<1x256xf32>
    %cst_127 = arith.constant 0.000000e+00 : f32
    %324 = vector.broadcast %cst_127 : f32 to vector<1x256xf32>
    %325 = arith.cmpf oge, %323, %324 : vector<1x256xf32>
    %cst_128 = arith.constant 0.000000e+00 : f32
    %326 = vector.broadcast %cst_128 : f32 to vector<1x256xf32>
    %327 = arith.addf %8, %326 : vector<1x256xf32>
    %cst_129 = arith.constant 1.500000e+01 : f32
    %328 = vector.broadcast %cst_129 : f32 to vector<1x256xf32>
    %329 = arith.cmpf ole, %327, %328 : vector<1x256xf32>
    %330 = arith.andi %325, %329 : vector<1x256xi1>
    %cst_130 = arith.constant 1.000000e+00 : f32
    %331 = vector.broadcast %cst_130 : f32 to vector<1x256xf32>
    %332 = arith.addf %11, %331 : vector<1x256xf32>
    %cst_131 = arith.constant 0.000000e+00 : f32
    %333 = vector.broadcast %cst_131 : f32 to vector<1x256xf32>
    %334 = arith.cmpf oge, %332, %333 : vector<1x256xf32>
    %335 = arith.andi %330, %334 : vector<1x256xi1>
    %cst_132 = arith.constant 1.000000e+00 : f32
    %336 = vector.broadcast %cst_132 : f32 to vector<1x256xf32>
    %337 = arith.addf %11, %336 : vector<1x256xf32>
    %cst_133 = arith.constant 1.500000e+01 : f32
    %338 = vector.broadcast %cst_133 : f32 to vector<1x256xf32>
    %339 = arith.cmpf ole, %337, %338 : vector<1x256xf32>
    %340 = arith.andi %335, %339 : vector<1x256xi1>
    %341 = arith.extui %340 : vector<1x256xi1> to vector<1x256xi32>
    %342 = arith.sitofp %341 : vector<1x256xi32> to vector<1x256xf32>
    %cst_134 = arith.constant 1.000000e+00 : f32
    %343 = vector.broadcast %cst_134 : f32 to vector<1x256xf32>
    %344 = arith.addf %8, %343 : vector<1x256xf32>
    %cst_135 = arith.constant 0.000000e+00 : f32
    %345 = vector.broadcast %cst_135 : f32 to vector<1x256xf32>
    %346 = arith.cmpf oge, %344, %345 : vector<1x256xf32>
    %cst_136 = arith.constant 1.000000e+00 : f32
    %347 = vector.broadcast %cst_136 : f32 to vector<1x256xf32>
    %348 = arith.addf %8, %347 : vector<1x256xf32>
    %cst_137 = arith.constant 1.500000e+01 : f32
    %349 = vector.broadcast %cst_137 : f32 to vector<1x256xf32>
    %350 = arith.cmpf ole, %348, %349 : vector<1x256xf32>
    %351 = arith.andi %346, %350 : vector<1x256xi1>
    %cst_138 = arith.constant -1.000000e+00 : f32
    %352 = vector.broadcast %cst_138 : f32 to vector<1x256xf32>
    %353 = arith.addf %11, %352 : vector<1x256xf32>
    %cst_139 = arith.constant 0.000000e+00 : f32
    %354 = vector.broadcast %cst_139 : f32 to vector<1x256xf32>
    %355 = arith.cmpf oge, %353, %354 : vector<1x256xf32>
    %356 = arith.andi %351, %355 : vector<1x256xi1>
    %cst_140 = arith.constant -1.000000e+00 : f32
    %357 = vector.broadcast %cst_140 : f32 to vector<1x256xf32>
    %358 = arith.addf %11, %357 : vector<1x256xf32>
    %cst_141 = arith.constant 1.500000e+01 : f32
    %359 = vector.broadcast %cst_141 : f32 to vector<1x256xf32>
    %360 = arith.cmpf ole, %358, %359 : vector<1x256xf32>
    %361 = arith.andi %356, %360 : vector<1x256xi1>
    %362 = arith.extui %361 : vector<1x256xi1> to vector<1x256xi32>
    %363 = arith.sitofp %362 : vector<1x256xi32> to vector<1x256xf32>
    %cst_142 = arith.constant 1.000000e+00 : f32
    %364 = vector.broadcast %cst_142 : f32 to vector<1x256xf32>
    %365 = arith.addf %8, %364 : vector<1x256xf32>
    %cst_143 = arith.constant 0.000000e+00 : f32
    %366 = vector.broadcast %cst_143 : f32 to vector<1x256xf32>
    %367 = arith.cmpf oge, %365, %366 : vector<1x256xf32>
    %cst_144 = arith.constant 1.000000e+00 : f32
    %368 = vector.broadcast %cst_144 : f32 to vector<1x256xf32>
    %369 = arith.addf %8, %368 : vector<1x256xf32>
    %cst_145 = arith.constant 1.500000e+01 : f32
    %370 = vector.broadcast %cst_145 : f32 to vector<1x256xf32>
    %371 = arith.cmpf ole, %369, %370 : vector<1x256xf32>
    %372 = arith.andi %367, %371 : vector<1x256xi1>
    %cst_146 = arith.constant 0.000000e+00 : f32
    %373 = vector.broadcast %cst_146 : f32 to vector<1x256xf32>
    %374 = arith.addf %11, %373 : vector<1x256xf32>
    %cst_147 = arith.constant 0.000000e+00 : f32
    %375 = vector.broadcast %cst_147 : f32 to vector<1x256xf32>
    %376 = arith.cmpf oge, %374, %375 : vector<1x256xf32>
    %377 = arith.andi %372, %376 : vector<1x256xi1>
    %cst_148 = arith.constant 0.000000e+00 : f32
    %378 = vector.broadcast %cst_148 : f32 to vector<1x256xf32>
    %379 = arith.addf %11, %378 : vector<1x256xf32>
    %cst_149 = arith.constant 1.500000e+01 : f32
    %380 = vector.broadcast %cst_149 : f32 to vector<1x256xf32>
    %381 = arith.cmpf ole, %379, %380 : vector<1x256xf32>
    %382 = arith.andi %377, %381 : vector<1x256xi1>
    %383 = arith.extui %382 : vector<1x256xi1> to vector<1x256xi32>
    %384 = arith.sitofp %383 : vector<1x256xi32> to vector<1x256xf32>
    %cst_150 = arith.constant 1.000000e+00 : f32
    %385 = vector.broadcast %cst_150 : f32 to vector<1x256xf32>
    %386 = arith.addf %8, %385 : vector<1x256xf32>
    %cst_151 = arith.constant 0.000000e+00 : f32
    %387 = vector.broadcast %cst_151 : f32 to vector<1x256xf32>
    %388 = arith.cmpf oge, %386, %387 : vector<1x256xf32>
    %cst_152 = arith.constant 1.000000e+00 : f32
    %389 = vector.broadcast %cst_152 : f32 to vector<1x256xf32>
    %390 = arith.addf %8, %389 : vector<1x256xf32>
    %cst_153 = arith.constant 1.500000e+01 : f32
    %391 = vector.broadcast %cst_153 : f32 to vector<1x256xf32>
    %392 = arith.cmpf ole, %390, %391 : vector<1x256xf32>
    %393 = arith.andi %388, %392 : vector<1x256xi1>
    %cst_154 = arith.constant 1.000000e+00 : f32
    %394 = vector.broadcast %cst_154 : f32 to vector<1x256xf32>
    %395 = arith.addf %11, %394 : vector<1x256xf32>
    %cst_155 = arith.constant 0.000000e+00 : f32
    %396 = vector.broadcast %cst_155 : f32 to vector<1x256xf32>
    %397 = arith.cmpf oge, %395, %396 : vector<1x256xf32>
    %398 = arith.andi %393, %397 : vector<1x256xi1>
    %cst_156 = arith.constant 1.000000e+00 : f32
    %399 = vector.broadcast %cst_156 : f32 to vector<1x256xf32>
    %400 = arith.addf %11, %399 : vector<1x256xf32>
    %cst_157 = arith.constant 1.500000e+01 : f32
    %401 = vector.broadcast %cst_157 : f32 to vector<1x256xf32>
    %402 = arith.cmpf ole, %400, %401 : vector<1x256xf32>
    %403 = arith.andi %398, %402 : vector<1x256xi1>
    %404 = arith.extui %403 : vector<1x256xi1> to vector<1x256xi32>
    %405 = arith.sitofp %404 : vector<1x256xi32> to vector<1x256xf32>
    %c17_i32 = arith.constant 17 : i32
    %406 = tpu.dynamic_rotate %237 by %c17_i32 dim 1 : vector<8x256xf32>, i32 -> vector<8x256xf32>
    %407 = vector.broadcast %258 : vector<1x256xf32> to vector<8x256xf32>
    %408 = arith.mulf %406, %407 : vector<8x256xf32>
    %c16_i32 = arith.constant 16 : i32
    %409 = tpu.dynamic_rotate %237 by %c16_i32 dim 1 : vector<8x256xf32>, i32 -> vector<8x256xf32>
    %410 = vector.broadcast %279 : vector<1x256xf32> to vector<8x256xf32>
    %411 = arith.mulf %409, %410 : vector<8x256xf32>
    %c15_i32 = arith.constant 15 : i32
    %412 = tpu.dynamic_rotate %237 by %c15_i32 dim 1 : vector<8x256xf32>, i32 -> vector<8x256xf32>
    %413 = vector.broadcast %300 : vector<1x256xf32> to vector<8x256xf32>
    %414 = arith.mulf %412, %413 : vector<8x256xf32>
    %c1_i32 = arith.constant 1 : i32
    %415 = tpu.dynamic_rotate %237 by %c1_i32 dim 1 : vector<8x256xf32>, i32 -> vector<8x256xf32>
    %416 = vector.broadcast %321 : vector<1x256xf32> to vector<8x256xf32>
    %417 = arith.mulf %415, %416 : vector<8x256xf32>
    %c255_i32 = arith.constant 255 : i32
    %418 = tpu.dynamic_rotate %237 by %c255_i32 dim 1 : vector<8x256xf32>, i32 -> vector<8x256xf32>
    %419 = vector.broadcast %342 : vector<1x256xf32> to vector<8x256xf32>
    %420 = arith.mulf %418, %419 : vector<8x256xf32>
    %c241_i32 = arith.constant 241 : i32
    %421 = tpu.dynamic_rotate %237 by %c241_i32 dim 1 : vector<8x256xf32>, i32 -> vector<8x256xf32>
    %422 = vector.broadcast %363 : vector<1x256xf32> to vector<8x256xf32>
    %423 = arith.mulf %421, %422 : vector<8x256xf32>
    %c240_i32 = arith.constant 240 : i32
    %424 = tpu.dynamic_rotate %237 by %c240_i32 dim 1 : vector<8x256xf32>, i32 -> vector<8x256xf32>
    %425 = vector.broadcast %384 : vector<1x256xf32> to vector<8x256xf32>
    %426 = arith.mulf %424, %425 : vector<8x256xf32>
    %c239_i32 = arith.constant 239 : i32
    %427 = tpu.dynamic_rotate %237 by %c239_i32 dim 1 : vector<8x256xf32>, i32 -> vector<8x256xf32>
    %428 = vector.broadcast %405 : vector<1x256xf32> to vector<8x256xf32>
    %429 = arith.mulf %427, %428 : vector<8x256xf32>
    %430 = tpu.concatenate %408, %411, %414, %417, %237, %420, %423, %426, %429 in 0 : vector<8x256xf32>, vector<8x256xf32>, vector<8x256xf32>, vector<8x256xf32>, vector<8x256xf32>, vector<8x256xf32>, vector<8x256xf32>, vector<8x256xf32>, vector<8x256xf32> -> vector<72x256xf32>
    %c0_158 = arith.constant 0 : index
    %c0_159 = arith.constant 0 : index
    %431 = vector.load %arg12[%c0_158, %c0_159] : memref<8x72xf32, #tpu.memory_space<vmem>>, vector<8x72xf32>
    %cst_160 = arith.constant dense<0.000000e+00> : vector<8x256xf32>
    %432 = tpu.matmul %431, %430, %cst_160 {dimension_numbers = #tpu.dot_dimension_numbers<[1], [0], [0], [1], [0, 0, 1, 1], [], []>} : vector<8x72xf32>, vector<72x256xf32>, vector<8x256xf32> -> vector<8x256xf32>
    %c0_161 = arith.constant 0 : index
    %c0_162 = arith.constant 0 : index
    %433 = vector.load %arg13[%c0_161, %c0_162] : memref<8x1xf32, #tpu.memory_space<vmem>>, vector<8x1xf32>
    %434 = vector.broadcast %433 : vector<8x1xf32> to vector<8x256xf32>
    %435 = arith.addf %432, %434 : vector<8x256xf32>
    %cst_163 = arith.constant 0.000000e+00 : f32
    %436 = vector.broadcast %cst_163 : f32 to vector<8x256xf32>
    %437 = arith.maximumf %435, %436 : vector<8x256xf32>
    %c17_i32_164 = arith.constant 17 : i32
    %438 = tpu.dynamic_rotate %437 by %c17_i32_164 dim 1 : vector<8x256xf32>, i32 -> vector<8x256xf32>
    %439 = vector.broadcast %258 : vector<1x256xf32> to vector<8x256xf32>
    %440 = arith.mulf %438, %439 : vector<8x256xf32>
    %c16_i32_165 = arith.constant 16 : i32
    %441 = tpu.dynamic_rotate %437 by %c16_i32_165 dim 1 : vector<8x256xf32>, i32 -> vector<8x256xf32>
    %442 = vector.broadcast %279 : vector<1x256xf32> to vector<8x256xf32>
    %443 = arith.mulf %441, %442 : vector<8x256xf32>
    %c15_i32_166 = arith.constant 15 : i32
    %444 = tpu.dynamic_rotate %437 by %c15_i32_166 dim 1 : vector<8x256xf32>, i32 -> vector<8x256xf32>
    %445 = vector.broadcast %300 : vector<1x256xf32> to vector<8x256xf32>
    %446 = arith.mulf %444, %445 : vector<8x256xf32>
    %c1_i32_167 = arith.constant 1 : i32
    %447 = tpu.dynamic_rotate %437 by %c1_i32_167 dim 1 : vector<8x256xf32>, i32 -> vector<8x256xf32>
    %448 = vector.broadcast %321 : vector<1x256xf32> to vector<8x256xf32>
    %449 = arith.mulf %447, %448 : vector<8x256xf32>
    %c255_i32_168 = arith.constant 255 : i32
    %450 = tpu.dynamic_rotate %437 by %c255_i32_168 dim 1 : vector<8x256xf32>, i32 -> vector<8x256xf32>
    %451 = vector.broadcast %342 : vector<1x256xf32> to vector<8x256xf32>
    %452 = arith.mulf %450, %451 : vector<8x256xf32>
    %c241_i32_169 = arith.constant 241 : i32
    %453 = tpu.dynamic_rotate %437 by %c241_i32_169 dim 1 : vector<8x256xf32>, i32 -> vector<8x256xf32>
    %454 = vector.broadcast %363 : vector<1x256xf32> to vector<8x256xf32>
    %455 = arith.mulf %453, %454 : vector<8x256xf32>
    %c240_i32_170 = arith.constant 240 : i32
    %456 = tpu.dynamic_rotate %437 by %c240_i32_170 dim 1 : vector<8x256xf32>, i32 -> vector<8x256xf32>
    %457 = vector.broadcast %384 : vector<1x256xf32> to vector<8x256xf32>
    %458 = arith.mulf %456, %457 : vector<8x256xf32>
    %c239_i32_171 = arith.constant 239 : i32
    %459 = tpu.dynamic_rotate %437 by %c239_i32_171 dim 1 : vector<8x256xf32>, i32 -> vector<8x256xf32>
    %460 = vector.broadcast %405 : vector<1x256xf32> to vector<8x256xf32>
    %461 = arith.mulf %459, %460 : vector<8x256xf32>
    %462 = tpu.concatenate %440, %443, %446, %449, %437, %452, %455, %458, %461 in 0 : vector<8x256xf32>, vector<8x256xf32>, vector<8x256xf32>, vector<8x256xf32>, vector<8x256xf32>, vector<8x256xf32>, vector<8x256xf32>, vector<8x256xf32>, vector<8x256xf32> -> vector<72x256xf32>
    %c0_172 = arith.constant 0 : index
    %c0_173 = arith.constant 0 : index
    %463 = vector.load %arg14[%c0_172, %c0_173] : memref<8x72xf32, #tpu.memory_space<vmem>>, vector<8x72xf32>
    %cst_174 = arith.constant dense<0.000000e+00> : vector<8x256xf32>
    %464 = tpu.matmul %463, %462, %cst_174 {dimension_numbers = #tpu.dot_dimension_numbers<[1], [0], [0], [1], [0, 0, 1, 1], [], []>} : vector<8x72xf32>, vector<72x256xf32>, vector<8x256xf32> -> vector<8x256xf32>
    %c0_175 = arith.constant 0 : index
    %c0_176 = arith.constant 0 : index
    %465 = vector.load %arg15[%c0_175, %c0_176] : memref<8x1xf32, #tpu.memory_space<vmem>>, vector<8x1xf32>
    %466 = vector.broadcast %465 : vector<8x1xf32> to vector<8x256xf32>
    %467 = arith.addf %464, %466 : vector<8x256xf32>
    %468 = arith.addf %467, %237 : vector<8x256xf32>
    %cst_177 = arith.constant 0.000000e+00 : f32
    %469 = vector.broadcast %cst_177 : f32 to vector<8x256xf32>
    %470 = arith.maximumf %468, %469 : vector<8x256xf32>
    %c0_178 = arith.constant 0 : index
    %c0_179 = arith.constant 0 : index
    %471 = vector.load %arg16[%c0_178, %c0_179] : memref<4x8xf32, #tpu.memory_space<vmem>>, vector<4x8xf32>
    %cst_180 = arith.constant dense<0.000000e+00> : vector<4x256xf32>
    %472 = tpu.matmul %471, %470, %cst_180 {dimension_numbers = #tpu.dot_dimension_numbers<[1], [0], [0], [1], [0, 0, 1, 1], [], []>} : vector<4x8xf32>, vector<8x256xf32>, vector<4x256xf32> -> vector<4x256xf32>
    %473 = arith.subf %472, %1 : vector<4x256xf32>
    %474 = arith.mulf %473, %473 : vector<4x256xf32>
    %cst_181 = arith.constant dense<0.000000e+00> : vector<256xf32>
    %475 = vector.multi_reduction <add>, %474, %cst_181 [0] : vector<4x256xf32> to vector<256xf32>
    %476 = vector.shape_cast %475 : vector<256xf32> to vector<1x256xf32>
    %cst_182 = arith.constant 4.000000e+00 : f32
    %477 = vector.broadcast %cst_182 : f32 to vector<1x256xf32>
    %478 = arith.divf %476, %477 : vector<1x256xf32>
    %cst_183 = arith.constant 5.000000e+00 : f32
    %479 = vector.broadcast %cst_183 : f32 to vector<1x256xf32>
    %480 = arith.mulf %478, %479 : vector<1x256xf32>
    %cst_184 = arith.constant 0.000000e+00 : f32
    %cst_185 = arith.constant 1.000000e+00 : f32
    %481 = vector.broadcast %cst_184 : f32 to vector<1x256xf32>
    %482 = arith.maximumf %481, %480 : vector<1x256xf32>
    %483 = vector.broadcast %cst_185 : f32 to vector<1x256xf32>
    %484 = arith.minimumf %483, %482 : vector<1x256xf32>
    %485 = math.roundeven %484 : vector<1x256xf32>
    %cst_186 = arith.constant 1.000000e+00 : f32
    %486 = vector.broadcast %cst_186 : f32 to vector<1x256xf32>
    %487 = arith.subf %486, %485 : vector<1x256xf32>
    %488 = arith.mulf %472, %1 : vector<4x256xf32>
    %cst_187 = arith.constant dense<0.000000e+00> : vector<256xf32>
    %489 = vector.multi_reduction <add>, %488, %cst_187 [0] : vector<4x256xf32> to vector<256xf32>
    %490 = vector.shape_cast %489 : vector<256xf32> to vector<1x256xf32>
    %491 = arith.mulf %472, %472 : vector<4x256xf32>
    %cst_188 = arith.constant dense<0.000000e+00> : vector<256xf32>
    %492 = vector.multi_reduction <add>, %491, %cst_188 [0] : vector<4x256xf32> to vector<256xf32>
    %493 = vector.shape_cast %492 : vector<256xf32> to vector<1x256xf32>
    %494 = arith.mulf %1, %1 : vector<4x256xf32>
    %cst_189 = arith.constant dense<0.000000e+00> : vector<256xf32>
    %495 = vector.multi_reduction <add>, %494, %cst_189 [0] : vector<4x256xf32> to vector<256xf32>
    %496 = vector.shape_cast %495 : vector<256xf32> to vector<1x256xf32>
    %497 = arith.mulf %493, %496 : vector<1x256xf32>
    %cst_190 = arith.constant 1.000000e-16 : f32
    %498 = vector.broadcast %cst_190 : f32 to vector<1x256xf32>
    %499 = arith.maximumf %497, %498 : vector<1x256xf32>
    %500 = math.rsqrt %499 : vector<1x256xf32>
    %501 = arith.mulf %490, %500 : vector<1x256xf32>
    %cst_191 = arith.constant 5.000000e-01 : f32
    %502 = vector.broadcast %cst_191 : f32 to vector<1x256xf32>
    %503 = arith.mulf %502, %487 : vector<1x256xf32>
    %cst_192 = arith.constant 5.000000e-01 : f32
    %504 = vector.broadcast %cst_192 : f32 to vector<1x256xf32>
    %505 = arith.mulf %504, %501 : vector<1x256xf32>
    %506 = arith.addf %503, %505 : vector<1x256xf32>
    %507 = vector.broadcast %506 : vector<1x256xf32> to vector<4x256xf32>
    %508 = arith.mulf %507, %1 : vector<4x256xf32>
    %cst_193 = arith.constant 1.000000e+00 : f32
    %509 = vector.broadcast %cst_193 : f32 to vector<1x256xf32>
    %510 = arith.subf %509, %506 : vector<1x256xf32>
    %511 = vector.broadcast %510 : vector<1x256xf32> to vector<4x256xf32>
    %512 = arith.mulf %511, %472 : vector<4x256xf32>
    %513 = arith.addf %508, %512 : vector<4x256xf32>
    %c0_194 = arith.constant 0 : index
    %c0_195 = arith.constant 0 : index
    %c0_196 = arith.constant 0 : index
    %514 = vector.load %arg19[%c0_194, %c0_195, %c0_196] : memref<1x4x256xf32, #tpu.memory_space<vmem>>, vector<1x4x256xf32>
    %515 = vector.shape_cast %514 : vector<1x4x256xf32> to vector<4x256xf32>
    %516 = vector.shape_cast %513 : vector<4x256xf32> to vector<1x4x256xf32>
    tpu.vector_store %arg19[%c0_194, %c0_195, %c0_196], %516 {strides = array<i32>} : memref<1x4x256xf32, #tpu.memory_space<vmem>>, vector<1x4x256xf32>,
    %517 = arith.subf %513, %1 : vector<4x256xf32>
    %518 = arith.mulf %517, %517 : vector<4x256xf32>
    %cst_197 = arith.constant dense<0.000000e+00> : vector<256xf32>
    %519 = vector.multi_reduction <add>, %518, %cst_197 [0] : vector<4x256xf32> to vector<256xf32>
    %520 = vector.shape_cast %519 : vector<256xf32> to vector<1x256xf32>
    %521 = math.sqrt %520 : vector<1x256xf32>
    %522 = tpu.iota {dimensions = array<i32: 0>} : vector<16x1xi32>
    %523 = arith.sitofp %522 : vector<16x1xi32> to vector<16x1xf32>
    %524 = vector.broadcast %8 : vector<1x256xf32> to vector<16x256xf32>
    %525 = vector.broadcast %523 : vector<16x1xf32> to vector<16x256xf32>
    %526 = arith.cmpf oeq, %524, %525 : vector<16x256xf32>
    %cst_198 = arith.constant 0.000000e+00 : f32
    %527 = vector.shape_cast %521 : vector<1x256xf32> to vector<1x256xf32>
    %528 = vector.broadcast %527 : vector<1x256xf32> to vector<16x256xf32>
    %529 = vector.broadcast %cst_198 : f32 to vector<16x256xf32>
    %530 = arith.select %526, %528, %529 : vector<16x256xi1>, vector<16x256xf32>
    %c0_199 = arith.constant 0 : index
    %c0_200 = arith.constant 0 : index
    %531 = vector.load %arg17[%c0_199, %c0_200] : memref<256x128xf32, #tpu.memory_space<vmem>>, vector<256x128xf32>
    %cst_201 = arith.constant dense<0.000000e+00> : vector<16x128xf32>
    %532 = tpu.matmul %530, %531, %cst_201 {dimension_numbers = #tpu.dot_dimension_numbers<[1], [0], [0], [1], [0, 0, 1, 1], [], []>} : vector<16x256xf32>, vector<256x128xf32>, vector<16x128xf32> -> vector<16x128xf32>
    %c0_202 = arith.constant 0 : index
    %c0_203 = arith.constant 0 : index
    %533 = vector.load %arg18[%c0_202, %c0_203] : memref<128x16xf32, #tpu.memory_space<vmem>>, vector<128x16xf32>
    %cst_204 = arith.constant dense<0.000000e+00> : vector<128x128xf32>
    %534 = tpu.matmul %533, %532, %cst_204 {dimension_numbers = #tpu.dot_dimension_numbers<[1], [0], [0], [1], [0, 0, 1, 1], [], []>} : vector<128x16xf32>, vector<16x128xf32>, vector<128x128xf32> -> vector<128x128xf32>
    %c0_205 = arith.constant 0 : index
    %c0_206 = arith.constant 0 : index
    %c0_207 = arith.constant 0 : index
    %c0_208 = arith.constant 0 : index
    %535 = vector.load %arg20[%c0_205, %c0_206, %c0_207, %c0_208] : memref<1x1x128x128xf32, #tpu.memory_space<vmem>>, vector<1x1x128x128xf32>
    %536 = vector.shape_cast %535 : vector<1x1x128x128xf32> to vector<128x128xf32>
    %537 = vector.shape_cast %534 : vector<128x128xf32> to vector<1x1x128x128xf32>
    tpu.vector_store %arg20[%c0_205, %c0_206, %c0_207, %c0_208], %537 {strides = array<i32>} : memref<1x1x128x128xf32, #tpu.memory_space<vmem>>, vector<1x1x128x128xf32>,
    return
  }
  func.func @transform_0(%arg0: i32) -> (i32, i32, i32) {
    %c0_i32 = arith.constant 0 : i32
    %c0_i32_0 = arith.constant 0 : i32
    %c0_i32_1 = arith.constant 0 : i32
    return %arg0, %c0_i32, %c0_i32_0 : i32, i32, i32
  }
  func.func @transform_1(%arg0: i32) -> (i32, i32, i32) {
    %c0_i32 = arith.constant 0 : i32
    %c0_i32_0 = arith.constant 0 : i32
    %c0_i32_1 = arith.constant 0 : i32
    %c0_i32_2 = arith.constant 0 : i32
    return %c0_i32, %c0_i32_0, %c0_i32_1 : i32, i32, i32
  }
  func.func @transform_2(%arg0: i32) -> (i32, i32) {
    %c0_i32 = arith.constant 0 : i32
    %c0_i32_0 = arith.constant 0 : i32
    %c0_i32_1 = arith.constant 0 : i32
    return %c0_i32, %c0_i32_0 : i32, i32
  }
  func.func @transform_3(%arg0: i32) -> (i32, i32) {
    %c0_i32 = arith.constant 0 : i32
    %c0_i32_0 = arith.constant 0 : i32
    %c0_i32_1 = arith.constant 0 : i32
    return %c0_i32, %c0_i32_0 : i32, i32
  }
  func.func @transform_4(%arg0: i32) -> (i32, i32) {
    %c0_i32 = arith.constant 0 : i32
    %c0_i32_0 = arith.constant 0 : i32
    %c0_i32_1 = arith.constant 0 : i32
    return %c0_i32, %c0_i32_0 : i32, i32
  }
  func.func @transform_5(%arg0: i32) -> (i32, i32) {
    %c0_i32 = arith.constant 0 : i32
    %c0_i32_0 = arith.constant 0 : i32
    %c0_i32_1 = arith.constant 0 : i32
    return %c0_i32, %c0_i32_0 : i32, i32
  }
  func.func @transform_6(%arg0: i32) -> (i32, i32) {
    %c0_i32 = arith.constant 0 : i32
    %c0_i32_0 = arith.constant 0 : i32
    %c0_i32_1 = arith.constant 0 : i32
    return %c0_i32, %c0_i32_0 : i32, i32
  }
  func.func @transform_7(%arg0: i32) -> (i32, i32) {
    %c0_i32 = arith.constant 0 : i32
    %c0_i32_0 = arith.constant 0 : i32
    %c0_i32_1 = arith.constant 0 : i32
    return %c0_i32, %c0_i32_0 : i32, i32
  }
  func.func @transform_8(%arg0: i32) -> (i32, i32) {
    %c0_i32 = arith.constant 0 : i32
    %c0_i32_0 = arith.constant 0 : i32
    %c0_i32_1 = arith.constant 0 : i32
    return %c0_i32, %c0_i32_0 : i32, i32
  }
  func.func @transform_9(%arg0: i32) -> (i32, i32) {
    %c0_i32 = arith.constant 0 : i32
    %c0_i32_0 = arith.constant 0 : i32
    %c0_i32_1 = arith.constant 0 : i32
    return %c0_i32, %c0_i32_0 : i32, i32
  }
  func.func @transform_10(%arg0: i32) -> (i32, i32) {
    %c0_i32 = arith.constant 0 : i32
    %c0_i32_0 = arith.constant 0 : i32
    %c0_i32_1 = arith.constant 0 : i32
    return %c0_i32, %c0_i32_0 : i32, i32
  }
  func.func @transform_11(%arg0: i32) -> (i32, i32) {
    %c0_i32 = arith.constant 0 : i32
    %c0_i32_0 = arith.constant 0 : i32
    %c0_i32_1 = arith.constant 0 : i32
    return %c0_i32, %c0_i32_0 : i32, i32
  }
  func.func @transform_12(%arg0: i32) -> (i32, i32) {
    %c0_i32 = arith.constant 0 : i32
    %c0_i32_0 = arith.constant 0 : i32
    %c0_i32_1 = arith.constant 0 : i32
    return %c0_i32, %c0_i32_0 : i32, i32
  }
  func.func @transform_13(%arg0: i32) -> (i32, i32) {
    %c0_i32 = arith.constant 0 : i32
    %c0_i32_0 = arith.constant 0 : i32
    %c0_i32_1 = arith.constant 0 : i32
    return %c0_i32, %c0_i32_0 : i32, i32
  }
  func.func @transform_14(%arg0: i32) -> (i32, i32) {
    %c0_i32 = arith.constant 0 : i32
    %c0_i32_0 = arith.constant 0 : i32
    %c0_i32_1 = arith.constant 0 : i32
    return %c0_i32, %c0_i32_0 : i32, i32
  }
  func.func @transform_15(%arg0: i32) -> (i32, i32) {
    %c0_i32 = arith.constant 0 : i32
    %c0_i32_0 = arith.constant 0 : i32
    %c0_i32_1 = arith.constant 0 : i32
    return %c0_i32, %c0_i32_0 : i32, i32
  }
  func.func @transform_16(%arg0: i32) -> (i32, i32) {
    %c0_i32 = arith.constant 0 : i32
    %c0_i32_0 = arith.constant 0 : i32
    %c0_i32_1 = arith.constant 0 : i32
    return %c0_i32, %c0_i32_0 : i32, i32
  }
  func.func @transform_17(%arg0: i32) -> (i32, i32) {
    %c0_i32 = arith.constant 0 : i32
    %c0_i32_0 = arith.constant 0 : i32
    %c0_i32_1 = arith.constant 0 : i32
    return %c0_i32, %c0_i32_0 : i32, i32
  }
  func.func @transform_18(%arg0: i32) -> (i32, i32, i32) {
    %c0_i32 = arith.constant 0 : i32
    %c0_i32_0 = arith.constant 0 : i32
    %c0_i32_1 = arith.constant 0 : i32
    return %arg0, %c0_i32, %c0_i32_0 : i32, i32, i32
  }
  func.func @transform_19(%arg0: i32) -> (i32, i32, i32, i32) {
    %c0_i32 = arith.constant 0 : i32
    %c0_i32_0 = arith.constant 0 : i32
    %c0_i32_1 = arith.constant 0 : i32
    %c0_i32_2 = arith.constant 0 : i32
    return %arg0, %c0_i32, %c0_i32_0, %c0_i32_1 : i32, i32, i32, i32
  }
}

</mosaic_0001>

<llo_original>
// kernel: grad_forward.1
$region0: #{grad_forward.1}
  #allocation0 [shape = 'u32[]', space=smem, size = 0x4, offset = 0x4, fixed_abs, tag = 'smem constant byte address 0x4 - core index']
  #allocation1 [shape = 'u32[144,128]{1,0:T(1,128)}', space=vmem, size = 0x12000, scoped, tag = 'internal scratch']
  %s0 = inlined_call_operand.vmem [shape: f32[2,4,256], index: 0, kind: input, shape index: {}]
  %s1 = inlined_call_operand.vmem [shape: f32[4,64,256], index: 1, kind: input, shape index: {}]
  %s2 = inlined_call_operand.vmem [shape: f32[4,64], index: 2, kind: input, shape index: {}]
  %s3 = inlined_call_operand.vmem [shape: f32[4,4], index: 3, kind: input, shape index: {}]
  %s4 = inlined_call_operand.vmem [shape: f32[4,1], index: 4, kind: input, shape index: {}]
  %s5 = inlined_call_operand.vmem [shape: f32[2,4], index: 5, kind: input, shape index: {}]
  %s6 = inlined_call_operand.vmem [shape: f32[2,1], index: 6, kind: input, shape index: {}]
  %s7 = inlined_call_operand.vmem [shape: f32[4,4], index: 7, kind: input, shape index: {}]
  %s8 = inlined_call_operand.vmem [shape: f32[4,1], index: 8, kind: input, shape index: {}]
  %s9 = inlined_call_operand.vmem [shape: f32[2,4], index: 9, kind: input, shape index: {}]
  %s10 = inlined_call_operand.vmem [shape: f32[2,1], index: 10, kind: input, shape index: {}]
  %s11 = inlined_call_operand.vmem [shape: f32[8,72], index: 11, kind: input, shape index: {}]
  %s12 = inlined_call_operand.vmem [shape: f32[8,1], index: 12, kind: input, shape index: {}]
  %s13 = inlined_call_operand.vmem [shape: f32[8,72], index: 13, kind: input, shape index: {}]
  %s14 = inlined_call_operand.vmem [shape: f32[8,1], index: 14, kind: input, shape index: {}]
  %s15 = inlined_call_operand.vmem [shape: f32[4,8], index: 15, kind: input, shape index: {}]
  %s16 = inlined_call_operand.vmem [shape: f32[256,128], index: 16, kind: input, shape index: {}]
  %s17 = inlined_call_operand.vmem [shape: f32[128,16], index: 17, kind: input, shape index: {}]
  %s18 = inlined_call_operand.vmem [shape: f32[2,4,256], index: 18, kind: output, shape index: {0}]
  %s19 = inlined_call_operand.hbm [shape: f32[2,1,128,128], index: 19, kind: output, shape index: {1}]
  %20 = xla_tuple %s18, %s19
  %s21 = sld [smem:[#allocation0]]
  $region113: #{grad_forward.1} parent=0
    _
  %s23 = ssub.s32 1, %s21
  %s24 = scalar_select 0, %s23, %s21
  $region1: #{grad_forward.1} parent=0
    #allocation2 [shape = 'u8[131072]{0}', space=vmem, size = 0x20000, scoped, tag = 'output window, operand 1']
    #allocation3 [shape = 's32[2]{0}', space=sflag, size = 0x8, scoped, tag = 'scoped memory for grad_forward.1']
    %25 = vsyncpa [#allocation3], 0
    %s26 = scalar_lea.sflag [#allocation3], 1
    %27 = vsyncpa %s26, 0
    loop: start=0, step=1, limit=4
    $region2: #{grad_forward.1} parent=1 // loop_pre_header
      _
    $region3: #{grad_forward.1} parent=1 // loop_header
      %s29 = sphi 0, %s33
      %p30 = scmp.ge.s32.totalorder %s29, 4
      %s39 = sphi 0, %s41
      %s42 = sphi 0, %s39
      %s43 = sphi 0, %s42
      %s59 = sphi 0, %s43
      %s63 = sphi 0, %s63
      %s65 = sphi 0, %s63
      %s66 = sphi 0, %s65
      %s80 = sphi 0, %s66
      %s84 = sphi 0, %s84
      %s86 = sphi 0, %s84
      %s87 = sphi 0, %s86
      %s101 = sphi 0, %s87
      %s105 = sphi 0, %s105
      %s107 = sphi 0, %s105
      %s108 = sphi 0, %s107
      %s122 = sphi 0, %s108
      %s126 = sphi 0, %s126
      %s128 = sphi 0, %s126
      %s129 = sphi 0, %s128
      %s143 = sphi 0, %s129
      %s147 = sphi 0, %s147
      %s149 = sphi 0, %s147
      %s150 = sphi 0, %s149
      %s164 = sphi 0, %s150
      %s168 = sphi 0, %s168
      %s170 = sphi 0, %s168
      %s171 = sphi 0, %s170
      %s185 = sphi 0, %s171
      %s189 = sphi 0, %s189
      %s191 = sphi 0, %s189
      %s192 = sphi 0, %s191
      %s206 = sphi 0, %s192
      %s210 = sphi 0, %s210
      %s212 = sphi 0, %s210
      %s213 = sphi 0, %s212
      %s227 = sphi 0, %s213
      %s231 = sphi 0, %s231
      %s233 = sphi 0, %s231
      %s234 = sphi 0, %s233
      %s248 = sphi 0, %s234
      %s252 = sphi 0, %s252
      %s254 = sphi 0, %s252
      %s255 = sphi 0, %s254
      %s269 = sphi 0, %s255
      %s273 = sphi 0, %s273
      %s275 = sphi 0, %s273
      %s276 = sphi 0, %s275
      %s290 = sphi 0, %s276
      %s294 = sphi 0, %s294
      %s296 = sphi 0, %s294
      %s297 = sphi 0, %s296
      %s311 = sphi 0, %s297
      %s315 = sphi 0, %s315
      %s317 = sphi 0, %s315
      %s318 = sphi 0, %s317
      %s332 = sphi 0, %s318
      %s336 = sphi 0, %s336
      %s338 = sphi 0, %s336
      %s339 = sphi 0, %s338
      %s353 = sphi 0, %s339
      %s357 = sphi 0, %s357
      %s359 = sphi 0, %s357
      %s360 = sphi 0, %s359
      %s374 = sphi 0, %s360
      %s378 = sphi 0, %s378
      %s380 = sphi 0, %s378
      %s381 = sphi 0, %s380
      %s395 = sphi 0, %s381
      %s399 = sphi 0, %s399
      %s401 = sphi 0, %s399
      %s402 = sphi 0, %s401
      %s416 = sphi 0, %s402
      %s422 = sphi 0, %s424
      %s425 = sphi 0, %s422
      %s426 = sphi 0, %s425
      %s442 = sphi 0, %s426
      %s448 = sphi 0, %s450
      %s451 = sphi 0, %s448
      %s452 = sphi 0, %s451
      %s468 = sphi 0, %s452
    $region4: #{grad_forward.1} parent=1 // loop_header_branch
      %32 = sbr.rel (%p30) target = $region8
    $region5: #{grad_forward.1} parent=1 // loop_body
      %s34 = ssub.s32 %s29, 1
      %s35 = ssub.s32 %s29, 2
      %s36 = sadd.s32 %s29, 1
      %s37 = ssub.s32 %s29, %s36
      %p38 = scmp.eq.s32.totalorder %s37, 0
      %s40 = sadd.s32 %s39, 1
      %s41 = scalar_select %p38, %s39, %s40
      %p44 = pneg %p38
      %p45 = scmp.eq.s32.totalorder %s29, 1
      %p46 = por %p44, %p45
      %p47 = scmp.ne.s32.totalorder %s39, %s42
      %p48 = scmp.eq.s32.totalorder %s29, 0
      %p49 = por %p47, %p48
      %p50 = scmp.ne.s32.totalorder %s39, %s42
      %p51 = scmp.eq.s32.totalorder %s34, 1
      %p52 = por %p50, %p51
      %p53 = scmp.ne.s32.totalorder %s42, %s43
      %p54 = scmp.eq.s32.totalorder %s34, 0
      %p55 = por %p53, %p54
      %p56 = scmp.ne.s32.totalorder %s42, %s43
      %p57 = scmp.eq.s32.totalorder %s35, 1
      %p58 = por %p56, %p57
      %p60 = scmp.ne.s32.totalorder %s43, %s59
      %p61 = scmp.eq.s32.totalorder %s35, 0
      %p62 = por %p60, %p61
      %s64 = sadd.s32 %s63, 1
      %p67 = scmp.eq.s32.totalorder %s29, 1
      %p68 = scmp.ne.s32.totalorder %s63, %s65
      %p69 = scmp.eq.s32.totalorder %s29, 0
      %p70 = por %p68, %p69
      %p71 = scmp.ne.s32.totalorder %s63, %s65
      %p72 = scmp.eq.s32.totalorder %s34, 1
      %p73 = por %p71, %p72
      %p74 = scmp.ne.s32.totalorder %s65, %s66
      %p75 = scmp.eq.s32.totalorder %s34, 0
      %p76 = por %p74, %p75
      %p77 = scmp.ne.s32.totalorder %s65, %s66
      %p78 = scmp.eq.s32.totalorder %s35, 1
      %p79 = por %p77, %p78
      %p81 = scmp.ne.s32.totalorder %s66, %s80
      %p82 = scmp.eq.s32.totalorder %s35, 0
      %p83 = por %p81, %p82
      %s85 = sadd.s32 %s84, 1
      %p88 = scmp.eq.s32.totalorder %s29, 1
      %p89 = scmp.ne.s32.totalorder %s84, %s86
      %p90 = scmp.eq.s32.totalorder %s29, 0
      %p91 = por %p89, %p90
      %p92 = scmp.ne.s32.totalorder %s84, %s86
      %p93 = scmp.eq.s32.totalorder %s34, 1
      %p94 = por %p92, %p93
      %p95 = scmp.ne.s32.totalorder %s86, %s87
      %p96 = scmp.eq.s32.totalorder %s34, 0
      %p97 = por %p95, %p96
      %p98 = scmp.ne.s32.totalorder %s86, %s87
      %p99 = scmp.eq.s32.totalorder %s35, 1
      %p100 = por %p98, %p99
      %p102 = scmp.ne.s32.totalorder %s87, %s101
      %p103 = scmp.eq.s32.totalorder %s35, 0
      %p104 = por %p102, %p103
      %s106 = sadd.s32 %s105, 1
      %p109 = scmp.eq.s32.totalorder %s29, 1
      %p110 = scmp.ne.s32.totalorder %s105, %s107
      %p111 = scmp.eq.s32.totalorder %s29, 0
      %p112 = por %p110, %p111
      %p113 = scmp.ne.s32.totalorder %s105, %s107
      %p114 = scmp.eq.s32.totalorder %s34, 1
      %p115 = por %p113, %p114
      %p116 = scmp.ne.s32.totalorder %s107, %s108
      %p117 = scmp.eq.s32.totalorder %s34, 0
      %p118 = por %p116, %p117
      %p119 = scmp.ne.s32.totalorder %s107, %s108
      %p120 = scmp.eq.s32.totalorder %s35, 1
      %p121 = por %p119, %p120
      %p123 = scmp.ne.s32.totalorder %s108, %s122
      %p124 = scmp.eq.s32.totalorder %s35, 0
      %p125 = por %p123, %p124
      %s127 = sadd.s32 %s126, 1
      %p130 = scmp.eq.s32.totalorder %s29, 1
      %p131 = scmp.ne.s32.totalorder %s126, %s128
      %p132 = scmp.eq.s32.totalorder %s29, 0
      %p133 = por %p131, %p132
      %p134 = scmp.ne.s32.totalorder %s126, %s128
      %p135 = scmp.eq.s32.totalorder %s34, 1
      %p136 = por %p134, %p135
      %p137 = scmp.ne.s32.totalorder %s128, %s129
      %p138 = scmp.eq.s32.totalorder %s34, 0
      %p139 = por %p137, %p138
      %p140 = scmp.ne.s32.totalorder %s128, %s129
      %p141 = scmp.eq.s32.totalorder %s35, 1
      %p142 = por %p140, %p141
      %p144 = scmp.ne.s32.totalorder %s129, %s143
      %p145 = scmp.eq.s32.totalorder %s35, 0
      %p146 = por %p144, %p145
      %s148 = sadd.s32 %s147, 1
      %p151 = scmp.eq.s32.totalorder %s29, 1
      %p152 = scmp.ne.s32.totalorder %s147, %s149
      %p153 = scmp.eq.s32.totalorder %s29, 0
      %p154 = por %p152, %p153
      %p155 = scmp.ne.s32.totalorder %s147, %s149
      %p156 = scmp.eq.s32.totalorder %s34, 1
      %p157 = por %p155, %p156
      %p158 = scmp.ne.s32.totalorder %s149, %s150
      %p159 = scmp.eq.s32.totalorder %s34, 0
      %p160 = por %p158, %p159
      %p161 = scmp.ne.s32.totalorder %s149, %s150
      %p162 = scmp.eq.s32.totalorder %s35, 1
      %p163 = por %p161, %p162
      %p165 = scmp.ne.s32.totalorder %s150, %s164
      %p166 = scmp.eq.s32.totalorder %s35, 0
      %p167 = por %p165, %p166
      %s169 = sadd.s32 %s168, 1
      %p172 = scmp.eq.s32.totalorder %s29, 1
      %p173 = scmp.ne.s32.totalorder %s168, %s170
      %p174 = scmp.eq.s32.totalorder %s29, 0
      %p175 = por %p173, %p174
      %p176 = scmp.ne.s32.totalorder %s168, %s170
      %p177 = scmp.eq.s32.totalorder %s34, 1
      %p178 = por %p176, %p177
      %p179 = scmp.ne.s32.totalorder %s170, %s171
      %p180 = scmp.eq.s32.totalorder %s34, 0
      %p181 = por %p179, %p180
      %p182 = scmp.ne.s32.totalorder %s170, %s171
      %p183 = scmp.eq.s32.totalorder %s35, 1
      %p184 = por %p182, %p183
      %p186 = scmp.ne.s32.totalorder %s171, %s185
      %p187 = scmp.eq.s32.totalorder %s35, 0
      %p188 = por %p186, %p187
      %s190 = sadd.s32 %s189, 1
      %p193 = scmp.eq.s32.totalorder %s29, 1
      %p194 = scmp.ne.s32.totalorder %s189, %s191
      %p195 = scmp.eq.s32.totalorder %s29, 0
      %p196 = por %p194, %p195
      %p197 = scmp.ne.s32.totalorder %s189, %s191
      %p198 = scmp.eq.s32.totalorder %s34, 1
      %p199 = por %p197, %p198
      %p200 = scmp.ne.s32.totalorder %s191, %s192
      %p201 = scmp.eq.s32.totalorder %s34, 0
      %p202 = por %p200, %p201
      %p203 = scmp.ne.s32.totalorder %s191, %s192
      %p204 = scmp.eq.s32.totalorder %s35, 1
      %p205 = por %p203, %p204
      %p207 = scmp.ne.s32.totalorder %s192, %s206
      %p208 = scmp.eq.s32.totalorder %s35, 0
      %p209 = por %p207, %p208
      %s211 = sadd.s32 %s210, 1
      %p214 = scmp.eq.s32.totalorder %s29, 1
      %p215 = scmp.ne.s32.totalorder %s210, %s212
      %p216 = scmp.eq.s32.totalorder %s29, 0
      %p217 = por %p215, %p216
      %p218 = scmp.ne.s32.totalorder %s210, %s212
      %p219 = scmp.eq.s32.totalorder %s34, 1
      %p220 = por %p218, %p219
      %p221 = scmp.ne.s32.totalorder %s212, %s213
      %p222 = scmp.eq.s32.totalorder %s34, 0
      %p223 = por %p221, %p222
      %p224 = scmp.ne.s32.totalorder %s212, %s213
      %p225 = scmp.eq.s32.totalorder %s35, 1
      %p226 = por %p224, %p225
      %p228 = scmp.ne.s32.totalorder %s213, %s227
      %p229 = scmp.eq.s32.totalorder %s35, 0
      %p230 = por %p228, %p229
      %s232 = sadd.s32 %s231, 1
      %p235 = scmp.eq.s32.totalorder %s29, 1
      %p236 = scmp.ne.s32.totalorder %s231, %s233
      %p237 = scmp.eq.s32.totalorder %s29, 0
      %p238 = por %p236, %p237
      %p239 = scmp.ne.s32.totalorder %s231, %s233
      %p240 = scmp.eq.s32.totalorder %s34, 1
      %p241 = por %p239, %p240
      %p242 = scmp.ne.s32.totalorder %s233, %s234
      %p243 = scmp.eq.s32.totalorder %s34, 0
      %p244 = por %p242, %p243
      %p245 = scmp.ne.s32.totalorder %s233, %s234
      %p246 = scmp.eq.s32.totalorder %s35, 1
      %p247 = por %p245, %p246
      %p249 = scmp.ne.s32.totalorder %s234, %s248
      %p250 = scmp.eq.s32.totalorder %s35, 0
      %p251 = por %p249, %p250
      %s253 = sadd.s32 %s252, 1
      %p256 = scmp.eq.s32.totalorder %s29, 1
      %p257 = scmp.ne.s32.totalorder %s252, %s254
      %p258 = scmp.eq.s32.totalorder %s29, 0
      %p259 = por %p257, %p258
      %p260 = scmp.ne.s32.totalorder %s252, %s254
      %p261 = scmp.eq.s32.totalorder %s34, 1
      %p262 = por %p260, %p261
      %p263 = scmp.ne.s32.totalorder %s254, %s255
      %p264 = scmp.eq.s32.totalorder %s34, 0
      %p265 = por %p263, %p264
      %p266 = scmp.ne.s32.totalorder %s254, %s255
      %p267 = scmp.eq.s32.totalorder %s35, 1
      %p268 = por %p266, %p267
      %p270 = scmp.ne.s32.totalorder %s255, %s269
      %p271 = scmp.eq.s32.totalorder %s35, 0
      %p272 = por %p270, %p271
      %s274 = sadd.s32 %s273, 1
      %p277 = scmp.eq.s32.totalorder %s29, 1
      %p278 = scmp.ne.s32.totalorder %s273, %s275
      %p279 = scmp.eq.s32.totalorder %s29, 0
      %p280 = por %p278, %p279
      %p281 = scmp.ne.s32.totalorder %s273, %s275
      %p282 = scmp.eq.s32.totalorder %s34, 1
      %p283 = por %p281, %p282
      %p284 = scmp.ne.s32.totalorder %s275, %s276
      %p285 = scmp.eq.s32.totalorder %s34, 0
      %p286 = por %p284, %p285
      %p287 = scmp.ne.s32.totalorder %s275, %s276
      %p288 = scmp.eq.s32.totalorder %s35, 1
      %p289 = por %p287, %p288
      %p291 = scmp.ne.s32.totalorder %s276, %s290
      %p292 = scmp.eq.s32.totalorder %s35, 0
      %p293 = por %p291, %p292
      %s295 = sadd.s32 %s294, 1
      %p298 = scmp.eq.s32.totalorder %s29, 1
      %p299 = scmp.ne.s32.totalorder %s294, %s296
      %p300 = scmp.eq.s32.totalorder %s29, 0
      %p301 = por %p299, %p300
      %p302 = scmp.ne.s32.totalorder %s294, %s296
      %p303 = scmp.eq.s32.totalorder %s34, 1
      %p304 = por %p302, %p303
      %p305 = scmp.ne.s32.totalorder %s296, %s297
      %p306 = scmp.eq.s32.totalorder %s34, 0
      %p307 = por %p305, %p306
      %p308 = scmp.ne.s32.totalorder %s296, %s297
      %p309 = scmp.eq.s32.totalorder %s35, 1
      %p310 = por %p308, %p309
      %p312 = scmp.ne.s32.totalorder %s297, %s311
      %p313 = scmp.eq.s32.totalorder %s35, 0
      %p314 = por %p312, %p313
      %s316 = sadd.s32 %s315, 1
      %p319 = scmp.eq.s32.totalorder %s29, 1
      %p320 = scmp.ne.s32.totalorder %s315, %s317
      %p321 = scmp.eq.s32.totalorder %s29, 0
      %p322 = por %p320, %p321
      %p323 = scmp.ne.s32.totalorder %s315, %s317
      %p324 = scmp.eq.s32.totalorder %s34, 1
      %p325 = por %p323, %p324
      %p326 = scmp.ne.s32.totalorder %s317, %s318
      %p327 = scmp.eq.s32.totalorder %s34, 0
      %p328 = por %p326, %p327
      %p329 = scmp.ne.s32.totalorder %s317, %s318
      %p330 = scmp.eq.s32.totalorder %s35, 1
      %p331 = por %p329, %p330
      %p333 = scmp.ne.s32.totalorder %s318, %s332
      %p334 = scmp.eq.s32.totalorder %s35, 0
      %p335 = por %p333, %p334
      %s337 = sadd.s32 %s336, 1
      %p340 = scmp.eq.s32.totalorder %s29, 1
      %p341 = scmp.ne.s32.totalorder %s336, %s338
      %p342 = scmp.eq.s32.totalorder %s29, 0
      %p343 = por %p341, %p342
      %p344 = scmp.ne.s32.totalorder %s336, %s338
      %p345 = scmp.eq.s32.totalorder %s34, 1
      %p346 = por %p344, %p345
      %p347 = scmp.ne.s32.totalorder %s338, %s339
      %p348 = scmp.eq.s32.totalorder %s34, 0
      %p349 = por %p347, %p348
      %p350 = scmp.ne.s32.totalorder %s338, %s339
      %p351 = scmp.eq.s32.totalorder %s35, 1
      %p352 = por %p350, %p351
      %p354 = scmp.ne.s32.totalorder %s339, %s353
      %p355 = scmp.eq.s32.totalorder %s35, 0
      %p356 = por %p354, %p355
      %s358 = sadd.s32 %s357, 1
      %p361 = scmp.eq.s32.totalorder %s29, 1
      %p362 = scmp.ne.s32.totalorder %s357, %s359
      %p363 = scmp.eq.s32.totalorder %s29, 0
      %p364 = por %p362, %p363
      %p365 = scmp.ne.s32.totalorder %s357, %s359
      %p366 = scmp.eq.s32.totalorder %s34, 1
      %p367 = por %p365, %p366
      %p368 = scmp.ne.s32.totalorder %s359, %s360
      %p369 = scmp.eq.s32.totalorder %s34, 0
      %p370 = por %p368, %p369
      %p371 = scmp.ne.s32.totalorder %s359, %s360
      %p372 = scmp.eq.s32.totalorder %s35, 1
      %p373 = por %p371, %p372
      %p375 = scmp.ne.s32.totalorder %s360, %s374
      %p376 = scmp.eq.s32.totalorder %s35, 0
      %p377 = por %p375, %p376
      %s379 = sadd.s32 %s378, 1
      %p382 = scmp.eq.s32.totalorder %s29, 1
      %p383 = scmp.ne.s32.totalorder %s378, %s380
      %p384 = scmp.eq.s32.totalorder %s29, 0
      %p385 = por %p383, %p384
      %p386 = scmp.ne.s32.totalorder %s378, %s380
      %p387 = scmp.eq.s32.totalorder %s34, 1
      %p388 = por %p386, %p387
      %p389 = scmp.ne.s32.totalorder %s380, %s381
      %p390 = scmp.eq.s32.totalorder %s34, 0
      %p391 = por %p389, %p390
      %p392 = scmp.ne.s32.totalorder %s380, %s381
      %p393 = scmp.eq.s32.totalorder %s35, 1
      %p394 = por %p392, %p393
      %p396 = scmp.ne.s32.totalorder %s381, %s395
      %p397 = scmp.eq.s32.totalorder %s35, 0
      %p398 = por %p396, %p397
      %s400 = sadd.s32 %s399, 1
      %p403 = scmp.eq.s32.totalorder %s29, 1
      %p404 = scmp.ne.s32.totalorder %s399, %s401
      %p405 = scmp.eq.s32.totalorder %s29, 0
      %p406 = por %p404, %p405
      %p407 = scmp.ne.s32.totalorder %s399, %s401
      %p408 = scmp.eq.s32.totalorder %s34, 1
      %p409 = por %p407, %p408
      %p410 = scmp.ne.s32.totalorder %s401, %s402
      %p411 = scmp.eq.s32.totalorder %s34, 0
      %p412 = por %p410, %p411
      %p413 = scmp.ne.s32.totalorder %s401, %s402
      %p414 = scmp.eq.s32.totalorder %s35, 1
      %p415 = por %p413, %p414
      %p417 = scmp.ne.s32.totalorder %s402, %s416
      %p418 = scmp.eq.s32.totalorder %s35, 0
      %p419 = por %p417, %p418
      %s420 = ssub.s32 %s29, %s36
      %p421 = scmp.eq.s32.totalorder %s420, 0
      %s423 = sadd.s32 %s422, 1
      %s424 = scalar_select %p421, %s422, %s423
      %p427 = pneg %p421
      %p428 = scmp.eq.s32.totalorder %s29, 1
      %p429 = por %p427, %p428
      %p430 = scmp.ne.s32.totalorder %s422, %s425
      %p431 = scmp.eq.s32.totalorder %s29, 0
      %p432 = por %p430, %p431
      %p433 = scmp.ne.s32.totalorder %s422, %s425
      %p434 = scmp.eq.s32.totalorder %s34, 1
      %p435 = por %p433, %p434
      %p436 = scmp.ne.s32.totalorder %s425, %s426
      %p437 = scmp.eq.s32.totalorder %s34, 0
      %p438 = por %p436, %p437
      %p439 = scmp.ne.s32.totalorder %s425, %s426
      %p440 = scmp.eq.s32.totalorder %s35, 1
      %p441 = por %p439, %p440
      %p443 = scmp.ne.s32.totalorder %s426, %s442
      %p444 = scmp.eq.s32.totalorder %s35, 0
      %p445 = por %p443, %p444
      %s446 = ssub.s32 %s29, %s36
      %p447 = scmp.eq.s32.totalorder %s446, 0
      %s449 = sadd.s32 %s448, 1
      %s450 = scalar_select %p447, %s448, %s449
      %p453 = pneg %p447
      %p454 = scmp.eq.s32.totalorder %s29, 1
      %p455 = por %p453, %p454
      %p456 = scmp.ne.s32.totalorder %s448, %s451
      %p457 = scmp.eq.s32.totalorder %s29, 0
      %p458 = por %p456, %p457
      %p459 = scmp.ne.s32.totalorder %s448, %s451
      %p460 = scmp.eq.s32.totalorder %s34, 1
      %p461 = por %p459, %p460
      %p462 = scmp.ne.s32.totalorder %s451, %s452
      %p463 = scmp.eq.s32.totalorder %s34, 0
      %p464 = por %p462, %p463
      %p465 = scmp.ne.s32.totalorder %s451, %s452
      %p466 = scmp.eq.s32.totalorder %s35, 1
      %p467 = por %p465, %p466
      %p469 = scmp.ne.s32.totalorder %s452, %s468
      %p470 = scmp.eq.s32.totalorder %s35, 0
      %p471 = por %p469, %p470
      %p472 = scmp.le.s32.totalorder 1, %s29
      %p473 = scmp.lt.s32.totalorder %s29, 3
      %p474 = pnand %p472, %p473
      %p475 = pneg %p474
      // Predicated region
      $region9: #{grad_forward.1} parent=5 // pred_check
        _
      $region10: #{grad_forward.1} parent=5 // pred_check_branch
        %477 = sbr.rel (%p474) target = $region12
      $region11: #{grad_forward.1} parent=5 // pred_region
        %s478 = ssub.s32 %s29, 1
        // Predicated region
        $region13: #{grad_forward.1} parent=11 // pred_check
          %p479 = pneg %p76
        $region14: #{grad_forward.1} parent=11 // pred_check_branch
          %481 = sbr.rel (%p479) target = $region16
        $region15: #{grad_forward.1} parent=11 // pred_region
          _
        $region16: #{grad_forward.1} parent=11 // pred_fallthru
          _
        // Predicated region
        $region17: #{grad_forward.1} parent=11 // pred_check
          %p482 = pneg %p97
        $region18: #{grad_forward.1} parent=11 // pred_check_branch
          %484 = sbr.rel (%p482) target = $region20
        $region19: #{grad_forward.1} parent=11 // pred_region
          _
        $region20: #{grad_forward.1} parent=11 // pred_fallthru
          _
        // Predicated region
        $region21: #{grad_forward.1} parent=11 // pred_check
          %p485 = pneg %p118
        $region22: #{grad_forward.1} parent=11 // pred_check_branch
          %487 = sbr.rel (%p485) target = $region24
        $region23: #{grad_forward.1} parent=11 // pred_region
          _
        $region24: #{grad_forward.1} parent=11 // pred_fallthru
          _
        // Predicated region
        $region25: #{grad_forward.1} parent=11 // pred_check
          %p488 = pneg %p139
        $region26: #{grad_forward.1} parent=11 // pred_check_branch
          %490 = sbr.rel (%p488) target = $region28
        $region27: #{grad_forward.1} parent=11 // pred_region
          _
        $region28: #{grad_forward.1} parent=11 // pred_fallthru
          _
        // Predicated region
        $region29: #{grad_forward.1} parent=11 // pred_check
          %p491 = pneg %p160
        $region30: #{grad_forward.1} parent=11 // pred_check_branch
          %493 = sbr.rel (%p491) target = $region32
        $region31: #{grad_forward.1} parent=11 // pred_region
          _
        $region32: #{grad_forward.1} parent=11 // pred_fallthru
          _
        // Predicated region
        $region33: #{grad_forward.1} parent=11 // pred_check
          %p494 = pneg %p181
        $region34: #{grad_forward.1} parent=11 // pred_check_branch
          %496 = sbr.rel (%p494) target = $region36
        $region35: #{grad_forward.1} parent=11 // pred_region
          _
        $region36: #{grad_forward.1} parent=11 // pred_fallthru
          _
        // Predicated region
        $region37: #{grad_forward.1} parent=11 // pred_check
          %p497 = pneg %p202
        $region38: #{grad_forward.1} parent=11 // pred_check_branch
          %499 = sbr.rel (%p497) target = $region40
        $region39: #{grad_forward.1} parent=11 // pred_region
          _
        $region40: #{grad_forward.1} parent=11 // pred_fallthru
          _
        // Predicated region
        $region41: #{grad_forward.1} parent=11 // pred_check
          %p500 = pneg %p223
        $region42: #{grad_forward.1} parent=11 // pred_check_branch
          %502 = sbr.rel (%p500) target = $region44
        $region43: #{grad_forward.1} parent=11 // pred_region
          _
        $region44: #{grad_forward.1} parent=11 // pred_fallthru
          _
        // Predicated region
        $region45: #{grad_forward.1} parent=11 // pred_check
          %p503 = pneg %p244
        $region46: #{grad_forward.1} parent=11 // pred_check_branch
          %505 = sbr.rel (%p503) target = $region48
        $region47: #{grad_forward.1} parent=11 // pred_region
          _
        $region48: #{grad_forward.1} parent=11 // pred_fallthru
          _
        // Predicated region
        $region49: #{grad_forward.1} parent=11 // pred_check
          %p506 = pneg %p265
        $region50: #{grad_forward.1} parent=11 // pred_check_branch
          %508 = sbr.rel (%p506) target = $region52
        $region51: #{grad_forward.1} parent=11 // pred_region
          _
        $region52: #{grad_forward.1} parent=11 // pred_fallthru
          _
        // Predicated region
        $region53: #{grad_forward.1} parent=11 // pred_check
          %p509 = pneg %p286
        $region54: #{grad_forward.1} parent=11 // pred_check_branch
          %511 = sbr.rel (%p509) target = $region56
        $region55: #{grad_forward.1} parent=11 // pred_region
          _
        $region56: #{grad_forward.1} parent=11 // pred_fallthru
          _
        // Predicated region
        $region57: #{grad_forward.1} parent=11 // pred_check
          %p512 = pneg %p307
        $region58: #{grad_forward.1} parent=11 // pred_check_branch
          %514 = sbr.rel (%p512) target = $region60
        $region59: #{grad_forward.1} parent=11 // pred_region
          _
        $region60: #{grad_forward.1} parent=11 // pred_fallthru
          _
        // Predicated region
        $region61: #{grad_forward.1} parent=11 // pred_check
          %p515 = pneg %p328
        $region62: #{grad_forward.1} parent=11 // pred_check_branch
          %517 = sbr.rel (%p515) target = $region64
        $region63: #{grad_forward.1} parent=11 // pred_region
          _
        $region64: #{grad_forward.1} parent=11 // pred_fallthru
          _
        // Predicated region
        $region65: #{grad_forward.1} parent=11 // pred_check
          %p518 = pneg %p349
        $region66: #{grad_forward.1} parent=11 // pred_check_branch
          %520 = sbr.rel (%p518) target = $region68
        $region67: #{grad_forward.1} parent=11 // pred_region
          _
        $region68: #{grad_forward.1} parent=11 // pred_fallthru
          _
        // Predicated region
        $region69: #{grad_forward.1} parent=11 // pred_check
          %p521 = pneg %p370
        $region70: #{grad_forward.1} parent=11 // pred_check_branch
          %523 = sbr.rel (%p521) target = $region72
        $region71: #{grad_forward.1} parent=11 // pred_region
          _
        $region72: #{grad_forward.1} parent=11 // pred_fallthru
          _
        // Predicated region
        $region73: #{grad_forward.1} parent=11 // pred_check
          %p524 = pneg %p391
        $region74: #{grad_forward.1} parent=11 // pred_check_branch
          %526 = sbr.rel (%p524) target = $region76
        $region75: #{grad_forward.1} parent=11 // pred_region
          _
        $region76: #{grad_forward.1} parent=11 // pred_fallthru
          _
        // Predicated region
        $region77: #{grad_forward.1} parent=11 // pred_check
          %p527 = pneg %p412
        $region78: #{grad_forward.1} parent=11 // pred_check_branch
          %529 = sbr.rel (%p527) target = $region80
        $region79: #{grad_forward.1} parent=11 // pred_region
          _
        $region80: #{grad_forward.1} parent=11 // pred_fallthru
          _
      $region12: #{grad_forward.1} parent=5 // pred_fallthru
        _
      %p530 = scmp.lt.s32.totalorder %s29, 2
      // Predicated region
      $region81: #{grad_forward.1} parent=5 // pred_check
        %p531 = pneg %p530
      $region82: #{grad_forward.1} parent=5 // pred_check_branch
        %533 = sbr.rel (%p531) target = $region84
      $region83: #{grad_forward.1} parent=5 // pred_region
        // Predicated region
        $region85: #{grad_forward.1} parent=83 // pred_check
          %p534 = pneg %p49
        $region86: #{grad_forward.1} parent=83 // pred_check_branch
          %536 = sbr.rel (%p534) target = $region88
        $region87: #{grad_forward.1} parent=83 // pred_region
          %p537 = scmp.lt.s32.totalorder %s29, 1
          %s538 = scalar_select %p537, %s29, 1
          %s539 = smul.addr %s538, 2
          %s540 = smul.addr %s539, 4
          %s541 = scalar_lea.vmem %s0, %s540
        $region88: #{grad_forward.1} parent=83 // pred_fallthru
          _
      $region84: #{grad_forward.1} parent=5 // pred_fallthru
        _
      %p542 = scmp.le.s32.totalorder 1, %s29
      %p543 = scmp.lt.s32.totalorder %s29, 3
      %p544 = pnand %p542, %p543
      %p545 = pneg %p544
      // Predicated region
      $region89: #{grad_forward.1} parent=5 // pred_check
        _
      $region90: #{grad_forward.1} parent=5 // pred_check_branch
        %547 = sbr.rel (%p544) target = $region92
      $region91: #{grad_forward.1} parent=5 // pred_region
        %s548 = ssub.s32 %s29, 1
        %p549 = scmp.lt.s32.totalorder %s34, 1
        %s550 = scalar_select %p549, %s34, 1
        %s551 = smul.addr %s550, 2
        %s552 = smul.addr %s551, 4
        %s553 = scalar_lea.vmem %s0, %s552
        %p554 = pneg %p55
        %p555 = pneg %p52
        %p556 = pneg %p76
        %p557 = pneg %p73
        %p558 = pneg %p97
        %p559 = pneg %p94
        %p560 = pneg %p118
        %p561 = pneg %p115
        %p562 = pneg %p139
        %p563 = pneg %p136
        %p564 = pneg %p160
        %p565 = pneg %p157
        %p566 = pneg %p181
        %p567 = pneg %p178
        %p568 = pneg %p202
        %p569 = pneg %p199
        %p570 = pneg %p223
        %p571 = pneg %p220
        %p572 = pneg %p244
        %p573 = pneg %p241
        %p574 = pneg %p265
        %p575 = pneg %p262
        %p576 = pneg %p286
        %p577 = pneg %p283
        %p578 = pneg %p307
        %p579 = pneg %p304
        %p580 = pneg %p328
        %p581 = pneg %p325
        %p582 = pneg %p349
        %p583 = pneg %p346
        %p584 = pneg %p370
        %p585 = pneg %p367
        %p586 = pneg %p391
        %p587 = pneg %p388
        %p588 = pneg %p412
        %p589 = pneg %p409
        %p590 = pneg %p438
        %p591 = pneg %p435
        %p592 = scmp.lt.s32.totalorder %s34, 1
        %s593 = scalar_select %p592, %s34, 1
        %s594 = smul.addr %s593, 2
        %s595 = smul.addr %s594, 4
        %s596 = scalar_lea.vmem %s18, %s595
        %p597 = pneg %p464
        %p598 = pneg %p461
        %s599 = sand.u32 %s451, 1
        %s600 = scalar_lea.sflag [#allocation3], %s599
        %s601 = sand.u32 %s451, 1
        %s602 = smul.addr %s601, 128
        %s603 = scalar_lea.vmem [#allocation2], %s602
        %p604 = scmp.lt.s32.totalorder %s34, 1
        %s605 = scalar_select %p604, %s34, 1
        %s606 = smul.addr %s605, 2
        %s607 = smul.addr %s606, 4
        %s608 = scalar_lea.vmem %s0, %s607
        %p609 = scmp.lt.s32.totalorder %s34, 1
        %s610 = scalar_select %p609, %s34, 1
        %s611 = smul.addr %s610, 2
        %s612 = smul.addr %s611, 4
        %s613 = scalar_lea.vmem %s18, %s612
        %v614 = vld [vmem:[%s608] sm:$0xff]
        %v615 = vlaneseq
        %v616 = vand.u32 %v615, 127
        %v617 = vadd.s32 %v616, 128
        %v618 = vcvt.s32.f32 %v616
        %v619 = vcvt.s32.f32 %v617
        %v620 = vadd.f32 %v618, 0.5
        %v621 = vadd.f32 %v619, 0.5
        %v622 = vmul.f32 %v620, 0.0625
        %v623 = vmul.f32 %v621, 0.0625
        %v624 = vfloor.f32 %v622
        %v625 = vfloor.f32 %v623
        %v626 = vmul.f32 %v624, 16.0
        %v627 = vmul.f32 %v625, 16.0
        %v628 = vsub.f32 %v618, %v626
        %v629 = vsub.f32 %v619, %v627
        %v631 = vcombine.high %v614, %v614
        %vm633 = vcmask 1043456
        %v634 = vsel %vm633, %v614, 0.0
        %v635 = vsel %vm633, %v631, 0.0
        %v636 = vadd.f32 %v634, %v635
        %637 = vadd.xlane.f32.xlu0 %v636
        %v638 = vpop.xlane.xlu0 %637
        %v639 = vrcp.pop 256.0
        %v640 = vmul.f32 %v638, %v639
        %v641 = vld [vmem:[%s3] sm:$0xf]
        %v642 = vld [vmem:[%s4] sm:$0xf]
        %vm643 = vcmask 31744
        %v645 = vsel %vm643, %v641, 0
        %v648 = vsel %vm633, %v640, 0
        %650 = vmatprep.subr.mxu0 0.0
        %651 = vmatpush1.msra.mxu0 0.0
        %652 = vmatprep.subr.mxu0 0.0
        %653 = vmatpush1.msra.mxu0 0.0
        %654 = vmatprep.subr.mxu0 0.0
        %655 = vmatpush1.msra.mxu0 0.0
        %656 = vmatprep.subr.mxu0 0.0
        %657 = vmatpush1.msra.mxu0 0.0
        %658 = vmatprep.subr.mxu0 0.0
        %659 = vmatpush1.msra.mxu0 0.0
        %660 = vmatprep.subr.mxu0 0.0
        %661 = vmatpush1.msra.mxu0 0.0
        %662 = vmatprep.subr.mxu0 0.0
        %663 = vmatpush1.msra.mxu0 0.0
        %664 = vmatprep.subr.mxu0 0.0
        %665 = vmatpush1.msra.mxu0 0.0
        %666 = vmatprep.subr.mxu0 0.0
        %667 = vmatpush1.msra.mxu0 0.0
        %668 = vmatprep.subr.mxu0 0.0
        %669 = vmatpush1.msra.mxu0 0.0
        %670 = vmatprep.subr.mxu0 0.0
        %671 = vmatpush1.msra.mxu0 0.0
        %672 = vmatprep.subr.mxu0 0.0
        %673 = vmatpush1.msra.mxu0 0.0
        %674 = vmatprep.subr.mxu0 0.0
        %675 = vmatpush1.msra.mxu0 0.0
        %676 = vmatprep.subr.mxu0 0.0
        %677 = vmatpush1.msra.mxu0 0.0
        %678 = vmatprep.subr.mxu0 0.0
        %679 = vmatpush1.msra.mxu0 0.0
        %680 = vmatprep.subr.mxu0 0.0
        %681 = vmatpush1.msra.mxu0 %v648
        %682 = vmatprep.subr.mxu0 0.0
        %683 = vmatpush2.msra.mxu0 0.0
        %684 = vmatprep.subr.mxu0 0.0
        %685 = vmatpush2.msra.mxu0 0.0
        %686 = vmatprep.subr.mxu0 0.0
        %687 = vmatpush2.msra.mxu0 0.0
        %688 = vmatprep.subr.mxu0 0.0
        %689 = vmatpush2.msra.mxu0 0.0
        %690 = vmatprep.subr.mxu0 0.0
        %691 = vmatpush2.msra.mxu0 0.0
        %692 = vmatprep.subr.mxu0 0.0
        %693 = vmatpush2.msra.mxu0 0.0
        %694 = vmatprep.subr.mxu0 0.0
        %695 = vmatpush2.msra.mxu0 0.0
        %696 = vmatprep.subr.mxu0 0.0
        %697 = vmatpush2.msra.mxu0 0.0
        %698 = vmatprep.subr.mxu0 0.0
        %699 = vmatpush2.msra.mxu0 0.0
        %700 = vmatprep.subr.mxu0 0.0
        %701 = vmatpush2.msra.mxu0 0.0
        %702 = vmatprep.subr.mxu0 0.0
        %703 = vmatpush2.msra.mxu0 0.0
        %704 = vmatprep.subr.mxu0 0.0
        %705 = vmatpush2.msra.mxu0 0.0
        %706 = vmatprep.subr.mxu0 0.0
        %707 = vmatpush2.msra.mxu0 0.0
        %708 = vmatprep.subr.mxu0 0.0
        %709 = vmatpush2.msra.mxu0 0.0
        %710 = vmatprep.subr.mxu0 0.0
        %711 = vmatpush2.msra.mxu0 0.0
        %712 = vmatprep.subr.mxu0 0.0
        %713 = vmatpush2.msra.mxu0 0.0
        %714 = vmatprep.mubr.f32.mxu0 0.0
        %715 = vmatmul.mubr.f32.gmra.mxu0 %v645
        %v716 = vpop.f32.mrf.mxu0
        %v717 = vadd.f32 %v642, %v716
        %v718 = vpop.f32.mrf.mxu0
        %719 = vdwg.mxu0
        %v720 = vtanh.pop %v717
        %v721 = vld [vmem:[%s5] sm:$0x3]
        %v722 = vld [vmem:[%s6] sm:$0x3]
        %v724 = vsel %vm643, %v721, 0
        %v727 = vsel %vm633, %v720, 0
        %729 = vmatprep.subr.mxu0 0.0
        %730 = vmatpush1.msra.mxu0 0.0
        %731 = vmatprep.subr.mxu0 0.0
        %732 = vmatpush1.msra.mxu0 0.0
        %733 = vmatprep.subr.mxu0 0.0
        %734 = vmatpush1.msra.mxu0 0.0
        %735 = vmatprep.subr.mxu0 0.0
        %736 = vmatpush1.msra.mxu0 0.0
        %737 = vmatprep.subr.mxu0 0.0
        %738 = vmatpush1.msra.mxu0 0.0
        %739 = vmatprep.subr.mxu0 0.0
        %740 = vmatpush1.msra.mxu0 0.0
        %741 = vmatprep.subr.mxu0 0.0
        %742 = vmatpush1.msra.mxu0 0.0
        %743 = vmatprep.subr.mxu0 0.0
        %744 = vmatpush1.msra.mxu0 0.0
        %745 = vmatprep.subr.mxu0 0.0
        %746 = vmatpush1.msra.mxu0 0.0
        %747 = vmatprep.subr.mxu0 0.0
        %748 = vmatpush1.msra.mxu0 0.0
        %749 = vmatprep.subr.mxu0 0.0
        %750 = vmatpush1.msra.mxu0 0.0
        %751 = vmatprep.subr.mxu0 0.0
        %752 = vmatpush1.msra.mxu0 0.0
        %753 = vmatprep.subr.mxu0 0.0
        %754 = vmatpush1.msra.mxu0 0.0
        %755 = vmatprep.subr.mxu0 0.0
        %756 = vmatpush1.msra.mxu0 0.0
        %757 = vmatprep.subr.mxu0 0.0
        %758 = vmatpush1.msra.mxu0 0.0
        %759 = vmatprep.subr.mxu0 0.0
        %760 = vmatpush1.msra.mxu0 %v727
        %761 = vmatprep.subr.mxu0 0.0
        %762 = vmatpush2.msra.mxu0 0.0
        %763 = vmatprep.subr.mxu0 0.0
        %764 = vmatpush2.msra.mxu0 0.0
        %765 = vmatprep.subr.mxu0 0.0
        %766 = vmatpush2.msra.mxu0 0.0
        %767 = vmatprep.subr.mxu0 0.0
        %768 = vmatpush2.msra.mxu0 0.0
        %769 = vmatprep.subr.mxu0 0.0
        %770 = vmatpush2.msra.mxu0 0.0
        %771 = vmatprep.subr.mxu0 0.0
        %772 = vmatpush2.msra.mxu0 0.0
        %773 = vmatprep.subr.mxu0 0.0
        %774 = vmatpush2.msra.mxu0 0.0
        %775 = vmatprep.subr.mxu0 0.0
        %776 = vmatpush2.msra.mxu0 0.0
        %777 = vmatprep.subr.mxu0 0.0
        %778 = vmatpush2.msra.mxu0 0.0
        %779 = vmatprep.subr.mxu0 0.0
        %780 = vmatpush2.msra.mxu0 0.0
        %781 = vmatprep.subr.mxu0 0.0
        %782 = vmatpush2.msra.mxu0 0.0
        %783 = vmatprep.subr.mxu0 0.0
        %784 = vmatpush2.msra.mxu0 0.0
        %785 = vmatprep.subr.mxu0 0.0
        %786 = vmatpush2.msra.mxu0 0.0
        %787 = vmatprep.subr.mxu0 0.0
        %788 = vmatpush2.msra.mxu0 0.0
        %789 = vmatprep.subr.mxu0 0.0
        %790 = vmatpush2.msra.mxu0 0.0
        %791 = vmatprep.subr.mxu0 0.0
        %792 = vmatpush2.msra.mxu0 0.0
        %793 = vmatprep.mubr.f32.mxu0 0.0
        %794 = vmatmul.mubr.f32.gmra.mxu0 %v724
        %v795 = vpop.f32.mrf.mxu0
        %v796 = vadd.f32 %v722, %v795
        %v797 = vpop.f32.mrf.mxu0
        %798 = vdwg.mxu0
        %v799 = vtanh.pop %v796
        %v800 = vmul.f32 %v620, 0.125
        %v801 = vfloor.f32 %v800
        %v802 = vmul.f32 %v801, 8.0
        %v803 = vsub.f32 %v618, %v802
        %v804 = vmul.f32 %v801, 256.0
        %v805 = vadd.f32 %v804, %v803
        %v806 = vadd.f32 %v799, 1.0
        %v807 = vmul.f32 %v806, 4.0
        %v808 = vsub.f32 %v807, 0.5
        %v809 = vfloor.f32 %v808
        %v810 = vsub.f32 %v808, %v809
        %v811 = vsub.f32 1.0, %v810
        %v813 = vrot.slane %v811, 1
        %v815 = vmul.f32 %v811, %v813
        %v816 = vmul.f32 %v809, 256.0
        %v818 = vrot.slane %v809, 7
        %v820 = vadd.f32 %v816, %v818
        %822 = vset.pattern.permute.xlu0 0
        %823 = vperm.xlu0 %822, %v820
        %v824 = vpop.permute.xlu0 %823
        %vm826 = vcmp.eq.f32.partialorder %v805, %v824
        %828 = vset.pattern.permute.xlu0 0
        %829 = vperm.xlu0 %828, %v815
        %v830 = vpop.permute.xlu0 %829
        %v831 = vrot.slane %v830, 7
        %v833 = vsel %vm826, %v831, 0.0
        %v834 = vadd.f32 %v809, 1.0
        %v835 = vmul.f32 %v810, %v813
        %v837 = vrot.slane %v834, 7
        %v839 = vadd.f32 %v816, %v837
        %841 = vset.pattern.permute.xlu0 0
        %842 = vperm.xlu0 %841, %v839
        %v843 = vpop.permute.xlu0 %842
        %vm845 = vcmp.eq.f32.partialorder %v805, %v843
        %847 = vset.pattern.permute.xlu0 0
        %848 = vperm.xlu0 %847, %v835
        %v849 = vpop.permute.xlu0 %848
        %v850 = vrot.slane %v849, 7
        %v852 = vsel %vm845, %v850, 0.0
        %v853 = vadd.f32 %v833, %v852
        %v855 = vrot.slane %v810, 1
        %v857 = vmul.f32 %v811, %v855
        %v858 = vmul.f32 %v834, 256.0
        %v859 = vadd.f32 %v858, %v818
        %861 = vset.pattern.permute.xlu0 0
        %862 = vperm.xlu0 %861, %v859
        %v863 = vpop.permute.xlu0 %862
        %vm865 = vcmp.eq.f32.partialorder %v805, %v863
        %867 = vset.pattern.permute.xlu0 0
        %868 = vperm.xlu0 %867, %v857
        %v869 = vpop.permute.xlu0 %868
        %v870 = vrot.slane %v869, 7
        %v872 = vsel %vm865, %v870, 0.0
        %v873 = vadd.f32 %v853, %v872
        %v874 = vmul.f32 %v810, %v855
        %v875 = vadd.f32 %v858, %v837
        %877 = vset.pattern.permute.xlu0 0
        %878 = vperm.xlu0 %877, %v875
        %v879 = vpop.permute.xlu0 %878
        %vm881 = vcmp.eq.f32.partialorder %v805, %v879
        %883 = vset.pattern.permute.xlu0 0
        %884 = vperm.xlu0 %883, %v874
        %v885 = vpop.permute.xlu0 %884
        %v886 = vrot.slane %v885, 7
        %v888 = vsel %vm881, %v886, 0.0
        %v889 = vadd.f32 %v873, %v888
        %v890 = vld [vmem:[%s1] sm:$0xff]
        %v891 = vld [vmem:[%s1 + $0x8] sm:$0xff]
        %v892 = vld [vmem:[%s1 + $0x10] sm:$0xff]
        %v893 = vld [vmem:[%s1 + $0x18] sm:$0xff]
        %v894 = vld [vmem:[%s1 + $0x20] sm:$0xff]
        %v895 = vld [vmem:[%s1 + $0x28] sm:$0xff]
        %v896 = vld [vmem:[%s1 + $0x30] sm:$0xff]
        %v897 = vld [vmem:[%s1 + $0x38] sm:$0xff]
        %v898 = vld [vmem:[%s1 + $0x40] sm:$0xff]
        %v899 = vld [vmem:[%s1 + $0x48] sm:$0xff]
        %v900 = vld [vmem:[%s1 + $0x50] sm:$0xff]
        %v901 = vld [vmem:[%s1 + $0x58] sm:$0xff]
        %v902 = vld [vmem:[%s1 + $0x60] sm:$0xff]
        %v903 = vld [vmem:[%s1 + $0x68] sm:$0xff]
        %v904 = vld [vmem:[%s1 + $0x70] sm:$0xff]
        %v905 = vld [vmem:[%s1 + $0x78] sm:$0xff]
        %v907 = vrot.slane %v889, 1
        %vm908 = vcmask 523264
        %v909 = vsel %vm908, %v907, 0
        %911 = vmatprep.subr.mxu0 0.0
        %912 = vmatpush1.msra.mxu0 0.0
        %913 = vmatprep.subr.mxu0 0.0
        %914 = vmatpush1.msra.mxu0 0.0
        %915 = vmatprep.subr.mxu0 0.0
        %916 = vmatpush1.msra.mxu0 0.0
        %917 = vmatprep.subr.mxu0 0.0
        %918 = vmatpush1.msra.mxu0 0.0
        %919 = vmatprep.subr.mxu0 0.0
        %920 = vmatpush1.msra.mxu0 0.0
        %921 = vmatprep.subr.mxu0 0.0
        %922 = vmatpush1.msra.mxu0 0.0
        %923 = vmatprep.subr.mxu0 0.0
        %924 = vmatpush1.msra.mxu0 0.0
        %925 = vmatprep.subr.mxu0 0.0
        %926 = vmatpush1.msra.mxu0 0.0
        %927 = vmatprep.subr.mxu0 %v905
        %928 = vmatpush1.msra.mxu0 %v904
        %929 = vmatprep.subr.mxu0 %v903
        %930 = vmatpush1.msra.mxu0 %v902
        %931 = vmatprep.subr.mxu0 %v901
        %932 = vmatpush1.msra.mxu0 %v900
        %933 = vmatprep.subr.mxu0 %v899
        %934 = vmatpush1.msra.mxu0 %v898
        %935 = vmatprep.subr.mxu0 %v897
        %936 = vmatpush1.msra.mxu0 %v896
        %937 = vmatprep.subr.mxu0 %v895
        %938 = vmatpush1.msra.mxu0 %v894
        %939 = vmatprep.subr.mxu0 %v893
        %940 = vmatpush1.msra.mxu0 %v892
        %941 = vmatprep.subr.mxu0 %v891
        %942 = vmatpush1.msra.mxu0 %v890
        %943 = vmatprep.subr.mxu0 0.0
        %944 = vmatpush2.msra.mxu0 0.0
        %945 = vmatprep.subr.mxu0 0.0
        %946 = vmatpush2.msra.mxu0 0.0
        %947 = vmatprep.subr.mxu0 0.0
        %948 = vmatpush2.msra.mxu0 0.0
        %949 = vmatprep.subr.mxu0 0.0
        %950 = vmatpush2.msra.mxu0 0.0
        %951 = vmatprep.subr.mxu0 0.0
        %952 = vmatpush2.msra.mxu0 0.0
        %953 = vmatprep.subr.mxu0 0.0
        %954 = vmatpush2.msra.mxu0 0.0
        %955 = vmatprep.subr.mxu0 0.0
        %956 = vmatpush2.msra.mxu0 0.0
        %957 = vmatprep.subr.mxu0 0.0
        %958 = vmatpush2.msra.mxu0 0.0
        %959 = vmatprep.subr.mxu0 0.0
        %960 = vmatpush2.msra.mxu0 0.0
        %961 = vmatprep.subr.mxu0 0.0
        %962 = vmatpush2.msra.mxu0 0.0
        %963 = vmatprep.subr.mxu0 0.0
        %964 = vmatpush2.msra.mxu0 0.0
        %965 = vmatprep.subr.mxu0 0.0
        %966 = vmatpush2.msra.mxu0 0.0
        %967 = vmatprep.subr.mxu0 0.0
        %968 = vmatpush2.msra.mxu0 0.0
        %969 = vmatprep.subr.mxu0 0.0
        %970 = vmatpush2.msra.mxu0 0.0
        %971 = vmatprep.subr.mxu0 0.0
        %972 = vmatpush2.msra.mxu0 0.0
        %973 = vmatprep.subr.mxu0 0.0
        %974 = vmatpush2.msra.mxu0 0.0
        %975 = vmatprep.mubr.f32.mxu0 0.0
        %976 = vmatmul.mubr.f32.gmra.mxu0 %v909
        %v977 = vpop.f32.mrf.mxu0
        %v978 = vadd.f32 0.0, %v977
        %v979 = vpop.f32.mrf.mxu0
        %v980 = vadd.f32 0.0, %v979
        %981 = vdwg.mxu0
        %s982 = scalar_lea.vmem %s1, 128
        %v983 = vld [vmem:[%s982] sm:$0xff]
        %v984 = vld [vmem:[%s982 + $0x8] sm:$0xff]
        %v985 = vld [vmem:[%s982 + $0x10] sm:$0xff]
        %v986 = vld [vmem:[%s982 + $0x18] sm:$0xff]
        %v987 = vld [vmem:[%s982 + $0x20] sm:$0xff]
        %v988 = vld [vmem:[%s982 + $0x28] sm:$0xff]
        %v989 = vld [vmem:[%s982 + $0x30] sm:$0xff]
        %v990 = vld [vmem:[%s982 + $0x38] sm:$0xff]
        %v991 = vld [vmem:[%s982 + $0x40] sm:$0xff]
        %v992 = vld [vmem:[%s982 + $0x48] sm:$0xff]
        %v993 = vld [vmem:[%s982 + $0x50] sm:$0xff]
        %v994 = vld [vmem:[%s982 + $0x58] sm:$0xff]
        %v995 = vld [vmem:[%s982 + $0x60] sm:$0xff]
        %v996 = vld [vmem:[%s982 + $0x68] sm:$0xff]
        %v997 = vld [vmem:[%s982 + $0x70] sm:$0xff]
        %v998 = vld [vmem:[%s982 + $0x78] sm:$0xff]
        %999 = vmatprep.subr.mxu0 0.0
        %1000 = vmatpush1.msra.mxu0 0.0
        %1001 = vmatprep.subr.mxu0 0.0
        %1002 = vmatpush1.msra.mxu0 0.0
        %1003 = vmatprep.subr.mxu0 0.0
        %1004 = vmatpush1.msra.mxu0 0.0
        %1005 = vmatprep.subr.mxu0 0.0
        %1006 = vmatpush1.msra.mxu0 0.0
        %1007 = vmatprep.subr.mxu0 0.0
        %1008 = vmatpush1.msra.mxu0 0.0
        %1009 = vmatprep.subr.mxu0 0.0
        %1010 = vmatpush1.msra.mxu0 0.0
        %1011 = vmatprep.subr.mxu0 0.0
        %1012 = vmatpush1.msra.mxu0 0.0
        %1013 = vmatprep.subr.mxu0 0.0
        %1014 = vmatpush1.msra.mxu0 0.0
        %1015 = vmatprep.subr.mxu0 %v998
        %1016 = vmatpush1.msra.mxu0 %v997
        %1017 = vmatprep.subr.mxu0 %v996
        %1018 = vmatpush1.msra.mxu0 %v995
        %1019 = vmatprep.subr.mxu0 %v994
        %1020 = vmatpush1.msra.mxu0 %v993
        %1021 = vmatprep.subr.mxu0 %v992
        %1022 = vmatpush1.msra.mxu0 %v991
        %1023 = vmatprep.subr.mxu0 %v990
        %1024 = vmatpush1.msra.mxu0 %v989
        %1025 = vmatprep.subr.mxu0 %v988
        %1026 = vmatpush1.msra.mxu0 %v987
        %1027 = vmatprep.subr.mxu0 %v986
        %1028 = vmatpush1.msra.mxu0 %v985
        %1029 = vmatprep.subr.mxu0 %v984
        %1030 = vmatpush1.msra.mxu0 %v983
        %1031 = vmatprep.subr.mxu0 0.0
        %1032 = vmatpush2.msra.mxu0 0.0
        %1033 = vmatprep.subr.mxu0 0.0
        %1034 = vmatpush2.msra.mxu0 0.0
        %1035 = vmatprep.subr.mxu0 0.0
        %1036 = vmatpush2.msra.mxu0 0.0
        %1037 = vmatprep.subr.mxu0 0.0
        %1038 = vmatpush2.msra.mxu0 0.0
        %1039 = vmatprep.subr.mxu0 0.0
        %1040 = vmatpush2.msra.mxu0 0.0
        %1041 = vmatprep.subr.mxu0 0.0
        %1042 = vmatpush2.msra.mxu0 0.0
        %1043 = vmatprep.subr.mxu0 0.0
        %1044 = vmatpush2.msra.mxu0 0.0
        %1045 = vmatprep.subr.mxu0 0.0
        %1046 = vmatpush2.msra.mxu0 0.0
        %1047 = vmatprep.subr.mxu0 0.0
        %1048 = vmatpush2.msra.mxu0 0.0
        %1049 = vmatprep.subr.mxu0 0.0
        %1050 = vmatpush2.msra.mxu0 0.0
        %1051 = vmatprep.subr.mxu0 0.0
        %1052 = vmatpush2.msra.mxu0 0.0
        %1053 = vmatprep.subr.mxu0 0.0
        %1054 = vmatpush2.msra.mxu0 0.0
        %1055 = vmatprep.subr.mxu0 0.0
        %1056 = vmatpush2.msra.mxu0 0.0
        %1057 = vmatprep.subr.mxu0 0.0
        %1058 = vmatpush2.msra.mxu0 0.0
        %1059 = vmatprep.subr.mxu0 0.0
        %1060 = vmatpush2.msra.mxu0 0.0
        %1061 = vmatprep.subr.mxu0 0.0
        %1062 = vmatpush2.msra.mxu0 0.0
        %1063 = vmatprep.mubr.f32.mxu0 0.0
        %1064 = vmatmul.mubr.f32.gmra.mxu0 %v909
        %v1065 = vpop.f32.mrf.mxu0
        %v1066 = vadd.f32 0.0, %v1065
        %v1067 = vpop.f32.mrf.mxu0
        %v1068 = vadd.f32 0.0, %v1067
        %1069 = vdwg.mxu0
        %s1070 = scalar_lea.vmem %s1, 256
        %v1071 = vld [vmem:[%s1070] sm:$0xff]
        %v1072 = vld [vmem:[%s1070 + $0x8] sm:$0xff]
        %v1073 = vld [vmem:[%s1070 + $0x10] sm:$0xff]
        %v1074 = vld [vmem:[%s1070 + $0x18] sm:$0xff]
        %v1075 = vld [vmem:[%s1070 + $0x20] sm:$0xff]
        %v1076 = vld [vmem:[%s1070 + $0x28] sm:$0xff]
        %v1077 = vld [vmem:[%s1070 + $0x30] sm:$0xff]
        %v1078 = vld [vmem:[%s1070 + $0x38] sm:$0xff]
        %v1079 = vld [vmem:[%s1070 + $0x40] sm:$0xff]
        %v1080 = vld [vmem:[%s1070 + $0x48] sm:$0xff]
        %v1081 = vld [vmem:[%s1070 + $0x50] sm:$0xff]
        %v1082 = vld [vmem:[%s1070 + $0x58] sm:$0xff]
        %v1083 = vld [vmem:[%s1070 + $0x60] sm:$0xff]
        %v1084 = vld [vmem:[%s1070 + $0x68] sm:$0xff]
        %v1085 = vld [vmem:[%s1070 + $0x70] sm:$0xff]
        %v1086 = vld [vmem:[%s1070 + $0x78] sm:$0xff]
        %1087 = vmatprep.subr.mxu0 0.0
        %1088 = vmatpush1.msra.mxu0 0.0
        %1089 = vmatprep.subr.mxu0 0.0
        %1090 = vmatpush1.msra.mxu0 0.0
        %1091 = vmatprep.subr.mxu0 0.0
        %1092 = vmatpush1.msra.mxu0 0.0
        %1093 = vmatprep.subr.mxu0 0.0
        %1094 = vmatpush1.msra.mxu0 0.0
        %1095 = vmatprep.subr.mxu0 0.0
        %1096 = vmatpush1.msra.mxu0 0.0
        %1097 = vmatprep.subr.mxu0 0.0
        %1098 = vmatpush1.msra.mxu0 0.0
        %1099 = vmatprep.subr.mxu0 0.0
        %1100 = vmatpush1.msra.mxu0 0.0
        %1101 = vmatprep.subr.mxu0 0.0
        %1102 = vmatpush1.msra.mxu0 0.0
        %1103 = vmatprep.subr.mxu0 %v1086
        %1104 = vmatpush1.msra.mxu0 %v1085
        %1105 = vmatprep.subr.mxu0 %v1084
        %1106 = vmatpush1.msra.mxu0 %v1083
        %1107 = vmatprep.subr.mxu0 %v1082
        %1108 = vmatpush1.msra.mxu0 %v1081
        %1109 = vmatprep.subr.mxu0 %v1080
        %1110 = vmatpush1.msra.mxu0 %v1079
        %1111 = vmatprep.subr.mxu0 %v1078
        %1112 = vmatpush1.msra.mxu0 %v1077
        %1113 = vmatprep.subr.mxu0 %v1076
        %1114 = vmatpush1.msra.mxu0 %v1075
        %1115 = vmatprep.subr.mxu0 %v1074
        %1116 = vmatpush1.msra.mxu0 %v1073
        %1117 = vmatprep.subr.mxu0 %v1072
        %1118 = vmatpush1.msra.mxu0 %v1071
        %1119 = vmatprep.subr.mxu0 0.0
        %1120 = vmatpush2.msra.mxu0 0.0
        %1121 = vmatprep.subr.mxu0 0.0
        %1122 = vmatpush2.msra.mxu0 0.0
        %1123 = vmatprep.subr.mxu0 0.0
        %1124 = vmatpush2.msra.mxu0 0.0
        %1125 = vmatprep.subr.mxu0 0.0
        %1126 = vmatpush2.msra.mxu0 0.0
        %1127 = vmatprep.subr.mxu0 0.0
        %1128 = vmatpush2.msra.mxu0 0.0
        %1129 = vmatprep.subr.mxu0 0.0
        %1130 = vmatpush2.msra.mxu0 0.0
        %1131 = vmatprep.subr.mxu0 0.0
        %1132 = vmatpush2.msra.mxu0 0.0
        %1133 = vmatprep.subr.mxu0 0.0
        %1134 = vmatpush2.msra.mxu0 0.0
        %1135 = vmatprep.subr.mxu0 0.0
        %1136 = vmatpush2.msra.mxu0 0.0
        %1137 = vmatprep.subr.mxu0 0.0
        %1138 = vmatpush2.msra.mxu0 0.0
        %1139 = vmatprep.subr.mxu0 0.0
        %1140 = vmatpush2.msra.mxu0 0.0
        %1141 = vmatprep.subr.mxu0 0.0
        %1142 = vmatpush2.msra.mxu0 0.0
        %1143 = vmatprep.subr.mxu0 0.0
        %1144 = vmatpush2.msra.mxu0 0.0
        %1145 = vmatprep.subr.mxu0 0.0
        %1146 = vmatpush2.msra.mxu0 0.0
        %1147 = vmatprep.subr.mxu0 0.0
        %1148 = vmatpush2.msra.mxu0 0.0
        %1149 = vmatprep.subr.mxu0 0.0
        %1150 = vmatpush2.msra.mxu0 0.0
        %1151 = vmatprep.mubr.f32.mxu0 0.0
        %1152 = vmatmul.mubr.f32.gmra.mxu0 %v909
        %v1153 = vpop.f32.mrf.mxu0
        %v1154 = vadd.f32 0.0, %v1153
        %v1155 = vpop.f32.mrf.mxu0
        %v1156 = vadd.f32 0.0, %v1155
        %1157 = vdwg.mxu0
        %s1158 = scalar_lea.vmem %s1, 384
        %v1159 = vld [vmem:[%s1158] sm:$0xff]
        %v1160 = vld [vmem:[%s1158 + $0x8] sm:$0xff]
        %v1161 = vld [vmem:[%s1158 + $0x10] sm:$0xff]
        %v1162 = vld [vmem:[%s1158 + $0x18] sm:$0xff]
        %v1163 = vld [vmem:[%s1158 + $0x20] sm:$0xff]
        %v1164 = vld [vmem:[%s1158 + $0x28] sm:$0xff]
        %v1165 = vld [vmem:[%s1158 + $0x30] sm:$0xff]
        %v1166 = vld [vmem:[%s1158 + $0x38] sm:$0xff]
        %v1167 = vld [vmem:[%s1158 + $0x40] sm:$0xff]
        %v1168 = vld [vmem:[%s1158 + $0x48] sm:$0xff]
        %v1169 = vld [vmem:[%s1158 + $0x50] sm:$0xff]
        %v1170 = vld [vmem:[%s1158 + $0x58] sm:$0xff]
        %v1171 = vld [vmem:[%s1158 + $0x60] sm:$0xff]
        %v1172 = vld [vmem:[%s1158 + $0x68] sm:$0xff]
        %v1173 = vld [vmem:[%s1158 + $0x70] sm:$0xff]
        %v1174 = vld [vmem:[%s1158 + $0x78] sm:$0xff]
        %1175 = vmatprep.subr.mxu0 0.0
        %1176 = vmatpush1.msra.mxu0 0.0
        %1177 = vmatprep.subr.mxu0 0.0
        %1178 = vmatpush1.msra.mxu0 0.0
        %1179 = vmatprep.subr.mxu0 0.0
        %1180 = vmatpush1.msra.mxu0 0.0
        %1181 = vmatprep.subr.mxu0 0.0
        %1182 = vmatpush1.msra.mxu0 0.0
        %1183 = vmatprep.subr.mxu0 0.0
        %1184 = vmatpush1.msra.mxu0 0.0
        %1185 = vmatprep.subr.mxu0 0.0
        %1186 = vmatpush1.msra.mxu0 0.0
        %1187 = vmatprep.subr.mxu0 0.0
        %1188 = vmatpush1.msra.mxu0 0.0
        %1189 = vmatprep.subr.mxu0 0.0
        %1190 = vmatpush1.msra.mxu0 0.0
        %1191 = vmatprep.subr.mxu0 %v1174
        %1192 = vmatpush1.msra.mxu0 %v1173
        %1193 = vmatprep.subr.mxu0 %v1172
        %1194 = vmatpush1.msra.mxu0 %v1171
        %1195 = vmatprep.subr.mxu0 %v1170
        %1196 = vmatpush1.msra.mxu0 %v1169
        %1197 = vmatprep.subr.mxu0 %v1168
        %1198 = vmatpush1.msra.mxu0 %v1167
        %1199 = vmatprep.subr.mxu0 %v1166
        %1200 = vmatpush1.msra.mxu0 %v1165
        %1201 = vmatprep.subr.mxu0 %v1164
        %1202 = vmatpush1.msra.mxu0 %v1163
        %1203 = vmatprep.subr.mxu0 %v1162
        %1204 = vmatpush1.msra.mxu0 %v1161
        %1205 = vmatprep.subr.mxu0 %v1160
        %1206 = vmatpush1.msra.mxu0 %v1159
        %1207 = vmatprep.subr.mxu0 0.0
        %1208 = vmatpush2.msra.mxu0 0.0
        %1209 = vmatprep.subr.mxu0 0.0
        %1210 = vmatpush2.msra.mxu0 0.0
        %1211 = vmatprep.subr.mxu0 0.0
        %1212 = vmatpush2.msra.mxu0 0.0
        %1213 = vmatprep.subr.mxu0 0.0
        %1214 = vmatpush2.msra.mxu0 0.0
        %1215 = vmatprep.subr.mxu0 0.0
        %1216 = vmatpush2.msra.mxu0 0.0
        %1217 = vmatprep.subr.mxu0 0.0
        %1218 = vmatpush2.msra.mxu0 0.0
        %1219 = vmatprep.subr.mxu0 0.0
        %1220 = vmatpush2.msra.mxu0 0.0
        %1221 = vmatprep.subr.mxu0 0.0
        %1222 = vmatpush2.msra.mxu0 0.0
        %1223 = vmatprep.subr.mxu0 0.0
        %1224 = vmatpush2.msra.mxu0 0.0
        %1225 = vmatprep.subr.mxu0 0.0
        %1226 = vmatpush2.msra.mxu0 0.0
        %1227 = vmatprep.subr.mxu0 0.0
        %1228 = vmatpush2.msra.mxu0 0.0
        %1229 = vmatprep.subr.mxu0 0.0
        %1230 = vmatpush2.msra.mxu0 0.0
        %1231 = vmatprep.subr.mxu0 0.0
        %1232 = vmatpush2.msra.mxu0 0.0
        %1233 = vmatprep.subr.mxu0 0.0
        %1234 = vmatpush2.msra.mxu0 0.0
        %1235 = vmatprep.subr.mxu0 0.0
        %1236 = vmatpush2.msra.mxu0 0.0
        %1237 = vmatprep.subr.mxu0 0.0
        %1238 = vmatpush2.msra.mxu0 0.0
        %1239 = vmatprep.mubr.f32.mxu0 0.0
        %1240 = vmatmul.mubr.f32.gmra.mxu0 %v909
        %v1241 = vpop.f32.mrf.mxu0
        %v1242 = vadd.f32 0.0, %v1241
        %v1243 = vpop.f32.mrf.mxu0
        %v1244 = vadd.f32 0.0, %v1243
        %1245 = vdwg.mxu0
        %v1248 = vrot.slane %v1066, 7
        %v1249 = vrot.slane %v1068, 7
        %v1254 = vrot.slane %v1154, 6
        %v1255 = vrot.slane %v1156, 6
        %v1260 = vrot.slane %v1242, 5
        %v1261 = vrot.slane %v1244, 5
        %vm1264 = vcmask 1040384
        %v1265 = vsel %vm1264, %v978, %v1248
        %v1266 = vsel %vm1264, %v980, %v1249
        %vm1267 = vcmask 1041408
        %v1268 = vsel %vm1267, %v1265, %v1254
        %v1269 = vsel %vm1267, %v1266, %v1255
        %vm1270 = vcmask 1042432
        %v1271 = vsel %vm1270, %v1268, %v1260
        %v1272 = vsel %vm1270, %v1269, %v1261
        %v1273 = vld [vmem:[%s7] sm:$0xf]
        %v1274 = vld [vmem:[%s8] sm:$0xf]
        %1276 = vset.pattern.permute.xlu0 0
        %1277 = vperm.xlu0 %1276, %v1274
        %v1278 = vpop.permute.xlu0 %1277
        %v1281 = vsel %vm643, %v1273, 0
        %v1283 = vsel %vm633, %v614, 0
        %v1285 = vsel %vm633, %v631, 0
        %1287 = vmatprep.subr.mxu0 0.0
        %1288 = vmatpush1.msra.mxu0 0.0
        %1289 = vmatprep.subr.mxu0 0.0
        %1290 = vmatpush1.msra.mxu0 0.0
        %1291 = vmatprep.subr.mxu0 0.0
        %1292 = vmatpush1.msra.mxu0 0.0
        %1293 = vmatprep.subr.mxu0 0.0
        %1294 = vmatpush1.msra.mxu0 0.0
        %1295 = vmatprep.subr.mxu0 0.0
        %1296 = vmatpush1.msra.mxu0 0.0
        %1297 = vmatprep.subr.mxu0 0.0
        %1298 = vmatpush1.msra.mxu0 0.0
        %1299 = vmatprep.subr.mxu0 0.0
        %1300 = vmatpush1.msra.mxu0 0.0
        %1301 = vmatprep.subr.mxu0 0.0
        %1302 = vmatpush1.msra.mxu0 0.0
        %1303 = vmatprep.subr.mxu0 0.0
        %1304 = vmatpush1.msra.mxu0 0.0
        %1305 = vmatprep.subr.mxu0 0.0
        %1306 = vmatpush1.msra.mxu0 0.0
        %1307 = vmatprep.subr.mxu0 0.0
        %1308 = vmatpush1.msra.mxu0 0.0
        %1309 = vmatprep.subr.mxu0 0.0
        %1310 = vmatpush1.msra.mxu0 0.0
        %1311 = vmatprep.subr.mxu0 0.0
        %1312 = vmatpush1.msra.mxu0 0.0
        %1313 = vmatprep.subr.mxu0 0.0
        %1314 = vmatpush1.msra.mxu0 0.0
        %1315 = vmatprep.subr.mxu0 0.0
        %1316 = vmatpush1.msra.mxu0 0.0
        %1317 = vmatprep.subr.mxu0 %v1285
        %1318 = vmatpush1.msra.mxu0 %v1283
        %1319 = vmatprep.subr.mxu0 0.0
        %1320 = vmatpush2.msra.mxu0 0.0
        %1321 = vmatprep.subr.mxu0 0.0
        %1322 = vmatpush2.msra.mxu0 0.0
        %1323 = vmatprep.subr.mxu0 0.0
        %1324 = vmatpush2.msra.mxu0 0.0
        %1325 = vmatprep.subr.mxu0 0.0
        %1326 = vmatpush2.msra.mxu0 0.0
        %1327 = vmatprep.subr.mxu0 0.0
        %1328 = vmatpush2.msra.mxu0 0.0
        %1329 = vmatprep.subr.mxu0 0.0
        %1330 = vmatpush2.msra.mxu0 0.0
        %1331 = vmatprep.subr.mxu0 0.0
        %1332 = vmatpush2.msra.mxu0 0.0
        %1333 = vmatprep.subr.mxu0 0.0
        %1334 = vmatpush2.msra.mxu0 0.0
        %1335 = vmatprep.subr.mxu0 0.0
        %1336 = vmatpush2.msra.mxu0 0.0
        %1337 = vmatprep.subr.mxu0 0.0
        %1338 = vmatpush2.msra.mxu0 0.0
        %1339 = vmatprep.subr.mxu0 0.0
        %1340 = vmatpush2.msra.mxu0 0.0
        %1341 = vmatprep.subr.mxu0 0.0
        %1342 = vmatpush2.msra.mxu0 0.0
        %1343 = vmatprep.subr.mxu0 0.0
        %1344 = vmatpush2.msra.mxu0 0.0
        %1345 = vmatprep.subr.mxu0 0.0
        %1346 = vmatpush2.msra.mxu0 0.0
        %1347 = vmatprep.subr.mxu0 0.0
        %1348 = vmatpush2.msra.mxu0 0.0
        %1349 = vmatprep.subr.mxu0 0.0
        %1350 = vmatpush2.msra.mxu0 0.0
        %1351 = vmatprep.mubr.f32.mxu0 0.0
        %1352 = vmatmul.mubr.f32.gmra.mxu0 %v1281
        %v1353 = vpop.f32.mrf.mxu0
        %v1354 = vadd.f32 %v1278, %v1353
        %v1355 = vpop.f32.mrf.mxu0
        %v1356 = vadd.f32 %v1278, %v1355
        %1357 = vdwg.mxu0
        %v1358 = vtanh.pop %v1354
        %v1359 = vtanh.pop %v1356
        %v1360 = vld [vmem:[%s9] sm:$0x3]
        %v1361 = vld [vmem:[%s10] sm:$0x3]
        %1363 = vset.pattern.permute.xlu0 0
        %1364 = vperm.xlu0 %1363, %v1361
        %v1365 = vpop.permute.xlu0 %1364
        %v1368 = vsel %vm643, %v1360, 0
        %v1371 = vsel %vm633, %v1358, 0
        %v1374 = vsel %vm633, %v1359, 0
        %1376 = vmatprep.subr.mxu0 0.0
        %1377 = vmatpush1.msra.mxu0 0.0
        %1378 = vmatprep.subr.mxu0 0.0
        %1379 = vmatpush1.msra.mxu0 0.0
        %1380 = vmatprep.subr.mxu0 0.0
        %1381 = vmatpush1.msra.mxu0 0.0
        %1382 = vmatprep.subr.mxu0 0.0
        %1383 = vmatpush1.msra.mxu0 0.0
        %1384 = vmatprep.subr.mxu0 0.0
        %1385 = vmatpush1.msra.mxu0 0.0
        %1386 = vmatprep.subr.mxu0 0.0
        %1387 = vmatpush1.msra.mxu0 0.0
        %1388 = vmatprep.subr.mxu0 0.0
        %1389 = vmatpush1.msra.mxu0 0.0
        %1390 = vmatprep.subr.mxu0 0.0
        %1391 = vmatpush1.msra.mxu0 0.0
        %1392 = vmatprep.subr.mxu0 0.0
        %1393 = vmatpush1.msra.mxu0 0.0
        %1394 = vmatprep.subr.mxu0 0.0
        %1395 = vmatpush1.msra.mxu0 0.0
        %1396 = vmatprep.subr.mxu0 0.0
        %1397 = vmatpush1.msra.mxu0 0.0
        %1398 = vmatprep.subr.mxu0 0.0
        %1399 = vmatpush1.msra.mxu0 0.0
        %1400 = vmatprep.subr.mxu0 0.0
        %1401 = vmatpush1.msra.mxu0 0.0
        %1402 = vmatprep.subr.mxu0 0.0
        %1403 = vmatpush1.msra.mxu0 0.0
        %1404 = vmatprep.subr.mxu0 0.0
        %1405 = vmatpush1.msra.mxu0 0.0
        %1406 = vmatprep.subr.mxu0 %v1374
        %1407 = vmatpush1.msra.mxu0 %v1371
        %1408 = vmatprep.subr.mxu0 0.0
        %1409 = vmatpush2.msra.mxu0 0.0
        %1410 = vmatprep.subr.mxu0 0.0
        %1411 = vmatpush2.msra.mxu0 0.0
        %1412 = vmatprep.subr.mxu0 0.0
        %1413 = vmatpush2.msra.mxu0 0.0
        %1414 = vmatprep.subr.mxu0 0.0
        %1415 = vmatpush2.msra.mxu0 0.0
        %1416 = vmatprep.subr.mxu0 0.0
        %1417 = vmatpush2.msra.mxu0 0.0
        %1418 = vmatprep.subr.mxu0 0.0
        %1419 = vmatpush2.msra.mxu0 0.0
        %1420 = vmatprep.subr.mxu0 0.0
        %1421 = vmatpush2.msra.mxu0 0.0
        %1422 = vmatprep.subr.mxu0 0.0
        %1423 = vmatpush2.msra.mxu0 0.0
        %1424 = vmatprep.subr.mxu0 0.0
        %1425 = vmatpush2.msra.mxu0 0.0
        %1426 = vmatprep.subr.mxu0 0.0
        %1427 = vmatpush2.msra.mxu0 0.0
        %1428 = vmatprep.subr.mxu0 0.0
        %1429 = vmatpush2.msra.mxu0 0.0
        %1430 = vmatprep.subr.mxu0 0.0
        %1431 = vmatpush2.msra.mxu0 0.0
        %1432 = vmatprep.subr.mxu0 0.0
        %1433 = vmatpush2.msra.mxu0 0.0
        %1434 = vmatprep.subr.mxu0 0.0
        %1435 = vmatpush2.msra.mxu0 0.0
        %1436 = vmatprep.subr.mxu0 0.0
        %1437 = vmatpush2.msra.mxu0 0.0
        %1438 = vmatprep.subr.mxu0 0.0
        %1439 = vmatpush2.msra.mxu0 0.0
        %1440 = vmatprep.mubr.f32.mxu0 0.0
        %1441 = vmatmul.mubr.f32.gmra.mxu0 %v1368
        %v1442 = vpop.f32.mrf.mxu0
        %v1443 = vadd.f32 %v1365, %v1442
        %v1444 = vpop.f32.mrf.mxu0
        %v1445 = vadd.f32 %v1365, %v1444
        %1446 = vdwg.mxu0
        %v1447 = vtanh.pop %v1443
        %v1448 = vtanh.pop %v1445
        %v1449 = vlaneseq
        %v1450 = vshrl.u32 %v1449, 7
        %v1451 = vadd.s32 %v1450, 8
        %v1452 = vadd.s32 %v1450, 16
        %v1453 = vadd.s32 %v1450, 24
        %v1454 = vadd.s32 %v1450, 32
        %v1455 = vadd.s32 %v1450, 40
        %v1456 = vadd.s32 %v1450, 48
        %v1457 = vadd.s32 %v1450, 56
        %v1458 = vcvt.s32.f32 %v1450
        %v1459 = vcvt.s32.f32 %v1451
        %v1460 = vcvt.s32.f32 %v1452
        %v1461 = vcvt.s32.f32 %v1453
        %v1462 = vcvt.s32.f32 %v1454
        %v1463 = vcvt.s32.f32 %v1455
        %v1464 = vcvt.s32.f32 %v1456
        %v1465 = vcvt.s32.f32 %v1457
        %v1466 = vadd.f32 %v1458, 0.5
        %v1467 = vadd.f32 %v1459, 0.5
        %v1468 = vadd.f32 %v1460, 0.5
        %v1469 = vadd.f32 %v1461, 0.5
        %v1470 = vadd.f32 %v1462, 0.5
        %v1471 = vadd.f32 %v1463, 0.5
        %v1472 = vadd.f32 %v1464, 0.5
        %v1473 = vadd.f32 %v1465, 0.5
        %v1474 = vmul.f32 %v1466, 0.125
        %v1475 = vmul.f32 %v1467, 0.125
        %v1476 = vmul.f32 %v1468, 0.125
        %v1477 = vmul.f32 %v1469, 0.125
        %v1478 = vmul.f32 %v1470, 0.125
        %v1479 = vmul.f32 %v1471, 0.125
        %v1480 = vmul.f32 %v1472, 0.125
        %v1481 = vmul.f32 %v1473, 0.125
        %v1482 = vfloor.f32 %v1474
        %v1483 = vfloor.f32 %v1475
        %v1484 = vfloor.f32 %v1476
        %v1485 = vfloor.f32 %v1477
        %v1486 = vfloor.f32 %v1478
        %v1487 = vfloor.f32 %v1479
        %v1488 = vfloor.f32 %v1480
        %v1489 = vfloor.f32 %v1481
        %v1490 = vmul.f32 %v1482, 8.0
        %v1491 = vmul.f32 %v1483, 8.0
        %v1492 = vmul.f32 %v1484, 8.0
        %v1493 = vmul.f32 %v1485, 8.0
        %v1494 = vmul.f32 %v1486, 8.0
        %v1495 = vmul.f32 %v1487, 8.0
        %v1496 = vmul.f32 %v1488, 8.0
        %v1497 = vmul.f32 %v1489, 8.0
        %v1498 = vsub.f32 %v1458, %v1490
        %v1499 = vsub.f32 %v1459, %v1491
        %v1500 = vsub.f32 %v1460, %v1492
        %v1501 = vsub.f32 %v1461, %v1493
        %v1502 = vsub.f32 %v1462, %v1494
        %v1503 = vsub.f32 %v1463, %v1495
        %v1504 = vsub.f32 %v1464, %v1496
        %v1505 = vsub.f32 %v1465, %v1497
        %v1506 = vmul.f32 %v1482, 256.0
        %v1507 = vmul.f32 %v1483, 256.0
        %v1508 = vmul.f32 %v1484, 256.0
        %v1509 = vmul.f32 %v1485, 256.0
        %v1510 = vmul.f32 %v1486, 256.0
        %v1511 = vmul.f32 %v1487, 256.0
        %v1512 = vmul.f32 %v1488, 256.0
        %v1513 = vmul.f32 %v1489, 256.0
        %v1514 = vadd.f32 %v1506, %v1498
        %v1515 = vadd.f32 %v1507, %v1499
        %v1516 = vadd.f32 %v1508, %v1500
        %v1517 = vadd.f32 %v1509, %v1501
        %v1518 = vadd.f32 %v1510, %v1502
        %v1519 = vadd.f32 %v1511, %v1503
        %v1520 = vadd.f32 %v1512, %v1504
        %v1521 = vadd.f32 %v1513, %v1505
        %v1522 = vadd.f32 %v1447, 1.0
        %v1523 = vadd.f32 %v1448, 1.0
        %v1524 = vmul.f32 %v1522, 4.0
        %v1525 = vmul.f32 %v1523, 4.0
        %v1526 = vsub.f32 %v1524, 0.5
        %v1527 = vsub.f32 %v1525, 0.5
        %v1528 = vfloor.f32 %v1526
        %v1529 = vfloor.f32 %v1527
        %v1530 = vsub.f32 %v1526, %v1528
        %v1531 = vsub.f32 %v1527, %v1529
        %v1532 = vsub.f32 1.0, %v1530
        %v1533 = vsub.f32 1.0, %v1531
        %v1536 = vrot.slane %v1532, 1
        %v1537 = vrot.slane %v1533, 1
        %v1540 = vmul.f32 %v1532, %v1536
        %v1541 = vmul.f32 %v1533, %v1537
        %v1542 = vmul.f32 %v1528, 256.0
        %v1543 = vmul.f32 %v1529, 256.0
        %v1546 = vrot.slane %v1528, 7
        %v1547 = vrot.slane %v1529, 7
        %v1550 = vadd.f32 %v1542, %v1546
        %v1551 = vadd.f32 %v1543, %v1547
        %v1552 = vlaneseq
        %v1553 = vshrl.u32 %v1552, 7
        %v1554 = vsub.s32 1, %v1553
        %v1555 = vrot.slane %v1550, %v1554
        %v1556 = vlaneseq
        %v1557 = vshrl.u32 %v1556, 7
        %v1558 = vsub.s32 1, %v1557
        %v1559 = vrot.slane %v1551, %v1558
        %vm1560 = vcmp.eq.f32.partialorder %v1514, %v1555
        %vm1561 = vcmp.eq.f32.partialorder %v1514, %v1559
        %vm1562 = vcmp.eq.f32.partialorder %v1515, %v1555
        %vm1563 = vcmp.eq.f32.partialorder %v1515, %v1559
        %vm1564 = vcmp.eq.f32.partialorder %v1516, %v1555
        %vm1565 = vcmp.eq.f32.partialorder %v1516, %v1559
        %vm1566 = vcmp.eq.f32.partialorder %v1517, %v1555
        %vm1567 = vcmp.eq.f32.partialorder %v1517, %v1559
        %vm1568 = vcmp.eq.f32.partialorder %v1518, %v1555
        %vm1569 = vcmp.eq.f32.partialorder %v1518, %v1559
        %vm1570 = vcmp.eq.f32.partialorder %v1519, %v1555
        %vm1571 = vcmp.eq.f32.partialorder %v1519, %v1559
        %vm1572 = vcmp.eq.f32.partialorder %v1520, %v1555
        %vm1573 = vcmp.eq.f32.partialorder %v1520, %v1559
        %vm1574 = vcmp.eq.f32.partialorder %v1521, %v1555
        %vm1575 = vcmp.eq.f32.partialorder %v1521, %v1559
        %v1576 = vlaneseq
        %v1577 = vshrl.u32 %v1576, 7
        %v1578 = vsub.s32 0, %v1577
        %v1579 = vrot.slane %v1540, %v1578
        %v1580 = vlaneseq
        %v1581 = vshrl.u32 %v1580, 7
        %v1582 = vsub.s32 0, %v1581
        %v1583 = vrot.slane %v1541, %v1582
        %v1584 = vsel %vm1560, %v1579, 0.0
        %v1585 = vsel %vm1561, %v1583, 0.0
        %v1586 = vsel %vm1562, %v1579, 0.0
        %v1587 = vsel %vm1563, %v1583, 0.0
        %v1588 = vsel %vm1564, %v1579, 0.0
        %v1589 = vsel %vm1565, %v1583, 0.0
        %v1590 = vsel %vm1566, %v1579, 0.0
        %v1591 = vsel %vm1567, %v1583, 0.0
        %v1592 = vsel %vm1568, %v1579, 0.0
        %v1593 = vsel %vm1569, %v1583, 0.0
        %v1594 = vsel %vm1570, %v1579, 0.0
        %v1595 = vsel %vm1571, %v1583, 0.0
        %v1596 = vsel %vm1572, %v1579, 0.0
        %v1597 = vsel %vm1573, %v1583, 0.0
        %v1598 = vsel %vm1574, %v1579, 0.0
        %v1599 = vsel %vm1575, %v1583, 0.0
        %v1600 = vadd.f32 %v1528, 1.0
        %v1601 = vadd.f32 %v1529, 1.0
        %v1602 = vmul.f32 %v1530, %v1536
        %v1603 = vmul.f32 %v1531, %v1537
        %v1606 = vrot.slane %v1600, 7
        %v1607 = vrot.slane %v1601, 7
        %v1610 = vadd.f32 %v1542, %v1606
        %v1611 = vadd.f32 %v1543, %v1607
        %v1612 = vlaneseq
        %v1613 = vshrl.u32 %v1612, 7
        %v1614 = vsub.s32 1, %v1613
        %v1615 = vrot.slane %v1610, %v1614
        %v1616 = vlaneseq
        %v1617 = vshrl.u32 %v1616, 7
        %v1618 = vsub.s32 1, %v1617
        %v1619 = vrot.slane %v1611, %v1618
        %vm1620 = vcmp.eq.f32.partialorder %v1514, %v1615
        %vm1621 = vcmp.eq.f32.partialorder %v1514, %v1619
        %vm1622 = vcmp.eq.f32.partialorder %v1515, %v1615
        %vm1623 = vcmp.eq.f32.partialorder %v1515, %v1619
        %vm1624 = vcmp.eq.f32.partialorder %v1516, %v1615
        %vm1625 = vcmp.eq.f32.partialorder %v1516, %v1619
        %vm1626 = vcmp.eq.f32.partialorder %v1517, %v1615
        %vm1627 = vcmp.eq.f32.partialorder %v1517, %v1619
        %vm1628 = vcmp.eq.f32.partialorder %v1518, %v1615
        %vm1629 = vcmp.eq.f32.partialorder %v1518, %v1619
        %vm1630 = vcmp.eq.f32.partialorder %v1519, %v1615
        %vm1631 = vcmp.eq.f32.partialorder %v1519, %v1619
        %vm1632 = vcmp.eq.f32.partialorder %v1520, %v1615
        %vm1633 = vcmp.eq.f32.partialorder %v1520, %v1619
        %vm1634 = vcmp.eq.f32.partialorder %v1521, %v1615
        %vm1635 = vcmp.eq.f32.partialorder %v1521, %v1619
        %v1636 = vlaneseq
        %v1637 = vshrl.u32 %v1636, 7
        %v1638 = vsub.s32 0, %v1637
        %v1639 = vrot.slane %v1602, %v1638
        %v1640 = vlaneseq
        %v1641 = vshrl.u32 %v1640, 7
        %v1642 = vsub.s32 0, %v1641
        %v1643 = vrot.slane %v1603, %v1642
        %v1644 = vsel %vm1620, %v1639, 0.0
        %v1645 = vsel %vm1621, %v1643, 0.0
        %v1646 = vsel %vm1622, %v1639, 0.0
        %v1647 = vsel %vm1623, %v1643, 0.0
        %v1648 = vsel %vm1624, %v1639, 0.0
        %v1649 = vsel %vm1625, %v1643, 0.0
        %v1650 = vsel %vm1626, %v1639, 0.0
        %v1651 = vsel %vm1627, %v1643, 0.0
        %v1652 = vsel %vm1628, %v1639, 0.0
        %v1653 = vsel %vm1629, %v1643, 0.0
        %v1654 = vsel %vm1630, %v1639, 0.0
        %v1655 = vsel %vm1631, %v1643, 0.0
        %v1656 = vsel %vm1632, %v1639, 0.0
        %v1657 = vsel %vm1633, %v1643, 0.0
        %v1658 = vsel %vm1634, %v1639, 0.0
        %v1659 = vsel %vm1635, %v1643, 0.0
        %v1660 = vadd.f32 %v1584, %v1644
        %v1661 = vadd.f32 %v1585, %v1645
        %v1662 = vadd.f32 %v1586, %v1646
        %v1663 = vadd.f32 %v1587, %v1647
        %v1664 = vadd.f32 %v1588, %v1648
        %v1665 = vadd.f32 %v1589, %v1649
        %v1666 = vadd.f32 %v1590, %v1650
        %v1667 = vadd.f32 %v1591, %v1651
        %v1668 = vadd.f32 %v1592, %v1652
        %v1669 = vadd.f32 %v1593, %v1653
        %v1670 = vadd.f32 %v1594, %v1654
        %v1671 = vadd.f32 %v1595, %v1655
        %v1672 = vadd.f32 %v1596, %v1656
        %v1673 = vadd.f32 %v1597, %v1657
        %v1674 = vadd.f32 %v1598, %v1658
        %v1675 = vadd.f32 %v1599, %v1659
        %v1678 = vrot.slane %v1530, 1
        %v1679 = vrot.slane %v1531, 1
        %v1682 = vmul.f32 %v1532, %v1678
        %v1683 = vmul.f32 %v1533, %v1679
        %v1684 = vmul.f32 %v1600, 256.0
        %v1685 = vmul.f32 %v1601, 256.0
        %v1686 = vadd.f32 %v1684, %v1546
        %v1687 = vadd.f32 %v1685, %v1547
        %v1688 = vlaneseq
        %v1689 = vshrl.u32 %v1688, 7
        %v1690 = vsub.s32 1, %v1689
        %v1691 = vrot.slane %v1686, %v1690
        %v1692 = vlaneseq
        %v1693 = vshrl.u32 %v1692, 7
        %v1694 = vsub.s32 1, %v1693
        %v1695 = vrot.slane %v1687, %v1694
        %vm1696 = vcmp.eq.f32.partialorder %v1514, %v1691
        %vm1697 = vcmp.eq.f32.partialorder %v1514, %v1695
        %vm1698 = vcmp.eq.f32.partialorder %v1515, %v1691
        %vm1699 = vcmp.eq.f32.partialorder %v1515, %v1695
        %vm1700 = vcmp.eq.f32.partialorder %v1516, %v1691
        %vm1701 = vcmp.eq.f32.partialorder %v1516, %v1695
        %vm1702 = vcmp.eq.f32.partialorder %v1517, %v1691
        %vm1703 = vcmp.eq.f32.partialorder %v1517, %v1695
        %vm1704 = vcmp.eq.f32.partialorder %v1518, %v1691
        %vm1705 = vcmp.eq.f32.partialorder %v1518, %v1695
        %vm1706 = vcmp.eq.f32.partialorder %v1519, %v1691
        %vm1707 = vcmp.eq.f32.partialorder %v1519, %v1695
        %vm1708 = vcmp.eq.f32.partialorder %v1520, %v1691
        %vm1709 = vcmp.eq.f32.partialorder %v1520, %v1695
        %vm1710 = vcmp.eq.f32.partialorder %v1521, %v1691
        %vm1711 = vcmp.eq.f32.partialorder %v1521, %v1695
        %v1712 = vlaneseq
        %v1713 = vshrl.u32 %v1712, 7
        %v1714 = vsub.s32 0, %v1713
        %v1715 = vrot.slane %v1682, %v1714
        %v1716 = vlaneseq
        %v1717 = vshrl.u32 %v1716, 7
        %v1718 = vsub.s32 0, %v1717
        %v1719 = vrot.slane %v1683, %v1718
        %v1720 = vsel %vm1696, %v1715, 0.0
        %v1721 = vsel %vm1697, %v1719, 0.0
        %v1722 = vsel %vm1698, %v1715, 0.0
        %v1723 = vsel %vm1699, %v1719, 0.0
        %v1724 = vsel %vm1700, %v1715, 0.0
        %v1725 = vsel %vm1701, %v1719, 0.0
        %v1726 = vsel %vm1702, %v1715, 0.0
        %v1727 = vsel %vm1703, %v1719, 0.0
        %v1728 = vsel %vm1704, %v1715, 0.0
        %v1729 = vsel %vm1705, %v1719, 0.0
        %v1730 = vsel %vm1706, %v1715, 0.0
        %v1731 = vsel %vm1707, %v1719, 0.0
        %v1732 = vsel %vm1708, %v1715, 0.0
        %v1733 = vsel %vm1709, %v1719, 0.0
        %v1734 = vsel %vm1710, %v1715, 0.0
        %v1735 = vsel %vm1711, %v1719, 0.0
        %v1736 = vadd.f32 %v1660, %v1720
        %v1737 = vadd.f32 %v1661, %v1721
        %v1738 = vadd.f32 %v1662, %v1722
        %v1739 = vadd.f32 %v1663, %v1723
        %v1740 = vadd.f32 %v1664, %v1724
        %v1741 = vadd.f32 %v1665, %v1725
        %v1742 = vadd.f32 %v1666, %v1726
        %v1743 = vadd.f32 %v1667, %v1727
        %v1744 = vadd.f32 %v1668, %v1728
        %v1745 = vadd.f32 %v1669, %v1729
        %v1746 = vadd.f32 %v1670, %v1730
        %v1747 = vadd.f32 %v1671, %v1731
        %v1748 = vadd.f32 %v1672, %v1732
        %v1749 = vadd.f32 %v1673, %v1733
        %v1750 = vadd.f32 %v1674, %v1734
        %v1751 = vadd.f32 %v1675, %v1735
        %v1752 = vmul.f32 %v1530, %v1678
        %v1753 = vmul.f32 %v1531, %v1679
        %v1754 = vadd.f32 %v1684, %v1606
        %v1755 = vadd.f32 %v1685, %v1607
        %v1756 = vlaneseq
        %v1757 = vshrl.u32 %v1756, 7
        %v1758 = vsub.s32 1, %v1757
        %v1759 = vrot.slane %v1754, %v1758
        %v1760 = vlaneseq
        %v1761 = vshrl.u32 %v1760, 7
        %v1762 = vsub.s32 1, %v1761
        %v1763 = vrot.slane %v1755, %v1762
        %vm1764 = vcmp.eq.f32.partialorder %v1514, %v1759
        %vm1765 = vcmp.eq.f32.partialorder %v1514, %v1763
        %vm1766 = vcmp.eq.f32.partialorder %v1515, %v1759
        %vm1767 = vcmp.eq.f32.partialorder %v1515, %v1763
        %vm1768 = vcmp.eq.f32.partialorder %v1516, %v1759
        %vm1769 = vcmp.eq.f32.partialorder %v1516, %v1763
        %vm1770 = vcmp.eq.f32.partialorder %v1517, %v1759
        %vm1771 = vcmp.eq.f32.partialorder %v1517, %v1763
        %vm1772 = vcmp.eq.f32.partialorder %v1518, %v1759
        %vm1773 = vcmp.eq.f32.partialorder %v1518, %v1763
        %vm1774 = vcmp.eq.f32.partialorder %v1519, %v1759
        %vm1775 = vcmp.eq.f32.partialorder %v1519, %v1763
        %vm1776 = vcmp.eq.f32.partialorder %v1520, %v1759
        %vm1777 = vcmp.eq.f32.partialorder %v1520, %v1763
        %vm1778 = vcmp.eq.f32.partialorder %v1521, %v1759
        %vm1779 = vcmp.eq.f32.partialorder %v1521, %v1763
        %v1780 = vlaneseq
        %v1781 = vshrl.u32 %v1780, 7
        %v1782 = vsub.s32 0, %v1781
        %v1783 = vrot.slane %v1752, %v1782
        %v1784 = vlaneseq
        %v1785 = vshrl.u32 %v1784, 7
        %v1786 = vsub.s32 0, %v1785
        %v1787 = vrot.slane %v1753, %v1786
        %v1788 = vsel %vm1764, %v1783, 0.0
        %v1789 = vsel %vm1765, %v1787, 0.0
        %v1790 = vsel %vm1766, %v1783, 0.0
        %v1791 = vsel %vm1767, %v1787, 0.0
        %v1792 = vsel %vm1768, %v1783, 0.0
        %v1793 = vsel %vm1769, %v1787, 0.0
        %v1794 = vsel %vm1770, %v1783, 0.0
        %v1795 = vsel %vm1771, %v1787, 0.0
        %v1796 = vsel %vm1772, %v1783, 0.0
        %v1797 = vsel %vm1773, %v1787, 0.0
        %v1798 = vsel %vm1774, %v1783, 0.0
        %v1799 = vsel %vm1775, %v1787, 0.0
        %v1800 = vsel %vm1776, %v1783, 0.0
        %v1801 = vsel %vm1777, %v1787, 0.0
        %v1802 = vsel %vm1778, %v1783, 0.0
        %v1803 = vsel %vm1779, %v1787, 0.0
        %v1804 = vadd.f32 %v1736, %v1788
        %v1805 = vadd.f32 %v1737, %v1789
        %v1806 = vadd.f32 %v1738, %v1790
        %v1807 = vadd.f32 %v1739, %v1791
        %v1808 = vadd.f32 %v1740, %v1792
        %v1809 = vadd.f32 %v1741, %v1793
        %v1810 = vadd.f32 %v1742, %v1794
        %v1811 = vadd.f32 %v1743, %v1795
        %v1812 = vadd.f32 %v1744, %v1796
        %v1813 = vadd.f32 %v1745, %v1797
        %v1814 = vadd.f32 %v1746, %v1798
        %v1815 = vadd.f32 %v1747, %v1799
        %v1816 = vadd.f32 %v1748, %v1800
        %v1817 = vadd.f32 %v1749, %v1801
        %v1818 = vadd.f32 %v1750, %v1802
        %v1819 = vadd.f32 %v1751, %v1803
        %v1820 = vld [vmem:[%s2] sm:$0xf]
        %v1822 = vsel %vm908, %v1820, 0
        %1824 = vmatprep.subr.mxu0 0.0
        %1825 = vmatpush1.msra.mxu0 0.0
        %1826 = vmatprep.subr.mxu0 0.0
        %1827 = vmatpush1.msra.mxu0 0.0
        %1828 = vmatprep.subr.mxu0 0.0
        %1829 = vmatpush1.msra.mxu0 0.0
        %1830 = vmatprep.subr.mxu0 0.0
        %1831 = vmatpush1.msra.mxu0 0.0
        %1832 = vmatprep.subr.mxu0 0.0
        %1833 = vmatpush1.msra.mxu0 0.0
        %1834 = vmatprep.subr.mxu0 0.0
        %1835 = vmatpush1.msra.mxu0 0.0
        %1836 = vmatprep.subr.mxu0 0.0
        %1837 = vmatpush1.msra.mxu0 0.0
        %1838 = vmatprep.subr.mxu0 0.0
        %1839 = vmatpush1.msra.mxu0 0.0
        %1840 = vmatprep.subr.mxu0 %v1819
        %1841 = vmatpush1.msra.mxu0 %v1818
        %1842 = vmatprep.subr.mxu0 %v1817
        %1843 = vmatpush1.msra.mxu0 %v1816
        %1844 = vmatprep.subr.mxu0 %v1815
        %1845 = vmatpush1.msra.mxu0 %v1814
        %1846 = vmatprep.subr.mxu0 %v1813
        %1847 = vmatpush1.msra.mxu0 %v1812
        %1848 = vmatprep.subr.mxu0 %v1811
        %1849 = vmatpush1.msra.mxu0 %v1810
        %1850 = vmatprep.subr.mxu0 %v1809
        %1851 = vmatpush1.msra.mxu0 %v1808
        %1852 = vmatprep.subr.mxu0 %v1807
        %1853 = vmatpush1.msra.mxu0 %v1806
        %1854 = vmatprep.subr.mxu0 %v1805
        %1855 = vmatpush1.msra.mxu0 %v1804
        %1856 = vmatprep.subr.mxu0 0.0
        %1857 = vmatpush2.msra.mxu0 0.0
        %1858 = vmatprep.subr.mxu0 0.0
        %1859 = vmatpush2.msra.mxu0 0.0
        %1860 = vmatprep.subr.mxu0 0.0
        %1861 = vmatpush2.msra.mxu0 0.0
        %1862 = vmatprep.subr.mxu0 0.0
        %1863 = vmatpush2.msra.mxu0 0.0
        %1864 = vmatprep.subr.mxu0 0.0
        %1865 = vmatpush2.msra.mxu0 0.0
        %1866 = vmatprep.subr.mxu0 0.0
        %1867 = vmatpush2.msra.mxu0 0.0
        %1868 = vmatprep.subr.mxu0 0.0
        %1869 = vmatpush2.msra.mxu0 0.0
        %1870 = vmatprep.subr.mxu0 0.0
        %1871 = vmatpush2.msra.mxu0 0.0
        %1872 = vmatprep.subr.mxu0 0.0
        %1873 = vmatpush2.msra.mxu0 0.0
        %1874 = vmatprep.subr.mxu0 0.0
        %1875 = vmatpush2.msra.mxu0 0.0
        %1876 = vmatprep.subr.mxu0 0.0
        %1877 = vmatpush2.msra.mxu0 0.0
        %1878 = vmatprep.subr.mxu0 0.0
        %1879 = vmatpush2.msra.mxu0 0.0
        %1880 = vmatprep.subr.mxu0 0.0
        %1881 = vmatpush2.msra.mxu0 0.0
        %1882 = vmatprep.subr.mxu0 0.0
        %1883 = vmatpush2.msra.mxu0 0.0
        %1884 = vmatprep.subr.mxu0 0.0
        %1885 = vmatpush2.msra.mxu0 0.0
        %1886 = vmatprep.subr.mxu0 0.0
        %1887 = vmatpush2.msra.mxu0 0.0
        %1888 = vmatprep.mubr.f32.mxu0 0.0
        %1889 = vmatmul.mubr.f32.gmra.mxu0 %v1822
        %v1890 = vpop.f32.mrf.mxu0
        %v1891 = vadd.f32 0.0, %v1890
        %v1892 = vpop.f32.mrf.mxu0
        %v1893 = vadd.f32 0.0, %v1892
        %1894 = vdwg.mxu0
        %v1897 = vrot.slane %v1891, 4
        %v1898 = vrot.slane %v1893, 4
        %v1901 = vsel %vm633, %v1271, %v1897
        %v1902 = vsel %vm633, %v1272, %v1898
        %v1903 = vadd.f32 %v624, -1.0
        %v1904 = vadd.f32 %v625, -1.0
        %vm1905 = vcmp.ge.f32.partialorder %v1903, 0.0
        %vm1906 = vcmp.ge.f32.partialorder %v1904, 0.0
        %vm1907 = vcmp.le.f32.partialorder %v1903, 15.0
        %vm1908 = vcmp.le.f32.partialorder %v1904, 15.0
        %vm1909 = vmand %vm1905, %vm1907
        %vm1910 = vmand %vm1906, %vm1908
        %v1911 = vadd.f32 %v628, -1.0
        %v1912 = vadd.f32 %v629, -1.0
        %vm1913 = vcmp.ge.f32.partialorder %v1911, 0.0
        %vm1914 = vcmp.ge.f32.partialorder %v1912, 0.0
        %vm1915 = vmand %vm1909, %vm1913
        %vm1916 = vmand %vm1910, %vm1914
        %vm1917 = vcmp.le.f32.partialorder %v1911, 15.0
        %vm1918 = vcmp.le.f32.partialorder %v1912, 15.0
        %vm1919 = vmand %vm1915, %vm1917
        %vm1920 = vmand %vm1916, %vm1918
        %v1921 = vsel %vm1919, 1, 0
        %v1922 = vsel %vm1920, 1, 0
        %v1923 = vcvt.s32.f32 %v1921
        %v1924 = vcvt.s32.f32 %v1922
        %v1925 = vadd.f32 %v628, 0.0
        %v1926 = vadd.f32 %v629, 0.0
        %vm1927 = vcmp.ge.f32.partialorder %v1925, 0.0
        %vm1928 = vcmp.ge.f32.partialorder %v1926, 0.0
        %vm1929 = vmand %vm1909, %vm1927
        %vm1930 = vmand %vm1910, %vm1928
        %vm1931 = vcmp.le.f32.partialorder %v1925, 15.0
        %vm1932 = vcmp.le.f32.partialorder %v1926, 15.0
        %vm1933 = vmand %vm1929, %vm1931
        %vm1934 = vmand %vm1930, %vm1932
        %v1935 = vsel %vm1933, 1, 0
        %v1936 = vsel %vm1934, 1, 0
        %v1937 = vcvt.s32.f32 %v1935
        %v1938 = vcvt.s32.f32 %v1936
        %v1939 = vadd.f32 %v628, 1.0
        %v1940 = vadd.f32 %v629, 1.0
        %vm1941 = vcmp.ge.f32.partialorder %v1939, 0.0
        %vm1942 = vcmp.ge.f32.partialorder %v1940, 0.0
        %vm1943 = vmand %vm1909, %vm1941
        %vm1944 = vmand %vm1910, %vm1942
        %vm1945 = vcmp.le.f32.partialorder %v1939, 15.0
        %vm1946 = vcmp.le.f32.partialorder %v1940, 15.0
        %vm1947 = vmand %vm1943, %vm1945
        %vm1948 = vmand %vm1944, %vm1946
        %v1949 = vsel %vm1947, 1, 0
        %v1950 = vsel %vm1948, 1, 0
        %v1951 = vcvt.s32.f32 %v1949
        %v1952 = vcvt.s32.f32 %v1950
        %v1953 = vadd.f32 %v624, 0.0
        %v1954 = vadd.f32 %v625, 0.0
        %vm1955 = vcmp.ge.f32.partialorder %v1953, 0.0
        %vm1956 = vcmp.ge.f32.partialorder %v1954, 0.0
        %vm1957 = vcmp.le.f32.partialorder %v1953, 15.0
        %vm1958 = vcmp.le.f32.partialorder %v1954, 15.0
        %vm1959 = vmand %vm1955, %vm1957
        %vm1960 = vmand %vm1956, %vm1958
        %vm1961 = vmand %vm1959, %vm1913
        %vm1962 = vmand %vm1960, %vm1914
        %vm1963 = vmand %vm1961, %vm1917
        %vm1964 = vmand %vm1962, %vm1918
        %v1965 = vsel %vm1963, 1, 0
        %v1966 = vsel %vm1964, 1, 0
        %v1967 = vcvt.s32.f32 %v1965
        %v1968 = vcvt.s32.f32 %v1966
        %vm1969 = vmand %vm1959, %vm1941
        %vm1970 = vmand %vm1960, %vm1942
        %vm1971 = vmand %vm1969, %vm1945
        %vm1972 = vmand %vm1970, %vm1946
        %v1973 = vsel %vm1971, 1, 0
        %v1974 = vsel %vm1972, 1, 0
        %v1975 = vcvt.s32.f32 %v1973
        %v1976 = vcvt.s32.f32 %v1974
        %v1977 = vadd.f32 %v624, 1.0
        %v1978 = vadd.f32 %v625, 1.0
        %vm1979 = vcmp.ge.f32.partialorder %v1977, 0.0
        %vm1980 = vcmp.ge.f32.partialorder %v1978, 0.0
        %vm1981 = vcmp.le.f32.partialorder %v1977, 15.0
        %vm1982 = vcmp.le.f32.partialorder %v1978, 15.0
        %vm1983 = vmand %vm1979, %vm1981
        %vm1984 = vmand %vm1980, %vm1982
        %vm1985 = vmand %vm1983, %vm1913
        %vm1986 = vmand %vm1984, %vm1914
        %vm1987 = vmand %vm1985, %vm1917
        %vm1988 = vmand %vm1986, %vm1918
        %v1989 = vsel %vm1987, 1, 0
        %v1990 = vsel %vm1988, 1, 0
        %v1991 = vcvt.s32.f32 %v1989
        %v1992 = vcvt.s32.f32 %v1990
        %vm1993 = vmand %vm1983, %vm1927
        %vm1994 = vmand %vm1984, %vm1928
        %vm1995 = vmand %vm1993, %vm1931
        %vm1996 = vmand %vm1994, %vm1932
        %v1997 = vsel %vm1995, 1, 0
        %v1998 = vsel %vm1996, 1, 0
        %v1999 = vcvt.s32.f32 %v1997
        %v2000 = vcvt.s32.f32 %v1998
        %vm2001 = vmand %vm1983, %vm1941
        %vm2002 = vmand %vm1984, %vm1942
        %vm2003 = vmand %vm2001, %vm1945
        %vm2004 = vmand %vm2002, %vm1946
        %v2005 = vsel %vm2003, 1, 0
        %v2006 = vsel %vm2004, 1, 0
        %v2007 = vcvt.s32.f32 %v2005
        %v2008 = vcvt.s32.f32 %v2006
        %2009 = vrot.lane.b32.xlu0 %v1901, 17
        %v2010 = vpop.permute.xlu0 %2009
        %2011 = vrot.lane.b32.xlu0 %v1902, 17
        %v2012 = vpop.permute.xlu0 %2011
        %vm2013 = vcmp.lt.s32.totalorder %v616, 17
        %v2014 = vsel %vm2013, %v2010, %v2012
        %v2015 = vsel %vm2013, %v2012, %v2010
        %v2016 = vmul.f32 %v2015, %v1923
        %v2017 = vmul.f32 %v2014, %v1924
        %2018 = vrot.lane.b32.xlu0 %v1901, 16
        %v2019 = vpop.permute.xlu0 %2018
        %2020 = vrot.lane.b32.xlu0 %v1902, 16
        %v2021 = vpop.permute.xlu0 %2020
        %vm2022 = vcmp.lt.s32.totalorder %v616, 16
        %v2023 = vsel %vm2022, %v2019, %v2021
        %v2024 = vsel %vm2022, %v2021, %v2019
        %v2025 = vmul.f32 %v2024, %v1937
        %v2026 = vmul.f32 %v2023, %v1938
        %2027 = vrot.lane.b32.xlu0 %v1901, 15
        %v2028 = vpop.permute.xlu0 %2027
        %2029 = vrot.lane.b32.xlu0 %v1902, 15
        %v2030 = vpop.permute.xlu0 %2029
        %vm2031 = vcmp.lt.s32.totalorder %v616, 15
        %v2032 = vsel %vm2031, %v2028, %v2030
        %v2033 = vsel %vm2031, %v2030, %v2028
        %v2034 = vmul.f32 %v2033, %v1951
        %v2035 = vmul.f32 %v2032, %v1952
        %2036 = vrot.lane.b32.xlu0 %v1901, 1
        %v2037 = vpop.permute.xlu0 %2036
        %2038 = vrot.lane.b32.xlu0 %v1902, 1
        %v2039 = vpop.permute.xlu0 %2038
        %vm2040 = vcmp.lt.s32.totalorder %v616, 1
        %v2041 = vsel %vm2040, %v2037, %v2039
        %v2042 = vsel %vm2040, %v2039, %v2037
        %v2043 = vmul.f32 %v2042, %v1967
        %v2044 = vmul.f32 %v2041, %v1968
        %2045 = vrot.lane.b32.xlu0 %v1901, 127
        %v2046 = vpop.permute.xlu0 %2045
        %2047 = vrot.lane.b32.xlu0 %v1902, 127
        %v2048 = vpop.permute.xlu0 %2047
        %vm2049 = vcmp.lt.s32.totalorder %v616, 127
        %v2050 = vsel %vm2049, %v2046, %v2048
        %v2051 = vsel %vm2049, %v2048, %v2046
        %v2052 = vmul.f32 %v2050, %v1975
        %v2053 = vmul.f32 %v2051, %v1976
        %2054 = vrot.lane.b32.xlu0 %v1901, 113
        %v2055 = vpop.permute.xlu0 %2054
        %2056 = vrot.lane.b32.xlu0 %v1902, 113
        %v2057 = vpop.permute.xlu0 %2056
        %vm2058 = vcmp.lt.s32.totalorder %v616, 113
        %v2059 = vsel %vm2058, %v2055, %v2057
        %v2060 = vsel %vm2058, %v2057, %v2055
        %v2061 = vmul.f32 %v2059, %v1991
        %v2062 = vmul.f32 %v2060, %v1992
        %2063 = vrot.lane.b32.xlu0 %v1901, 112
        %v2064 = vpop.permute.xlu0 %2063
        %2065 = vrot.lane.b32.xlu0 %v1902, 112
        %v2066 = vpop.permute.xlu0 %2065
        %vm2067 = vcmp.lt.s32.totalorder %v616, 112
        %v2068 = vsel %vm2067, %v2064, %v2066
        %v2069 = vsel %vm2067, %v2066, %v2064
        %v2070 = vmul.f32 %v2068, %v1999
        %v2071 = vmul.f32 %v2069, %v2000
        %2072 = vrot.lane.b32.xlu0 %v1901, 111
        %v2073 = vpop.permute.xlu0 %2072
        %2074 = vrot.lane.b32.xlu0 %v1902, 111
        %v2075 = vpop.permute.xlu0 %2074
        %vm2076 = vcmp.lt.s32.totalorder %v616, 111
        %v2077 = vsel %vm2076, %v2073, %v2075
        %v2078 = vsel %vm2076, %v2075, %v2073
        %v2079 = vmul.f32 %v2077, %v2007
        %v2080 = vmul.f32 %v2078, %v2008
        %v2081 = vld [vmem:[%s11] sm:$0xff]
        %v2082 = vld [vmem:[%s12] sm:$0xff]
        %2084 = vset.pattern.permute.xlu0 0
        %2085 = vperm.xlu0 %2084, %v2082
        %v2086 = vpop.permute.xlu0 %2085
        %vm2088 = vcmask 588800
        %v2090 = vsel %vm2088, %v2081, 0
        %2092 = vmatprep.subr.mxu0 0.0
        %2093 = vmatpush1.msra.mxu0 0.0
        %2094 = vmatprep.subr.mxu0 0.0
        %2095 = vmatpush1.msra.mxu0 0.0
        %2096 = vmatprep.subr.mxu0 0.0
        %2097 = vmatpush1.msra.mxu0 0.0
        %2098 = vmatprep.subr.mxu0 0.0
        %2099 = vmatpush1.msra.mxu0 0.0
        %2100 = vmatprep.subr.mxu0 0.0
        %2101 = vmatpush1.msra.mxu0 0.0
        %2102 = vmatprep.subr.mxu0 0.0
        %2103 = vmatpush1.msra.mxu0 0.0
        %2104 = vmatprep.subr.mxu0 0.0
        %2105 = vmatpush1.msra.mxu0 0.0
        %2106 = vmatprep.subr.mxu0 %v2080
        %2107 = vmatpush1.msra.mxu0 %v2079
        %2108 = vmatprep.subr.mxu0 %v2071
        %2109 = vmatpush1.msra.mxu0 %v2070
        %2110 = vmatprep.subr.mxu0 %v2062
        %2111 = vmatpush1.msra.mxu0 %v2061
        %2112 = vmatprep.subr.mxu0 %v2053
        %2113 = vmatpush1.msra.mxu0 %v2052
        %2114 = vmatprep.subr.mxu0 %v1902
        %2115 = vmatpush1.msra.mxu0 %v1901
        %2116 = vmatprep.subr.mxu0 %v2044
        %2117 = vmatpush1.msra.mxu0 %v2043
        %2118 = vmatprep.subr.mxu0 %v2035
        %2119 = vmatpush1.msra.mxu0 %v2034
        %2120 = vmatprep.subr.mxu0 %v2026
        %2121 = vmatpush1.msra.mxu0 %v2025
        %2122 = vmatprep.subr.mxu0 %v2017
        %2123 = vmatpush1.msra.mxu0 %v2016
        %2124 = vmatprep.subr.mxu0 0.0
        %2125 = vmatpush2.msra.mxu0 0.0
        %2126 = vmatprep.subr.mxu0 0.0
        %2127 = vmatpush2.msra.mxu0 0.0
        %2128 = vmatprep.subr.mxu0 0.0
        %2129 = vmatpush2.msra.mxu0 0.0
        %2130 = vmatprep.subr.mxu0 0.0
        %2131 = vmatpush2.msra.mxu0 0.0
        %2132 = vmatprep.subr.mxu0 0.0
        %2133 = vmatpush2.msra.mxu0 0.0
        %2134 = vmatprep.subr.mxu0 0.0
        %2135 = vmatpush2.msra.mxu0 0.0
        %2136 = vmatprep.subr.mxu0 0.0
        %2137 = vmatpush2.msra.mxu0 0.0
        %2138 = vmatprep.subr.mxu0 0.0
        %2139 = vmatpush2.msra.mxu0 0.0
        %2140 = vmatprep.subr.mxu0 0.0
        %2141 = vmatpush2.msra.mxu0 0.0
        %2142 = vmatprep.subr.mxu0 0.0
        %2143 = vmatpush2.msra.mxu0 0.0
        %2144 = vmatprep.subr.mxu0 0.0
        %2145 = vmatpush2.msra.mxu0 0.0
        %2146 = vmatprep.subr.mxu0 0.0
        %2147 = vmatpush2.msra.mxu0 0.0
        %2148 = vmatprep.subr.mxu0 0.0
        %2149 = vmatpush2.msra.mxu0 0.0
        %2150 = vmatprep.subr.mxu0 0.0
        %2151 = vmatpush2.msra.mxu0 0.0
        %2152 = vmatprep.subr.mxu0 0.0
        %2153 = vmatpush2.msra.mxu0 0.0
        %2154 = vmatprep.subr.mxu0 0.0
        %2155 = vmatpush2.msra.mxu0 0.0
        %2156 = vmatprep.mubr.f32.mxu0 0.0
        %2157 = vmatmul.mubr.f32.gmra.mxu0 %v2090
        %v2158 = vpop.f32.mrf.mxu0
        %v2159 = vadd.f32 %v2086, %v2158
        %v2160 = vpop.f32.mrf.mxu0
        %v2161 = vadd.f32 %v2086, %v2160
        %2162 = vdwg.mxu0
        %v2163 = vmax.f32 %v2159, 0.0
        %v2164 = vmax.f32 %v2161, 0.0
        %2165 = vrot.lane.b32.xlu0 %v2163, 17
        %v2166 = vpop.permute.xlu0 %2165
        %2167 = vrot.lane.b32.xlu0 %v2164, 17
        %v2168 = vpop.permute.xlu0 %2167
        %v2169 = vsel %vm2013, %v2166, %v2168
        %v2170 = vsel %vm2013, %v2168, %v2166
        %v2171 = vmul.f32 %v2170, %v1923
        %v2172 = vmul.f32 %v2169, %v1924
        %2173 = vrot.lane.b32.xlu0 %v2163, 16
        %v2174 = vpop.permute.xlu0 %2173
        %2175 = vrot.lane.b32.xlu0 %v2164, 16
        %v2176 = vpop.permute.xlu0 %2175
        %v2177 = vsel %vm2022, %v2174, %v2176
        %v2178 = vsel %vm2022, %v2176, %v2174
        %v2179 = vmul.f32 %v2178, %v1937
        %v2180 = vmul.f32 %v2177, %v1938
        %2181 = vrot.lane.b32.xlu0 %v2163, 15
        %v2182 = vpop.permute.xlu0 %2181
        %2183 = vrot.lane.b32.xlu0 %v2164, 15
        %v2184 = vpop.permute.xlu0 %2183
        %v2185 = vsel %vm2031, %v2182, %v2184
        %v2186 = vsel %vm2031, %v2184, %v2182
        %v2187 = vmul.f32 %v2186, %v1951
        %v2188 = vmul.f32 %v2185, %v1952
        %2189 = vrot.lane.b32.xlu0 %v2163, 1
        %v2190 = vpop.permute.xlu0 %2189
        %2191 = vrot.lane.b32.xlu0 %v2164, 1
        %v2192 = vpop.permute.xlu0 %2191
        %v2193 = vsel %vm2040, %v2190, %v2192
        %v2194 = vsel %vm2040, %v2192, %v2190
        %v2195 = vmul.f32 %v2194, %v1967
        %v2196 = vmul.f32 %v2193, %v1968
        %2197 = vrot.lane.b32.xlu0 %v2163, 127
        %v2198 = vpop.permute.xlu0 %2197
        %2199 = vrot.lane.b32.xlu0 %v2164, 127
        %v2200 = vpop.permute.xlu0 %2199
        %v2201 = vsel %vm2049, %v2198, %v2200
        %v2202 = vsel %vm2049, %v2200, %v2198
        %v2203 = vmul.f32 %v2201, %v1975
        %v2204 = vmul.f32 %v2202, %v1976
        %2205 = vrot.lane.b32.xlu0 %v2163, 113
        %v2206 = vpop.permute.xlu0 %2205
        %2207 = vrot.lane.b32.xlu0 %v2164, 113
        %v2208 = vpop.permute.xlu0 %2207
        %v2209 = vsel %vm2058, %v2206, %v2208
        %v2210 = vsel %vm2058, %v2208, %v2206
        %v2211 = vmul.f32 %v2209, %v1991
        %v2212 = vmul.f32 %v2210, %v1992
        %2213 = vrot.lane.b32.xlu0 %v2163, 112
        %v2214 = vpop.permute.xlu0 %2213
        %2215 = vrot.lane.b32.xlu0 %v2164, 112
        %v2216 = vpop.permute.xlu0 %2215
        %v2217 = vsel %vm2067, %v2214, %v2216
        %v2218 = vsel %vm2067, %v2216, %v2214
        %v2219 = vmul.f32 %v2217, %v1999
        %v2220 = vmul.f32 %v2218, %v2000
        %2221 = vrot.lane.b32.xlu0 %v2163, 111
        %v2222 = vpop.permute.xlu0 %2221
        %2223 = vrot.lane.b32.xlu0 %v2164, 111
        %v2224 = vpop.permute.xlu0 %2223
        %v2225 = vsel %vm2076, %v2222, %v2224
        %v2226 = vsel %vm2076, %v2224, %v2222
        %v2227 = vmul.f32 %v2225, %v2007
        %v2228 = vmul.f32 %v2226, %v2008
        %v2229 = vld [vmem:[%s13] sm:$0xff]
        %v2230 = vld [vmem:[%s14] sm:$0xff]
        %2232 = vset.pattern.permute.xlu0 0
        %2233 = vperm.xlu0 %2232, %v2230
        %v2234 = vpop.permute.xlu0 %2233
        %v2237 = vsel %vm2088, %v2229, 0
        %2239 = vmatprep.subr.mxu0 0.0
        %2240 = vmatpush1.msra.mxu0 0.0
        %2241 = vmatprep.subr.mxu0 0.0
        %2242 = vmatpush1.msra.mxu0 0.0
        %2243 = vmatprep.subr.mxu0 0.0
        %2244 = vmatpush1.msra.mxu0 0.0
        %2245 = vmatprep.subr.mxu0 0.0
        %2246 = vmatpush1.msra.mxu0 0.0
        %2247 = vmatprep.subr.mxu0 0.0
        %2248 = vmatpush1.msra.mxu0 0.0
        %2249 = vmatprep.subr.mxu0 0.0
        %2250 = vmatpush1.msra.mxu0 0.0
        %2251 = vmatprep.subr.mxu0 0.0
        %2252 = vmatpush1.msra.mxu0 0.0
        %2253 = vmatprep.subr.mxu0 %v2228
        %2254 = vmatpush1.msra.mxu0 %v2227
        %2255 = vmatprep.subr.mxu0 %v2220
        %2256 = vmatpush1.msra.mxu0 %v2219
        %2257 = vmatprep.subr.mxu0 %v2212
        %2258 = vmatpush1.msra.mxu0 %v2211
        %2259 = vmatprep.subr.mxu0 %v2204
        %2260 = vmatpush1.msra.mxu0 %v2203
        %2261 = vmatprep.subr.mxu0 %v2164
        %2262 = vmatpush1.msra.mxu0 %v2163
        %2263 = vmatprep.subr.mxu0 %v2196
        %2264 = vmatpush1.msra.mxu0 %v2195
        %2265 = vmatprep.subr.mxu0 %v2188
        %2266 = vmatpush1.msra.mxu0 %v2187
        %2267 = vmatprep.subr.mxu0 %v2180
        %2268 = vmatpush1.msra.mxu0 %v2179
        %2269 = vmatprep.subr.mxu0 %v2172
        %2270 = vmatpush1.msra.mxu0 %v2171
        %2271 = vmatprep.subr.mxu0 0.0
        %2272 = vmatpush2.msra.mxu0 0.0
        %2273 = vmatprep.subr.mxu0 0.0
        %2274 = vmatpush2.msra.mxu0 0.0
        %2275 = vmatprep.subr.mxu0 0.0
        %2276 = vmatpush2.msra.mxu0 0.0
        %2277 = vmatprep.subr.mxu0 0.0
        %2278 = vmatpush2.msra.mxu0 0.0
        %2279 = vmatprep.subr.mxu0 0.0
        %2280 = vmatpush2.msra.mxu0 0.0
        %2281 = vmatprep.subr.mxu0 0.0
        %2282 = vmatpush2.msra.mxu0 0.0
        %2283 = vmatprep.subr.mxu0 0.0
        %2284 = vmatpush2.msra.mxu0 0.0
        %2285 = vmatprep.subr.mxu0 0.0
        %2286 = vmatpush2.msra.mxu0 0.0
        %2287 = vmatprep.subr.mxu0 0.0
        %2288 = vmatpush2.msra.mxu0 0.0
        %2289 = vmatprep.subr.mxu0 0.0
        %2290 = vmatpush2.msra.mxu0 0.0
        %2291 = vmatprep.subr.mxu0 0.0
        %2292 = vmatpush2.msra.mxu0 0.0
        %2293 = vmatprep.subr.mxu0 0.0
        %2294 = vmatpush2.msra.mxu0 0.0
        %2295 = vmatprep.subr.mxu0 0.0
        %2296 = vmatpush2.msra.mxu0 0.0
        %2297 = vmatprep.subr.mxu0 0.0
        %2298 = vmatpush2.msra.mxu0 0.0
        %2299 = vmatprep.subr.mxu0 0.0
        %2300 = vmatpush2.msra.mxu0 0.0
        %2301 = vmatprep.subr.mxu0 0.0
        %2302 = vmatpush2.msra.mxu0 0.0
        %2303 = vmatprep.mubr.f32.mxu0 0.0
        %2304 = vmatmul.mubr.f32.gmra.mxu0 %v2237
        %v2305 = vpop.f32.mrf.mxu0
        %v2306 = vadd.f32 %v2234, %v2305
        %v2307 = vpop.f32.mrf.mxu0
        %v2308 = vadd.f32 %v2234, %v2307
        %2309 = vdwg.mxu0
        %v2310 = vadd.f32 %v2306, %v1901
        %v2311 = vadd.f32 %v2308, %v1902
        %v2312 = vmax.f32 %v2310, 0.0
        %v2313 = vmax.f32 %v2311, 0.0
        %v2314 = vld [vmem:[%s15] sm:$0xf]
        %vm2315 = vcmask 64512
        %v2317 = vsel %vm2315, %v2314, 0
        %2319 = vmatprep.subr.mxu0 0.0
        %2320 = vmatpush1.msra.mxu0 0.0
        %2321 = vmatprep.subr.mxu0 0.0
        %2322 = vmatpush1.msra.mxu0 0.0
        %2323 = vmatprep.subr.mxu0 0.0
        %2324 = vmatpush1.msra.mxu0 0.0
        %2325 = vmatprep.subr.mxu0 0.0
        %2326 = vmatpush1.msra.mxu0 0.0
        %2327 = vmatprep.subr.mxu0 0.0
        %2328 = vmatpush1.msra.mxu0 0.0
        %2329 = vmatprep.subr.mxu0 0.0
        %2330 = vmatpush1.msra.mxu0 0.0
        %2331 = vmatprep.subr.mxu0 0.0
        %2332 = vmatpush1.msra.mxu0 0.0
        %2333 = vmatprep.subr.mxu0 0.0
        %2334 = vmatpush1.msra.mxu0 0.0
        %2335 = vmatprep.subr.mxu0 0.0
        %2336 = vmatpush1.msra.mxu0 0.0
        %2337 = vmatprep.subr.mxu0 0.0
        %2338 = vmatpush1.msra.mxu0 0.0
        %2339 = vmatprep.subr.mxu0 0.0
        %2340 = vmatpush1.msra.mxu0 0.0
        %2341 = vmatprep.subr.mxu0 0.0
        %2342 = vmatpush1.msra.mxu0 0.0
        %2343 = vmatprep.subr.mxu0 0.0
        %2344 = vmatpush1.msra.mxu0 0.0
        %2345 = vmatprep.subr.mxu0 0.0
        %2346 = vmatpush1.msra.mxu0 0.0
        %2347 = vmatprep.subr.mxu0 0.0
        %2348 = vmatpush1.msra.mxu0 0.0
        %2349 = vmatprep.subr.mxu0 %v2313
        %2350 = vmatpush1.msra.mxu0 %v2312
        %2351 = vmatprep.subr.mxu0 0.0
        %2352 = vmatpush2.msra.mxu0 0.0
        %2353 = vmatprep.subr.mxu0 0.0
        %2354 = vmatpush2.msra.mxu0 0.0
        %2355 = vmatprep.subr.mxu0 0.0
        %2356 = vmatpush2.msra.mxu0 0.0
        %2357 = vmatprep.subr.mxu0 0.0
        %2358 = vmatpush2.msra.mxu0 0.0
        %2359 = vmatprep.subr.mxu0 0.0
        %2360 = vmatpush2.msra.mxu0 0.0
        %2361 = vmatprep.subr.mxu0 0.0
        %2362 = vmatpush2.msra.mxu0 0.0
        %2363 = vmatprep.subr.mxu0 0.0
        %2364 = vmatpush2.msra.mxu0 0.0
        %2365 = vmatprep.subr.mxu0 0.0
        %2366 = vmatpush2.msra.mxu0 0.0
        %2367 = vmatprep.subr.mxu0 0.0
        %2368 = vmatpush2.msra.mxu0 0.0
        %2369 = vmatprep.subr.mxu0 0.0
        %2370 = vmatpush2.msra.mxu0 0.0
        %2371 = vmatprep.subr.mxu0 0.0
        %2372 = vmatpush2.msra.mxu0 0.0
        %2373 = vmatprep.subr.mxu0 0.0
        %2374 = vmatpush2.msra.mxu0 0.0
        %2375 = vmatprep.subr.mxu0 0.0
        %2376 = vmatpush2.msra.mxu0 0.0
        %2377 = vmatprep.subr.mxu0 0.0
        %2378 = vmatpush2.msra.mxu0 0.0
        %2379 = vmatprep.subr.mxu0 0.0
        %2380 = vmatpush2.msra.mxu0 0.0
        %2381 = vmatprep.subr.mxu0 0.0
        %2382 = vmatpush2.msra.mxu0 0.0
        %2383 = vmatprep.mubr.f32.mxu0 0.0
        %2384 = vmatmul.mubr.f32.gmra.mxu0 %v2317
        %v2385 = vpop.f32.mrf.mxu0
        %v2386 = vadd.f32 0.0, %v2385
        %v2387 = vpop.f32.mrf.mxu0
        %v2388 = vadd.f32 0.0, %v2387
        %2389 = vdwg.mxu0
        %v2390 = vsub.f32 %v2386, %v614
        %v2391 = vsub.f32 %v2388, %v631
        %v2392 = vmul.f32 %v2390, %v2390
        %v2393 = vmul.f32 %v2391, %v2391
        %v2394 = vsel %vm633, %v2392, 0.0
        %v2395 = vrot.slane %v2394, 4
        %v2396 = vadd.f32 %v2394, %v2395
        %v2397 = vrot.slane %v2396, 2
        %v2398 = vadd.f32 %v2396, %v2397
        %v2399 = vrot.slane %v2398, 1
        %v2400 = vadd.f32 %v2398, %v2399
        %v2401 = vsel %vm633, %v2393, 0.0
        %v2402 = vrot.slane %v2401, 4
        %v2403 = vadd.f32 %v2401, %v2402
        %v2404 = vrot.slane %v2403, 2
        %v2405 = vadd.f32 %v2403, %v2404
        %v2406 = vrot.slane %v2405, 1
        %v2407 = vadd.f32 %v2405, %v2406
        %v2408 = vrcp.pop 4.0
        %v2409 = vmul.f32 %v2400, %v2408
        %v2410 = vmul.f32 %v2407, %v2408
        %v2411 = vmul.f32 %v2409, 5.0
        %v2412 = vmul.f32 %v2410, 5.0
        %v2413 = vmax.f32 %v2411, 0.0
        %v2414 = vmax.f32 %v2412, 0.0
        %v2415 = vmin.f32 %v2413, 1.0
        %v2416 = vmin.f32 %v2414, 1.0
        %v2417 = vround.ne.pseudo %v2415
        %v2418 = vround.ne.pseudo %v2416
        %v2419 = vsub.f32 1.0, %v2417
        %v2420 = vsub.f32 1.0, %v2418
        %v2421 = vmul.f32 %v2386, %v614
        %v2422 = vmul.f32 %v2388, %v631
        %v2423 = vsel %vm633, %v2421, 0.0
        %v2424 = vrot.slane %v2423, 4
        %v2425 = vadd.f32 %v2423, %v2424
        %v2426 = vrot.slane %v2425, 2
        %v2427 = vadd.f32 %v2425, %v2426
        %v2428 = vrot.slane %v2427, 1
        %v2429 = vadd.f32 %v2427, %v2428
        %v2430 = vsel %vm633, %v2422, 0.0
        %v2431 = vrot.slane %v2430, 4
        %v2432 = vadd.f32 %v2430, %v2431
        %v2433 = vrot.slane %v2432, 2
        %v2434 = vadd.f32 %v2432, %v2433
        %v2435 = vrot.slane %v2434, 1
        %v2436 = vadd.f32 %v2434, %v2435
        %v2437 = vmul.f32 %v2386, %v2386
        %v2438 = vmul.f32 %v2388, %v2388
        %v2439 = vsel %vm633, %v2437, 0.0
        %v2440 = vrot.slane %v2439, 4
        %v2441 = vadd.f32 %v2439, %v2440
        %v2442 = vrot.slane %v2441, 2
        %v2443 = vadd.f32 %v2441, %v2442
        %v2444 = vrot.slane %v2443, 1
        %v2445 = vadd.f32 %v2443, %v2444
        %v2446 = vsel %vm633, %v2438, 0.0
        %v2447 = vrot.slane %v2446, 4
        %v2448 = vadd.f32 %v2446, %v2447
        %v2449 = vrot.slane %v2448, 2
        %v2450 = vadd.f32 %v2448, %v2449
        %v2451 = vrot.slane %v2450, 1
        %v2452 = vadd.f32 %v2450, %v2451
        %v2453 = vmul.f32 %v614, %v614
        %v2455 = vcombine.high %v2453, %v2453
        %v2457 = vsel %vm633, %v2453, 0.0
        %v2458 = vrot.slane %v2457, 4
        %v2459 = vadd.f32 %v2457, %v2458
        %v2460 = vrot.slane %v2459, 2
        %v2461 = vadd.f32 %v2459, %v2460
        %v2462 = vrot.slane %v2461, 1
        %v2463 = vadd.f32 %v2461, %v2462
        %v2464 = vsel %vm633, %v2455, 0.0
        %v2465 = vrot.slane %v2464, 4
        %v2466 = vadd.f32 %v2464, %v2465
        %v2467 = vrot.slane %v2466, 2
        %v2468 = vadd.f32 %v2466, %v2467
        %v2469 = vrot.slane %v2468, 1
        %v2470 = vadd.f32 %v2468, %v2469
        %v2471 = vmul.f32 %v2445, %v2463
        %v2472 = vmul.f32 %v2452, %v2470
        %v2473 = vmax.f32 %v2471, 1e-16
        %v2474 = vmax.f32 %v2472, 1e-16
        %v2475 = vrsqrt.pop %v2473
        %v2476 = vrsqrt.pop %v2474
        %v2477 = vmul.f32 %v2429, %v2475
        %v2478 = vmul.f32 %v2436, %v2476
        %v2479 = vmul.f32 %v2419, 0.5
        %v2480 = vmul.f32 %v2420, 0.5
        %v2481 = vmul.f32 %v2477, 0.5
        %v2482 = vmul.f32 %v2478, 0.5
        %v2483 = vadd.f32 %v2479, %v2481
        %v2484 = vadd.f32 %v2480, %v2482
        %v2485 = vmul.f32 %v2483, %v614
        %v2486 = vmul.f32 %v2484, %v631
        %v2487 = vsub.f32 1.0, %v2483
        %v2488 = vsub.f32 1.0, %v2484
        %v2489 = vmul.f32 %v2487, %v2386
        %v2490 = vmul.f32 %v2488, %v2388
        %v2491 = vadd.f32 %v2485, %v2489
        %v2492 = vadd.f32 %v2486, %v2490
        %v2495 = vcombine.low %v2491, %v2492
        %2497 = vst [vmem:[%s613] sm:$0xff] %v2495
        %v2498 = vsub.f32 %v2491, %v614
        %v2499 = vsub.f32 %v2492, %v631
        %v2500 = vmul.f32 %v2498, %v2498
        %v2501 = vmul.f32 %v2499, %v2499
        %v2502 = vsel %vm633, %v2500, 0.0
        %v2503 = vrot.slane %v2502, 4
        %v2504 = vadd.f32 %v2502, %v2503
        %v2505 = vrot.slane %v2504, 2
        %v2506 = vadd.f32 %v2504, %v2505
        %v2507 = vrot.slane %v2506, 1
        %v2508 = vadd.f32 %v2506, %v2507
        %v2509 = vsel %vm633, %v2501, 0.0
        %v2510 = vrot.slane %v2509, 4
        %v2511 = vadd.f32 %v2509, %v2510
        %v2512 = vrot.slane %v2511, 2
        %v2513 = vadd.f32 %v2511, %v2512
        %v2514 = vrot.slane %v2513, 1
        %v2515 = vadd.f32 %v2513, %v2514
        %v2516 = vrsqrt.pop %v2508
        %v2517 = vmul.f32 %v2508, %v2516
        %vm2518 = vcmp.eq.f32.partialorder %v2508, inf
        %v2519 = vsel %vm2518, %v2508, %v2517
        %vm2520 = vcmp.eq.f32.partialorder %v2508, 0.0
        %v2521 = vand.u32 %v2508, 2147483648
        %v2522 = vsel %vm2520, %v2521, %v2519
        %v2523 = vrsqrt.pop %v2515
        %v2524 = vmul.f32 %v2515, %v2523
        %vm2525 = vcmp.eq.f32.partialorder %v2515, inf
        %v2526 = vsel %vm2525, %v2515, %v2524
        %vm2527 = vcmp.eq.f32.partialorder %v2515, 0.0
        %v2528 = vand.u32 %v2515, 2147483648
        %v2529 = vsel %vm2527, %v2528, %v2526
        %vm2530 = vcmp.eq.f32.partialorder %v624, %v1458
        %vm2531 = vcmp.eq.f32.partialorder %v625, %v1458
        %vm2532 = vcmp.eq.f32.partialorder %v624, %v1459
        %vm2533 = vcmp.eq.f32.partialorder %v625, %v1459
        %v2534 = vsel %vm2530, %v2522, 0.0
        %v2535 = vsel %vm2531, %v2529, 0.0
        %v2536 = vsel %vm2532, %v2522, 0.0
        %v2537 = vsel %vm2533, %v2529, 0.0
        %v2538 = vld [vmem:[%s16] sm:$0xff]
        %v2539 = vld [vmem:[%s16 + $0x8] sm:$0xff]
        %v2540 = vld [vmem:[%s16 + $0x10] sm:$0xff]
        %v2541 = vld [vmem:[%s16 + $0x18] sm:$0xff]
        %v2542 = vld [vmem:[%s16 + $0x20] sm:$0xff]
        %v2543 = vld [vmem:[%s16 + $0x28] sm:$0xff]
        %v2544 = vld [vmem:[%s16 + $0x30] sm:$0xff]
        %v2545 = vld [vmem:[%s16 + $0x38] sm:$0xff]
        %v2546 = vld [vmem:[%s16 + $0x40] sm:$0xff]
        %v2547 = vld [vmem:[%s16 + $0x48] sm:$0xff]
        %v2548 = vld [vmem:[%s16 + $0x50] sm:$0xff]
        %v2549 = vld [vmem:[%s16 + $0x58] sm:$0xff]
        %v2550 = vld [vmem:[%s16 + $0x60] sm:$0xff]
        %v2551 = vld [vmem:[%s16 + $0x68] sm:$0xff]
        %v2552 = vld [vmem:[%s16 + $0x70] sm:$0xff]
        %v2553 = vld [vmem:[%s16 + $0x78] sm:$0xff]
        %v2554 = vld [vmem:[%s16 + $0x80] sm:$0xff]
        %v2555 = vld [vmem:[%s16 + $0x88] sm:$0xff]
        %v2556 = vld [vmem:[%s16 + $0x90] sm:$0xff]
        %v2557 = vld [vmem:[%s16 + $0x98] sm:$0xff]
        %v2558 = vld [vmem:[%s16 + $0xa0] sm:$0xff]
        %v2559 = vld [vmem:[%s16 + $0xa8] sm:$0xff]
        %v2560 = vld [vmem:[%s16 + $0xb0] sm:$0xff]
        %v2561 = vld [vmem:[%s16 + $0xb8] sm:$0xff]
        %v2562 = vld [vmem:[%s16 + $0xc0] sm:$0xff]
        %v2563 = vld [vmem:[%s16 + $0xc8] sm:$0xff]
        %v2564 = vld [vmem:[%s16 + $0xd0] sm:$0xff]
        %v2565 = vld [vmem:[%s16 + $0xd8] sm:$0xff]
        %v2566 = vld [vmem:[%s16 + $0xe0] sm:$0xff]
        %v2567 = vld [vmem:[%s16 + $0xe8] sm:$0xff]
        %v2568 = vld [vmem:[%s16 + $0xf0] sm:$0xff]
        %v2569 = vld [vmem:[%s16 + $0xf8] sm:$0xff]
        %2570 = vmatprep.subr.mxu0 0.0
        %2571 = vmatpush1.msra.mxu0 %v2553
        %2572 = vmatprep.subr.mxu0 0.0
        %2573 = vmatpush1.msra.mxu0 %v2552
        %2574 = vmatprep.subr.mxu0 0.0
        %2575 = vmatpush1.msra.mxu0 %v2551
        %2576 = vmatprep.subr.mxu0 0.0
        %2577 = vmatpush1.msra.mxu0 %v2550
        %2578 = vmatprep.subr.mxu0 0.0
        %2579 = vmatpush1.msra.mxu0 %v2549
        %2580 = vmatprep.subr.mxu0 0.0
        %2581 = vmatpush1.msra.mxu0 %v2548
        %2582 = vmatprep.subr.mxu0 0.0
        %2583 = vmatpush1.msra.mxu0 %v2547
        %2584 = vmatprep.subr.mxu0 0.0
        %2585 = vmatpush1.msra.mxu0 %v2546
        %2586 = vmatprep.subr.mxu0 0.0
        %2587 = vmatpush1.msra.mxu0 %v2545
        %2588 = vmatprep.subr.mxu0 0.0
        %2589 = vmatpush1.msra.mxu0 %v2544
        %2590 = vmatprep.subr.mxu0 0.0
        %2591 = vmatpush1.msra.mxu0 %v2543
        %2592 = vmatprep.subr.mxu0 0.0
        %2593 = vmatpush1.msra.mxu0 %v2542
        %2594 = vmatprep.subr.mxu0 0.0
        %2595 = vmatpush1.msra.mxu0 %v2541
        %2596 = vmatprep.subr.mxu0 0.0
        %2597 = vmatpush1.msra.mxu0 %v2540
        %2598 = vmatprep.subr.mxu0 0.0
        %2599 = vmatpush1.msra.mxu0 %v2539
        %2600 = vmatprep.subr.mxu0 0.0
        %2601 = vmatpush1.msra.mxu0 %v2538
        %2602 = vmatprep.subr.mxu0 0.0
        %2603 = vmatpush2.msra.mxu0 %v2569
        %2604 = vmatprep.subr.mxu0 0.0
        %2605 = vmatpush2.msra.mxu0 %v2568
        %2606 = vmatprep.subr.mxu0 0.0
        %2607 = vmatpush2.msra.mxu0 %v2567
        %2608 = vmatprep.subr.mxu0 0.0
        %2609 = vmatpush2.msra.mxu0 %v2566
        %2610 = vmatprep.subr.mxu0 0.0
        %2611 = vmatpush2.msra.mxu0 %v2565
        %2612 = vmatprep.subr.mxu0 0.0
        %2613 = vmatpush2.msra.mxu0 %v2564
        %2614 = vmatprep.subr.mxu0 0.0
        %2615 = vmatpush2.msra.mxu0 %v2563
        %2616 = vmatprep.subr.mxu0 0.0
        %2617 = vmatpush2.msra.mxu0 %v2562
        %2618 = vmatprep.subr.mxu0 0.0
        %2619 = vmatpush2.msra.mxu0 %v2561
        %2620 = vmatprep.subr.mxu0 0.0
        %2621 = vmatpush2.msra.mxu0 %v2560
        %2622 = vmatprep.subr.mxu0 0.0
        %2623 = vmatpush2.msra.mxu0 %v2559
        %2624 = vmatprep.subr.mxu0 0.0
        %2625 = vmatpush2.msra.mxu0 %v2558
        %2626 = vmatprep.subr.mxu0 0.0
        %2627 = vmatpush2.msra.mxu0 %v2557
        %2628 = vmatprep.subr.mxu0 0.0
        %2629 = vmatpush2.msra.mxu0 %v2556
        %2630 = vmatprep.subr.mxu0 0.0
        %2631 = vmatpush2.msra.mxu0 %v2555
        %2632 = vmatprep.subr.mxu0 0.0
        %2633 = vmatpush2.msra.mxu0 %v2554
        %2634 = vmatprep.mubr.f32.mxu0 %v2535
        %2635 = vmatmul.mubr.f32.gmra.mxu0 %v2534
        %v2636 = vpop.f32.mrf.mxu0
        %v2637 = vadd.f32 0.0, %v2636
        %v2638 = vpop.f32.mrf.mxu0
        %2639 = vmatprep.mubr.f32.mxu0 %v2537
        %2640 = vmatmul.mubr.f32.gmra.mxu0 %v2536
        %v2641 = vpop.f32.mrf.mxu0
        %v2642 = vadd.f32 0.0, %v2641
        %v2643 = vpop.f32.mrf.mxu0
        %2644 = vdwg.mxu0
        %v2645 = vld [vmem:[%s17] sm:$0xff]
        %v2646 = vld [vmem:[%s17 + $0x8] sm:$0xff]
        %v2647 = vld [vmem:[%s17 + $0x10] sm:$0xff]
        %v2648 = vld [vmem:[%s17 + $0x18] sm:$0xff]
        %v2649 = vld [vmem:[%s17 + $0x20] sm:$0xff]
        %v2650 = vld [vmem:[%s17 + $0x28] sm:$0xff]
        %v2651 = vld [vmem:[%s17 + $0x30] sm:$0xff]
        %v2652 = vld [vmem:[%s17 + $0x38] sm:$0xff]
        %v2653 = vld [vmem:[%s17 + $0x40] sm:$0xff]
        %v2654 = vld [vmem:[%s17 + $0x48] sm:$0xff]
        %v2655 = vld [vmem:[%s17 + $0x50] sm:$0xff]
        %v2656 = vld [vmem:[%s17 + $0x58] sm:$0xff]
        %v2657 = vld [vmem:[%s17 + $0x60] sm:$0xff]
        %v2658 = vld [vmem:[%s17 + $0x68] sm:$0xff]
        %v2659 = vld [vmem:[%s17 + $0x70] sm:$0xff]
        %v2660 = vld [vmem:[%s17 + $0x78] sm:$0xff]
        %vm2661 = vcmask 130048
        %v2663 = vsel %vm2661, %v2645, 0
        %v2666 = vsel %vm2661, %v2646, 0
        %v2669 = vsel %vm2661, %v2647, 0
        %v2672 = vsel %vm2661, %v2648, 0
        %v2675 = vsel %vm2661, %v2649, 0
        %v2678 = vsel %vm2661, %v2650, 0
        %v2681 = vsel %vm2661, %v2651, 0
        %v2684 = vsel %vm2661, %v2652, 0
        %v2687 = vsel %vm2661, %v2653, 0
        %v2690 = vsel %vm2661, %v2654, 0
        %v2693 = vsel %vm2661, %v2655, 0
        %v2696 = vsel %vm2661, %v2656, 0
        %v2699 = vsel %vm2661, %v2657, 0
        %v2702 = vsel %vm2661, %v2658, 0
        %v2705 = vsel %vm2661, %v2659, 0
        %v2708 = vsel %vm2661, %v2660, 0
        %2710 = vmatprep.subr.mxu0 0.0
        %2711 = vmatpush1.msra.mxu0 0.0
        %2712 = vmatprep.subr.mxu0 0.0
        %2713 = vmatpush1.msra.mxu0 0.0
        %2714 = vmatprep.subr.mxu0 0.0
        %2715 = vmatpush1.msra.mxu0 0.0
        %2716 = vmatprep.subr.mxu0 0.0
        %2717 = vmatpush1.msra.mxu0 0.0
        %2718 = vmatprep.subr.mxu0 0.0
        %2719 = vmatpush1.msra.mxu0 0.0
        %2720 = vmatprep.subr.mxu0 0.0
        %2721 = vmatpush1.msra.mxu0 0.0
        %2722 = vmatprep.subr.mxu0 0.0
        %2723 = vmatpush1.msra.mxu0 0.0
        %2724 = vmatprep.subr.mxu0 0.0
        %2725 = vmatpush1.msra.mxu0 0.0
        %2726 = vmatprep.subr.mxu0 0.0
        %2727 = vmatpush1.msra.mxu0 0.0
        %2728 = vmatprep.subr.mxu0 0.0
        %2729 = vmatpush1.msra.mxu0 0.0
        %2730 = vmatprep.subr.mxu0 0.0
        %2731 = vmatpush1.msra.mxu0 0.0
        %2732 = vmatprep.subr.mxu0 0.0
        %2733 = vmatpush1.msra.mxu0 0.0
        %2734 = vmatprep.subr.mxu0 0.0
        %2735 = vmatpush1.msra.mxu0 0.0
        %2736 = vmatprep.subr.mxu0 0.0
        %2737 = vmatpush1.msra.mxu0 0.0
        %2738 = vmatprep.subr.mxu0 0.0
        %2739 = vmatpush1.msra.mxu0 %v2642
        %2740 = vmatprep.subr.mxu0 0.0
        %2741 = vmatpush1.msra.mxu0 %v2637
        %2742 = vmatprep.subr.mxu0 0.0
        %2743 = vmatpush2.msra.mxu0 0.0
        %2744 = vmatprep.subr.mxu0 0.0
        %2745 = vmatpush2.msra.mxu0 0.0
        %2746 = vmatprep.subr.mxu0 0.0
        %2747 = vmatpush2.msra.mxu0 0.0
        %2748 = vmatprep.subr.mxu0 0.0
        %2749 = vmatpush2.msra.mxu0 0.0
        %2750 = vmatprep.subr.mxu0 0.0
        %2751 = vmatpush2.msra.mxu0 0.0
        %2752 = vmatprep.subr.mxu0 0.0
        %2753 = vmatpush2.msra.mxu0 0.0
        %2754 = vmatprep.subr.mxu0 0.0
        %2755 = vmatpush2.msra.mxu0 0.0
        %2756 = vmatprep.subr.mxu0 0.0
        %2757 = vmatpush2.msra.mxu0 0.0
        %2758 = vmatprep.subr.mxu0 0.0
        %2759 = vmatpush2.msra.mxu0 0.0
        %2760 = vmatprep.subr.mxu0 0.0
        %2761 = vmatpush2.msra.mxu0 0.0
        %2762 = vmatprep.subr.mxu0 0.0
        %2763 = vmatpush2.msra.mxu0 0.0
        %2764 = vmatprep.subr.mxu0 0.0
        %2765 = vmatpush2.msra.mxu0 0.0
        %2766 = vmatprep.subr.mxu0 0.0
        %2767 = vmatpush2.msra.mxu0 0.0
        %2768 = vmatprep.subr.mxu0 0.0
        %2769 = vmatpush2.msra.mxu0 0.0
        %2770 = vmatprep.subr.mxu0 0.0
        %2771 = vmatpush2.msra.mxu0 0.0
        %2772 = vmatprep.subr.mxu0 0.0
        %2773 = vmatpush2.msra.mxu0 0.0
        %2774 = vmatprep.mubr.f32.mxu0 0.0
        %2775 = vmatmul.mubr.f32.gmra.mxu0 %v2663
        %v2776 = vpop.f32.mrf.mxu0
        %v2777 = vadd.f32 0.0, %v2776
        %v2778 = vpop.f32.mrf.mxu0
        %2779 = vmatprep.mubr.f32.mxu0 0.0
        %2780 = vmatmul.mubr.f32.gmra.mxu0 %v2666
        %v2781 = vpop.f32.mrf.mxu0
        %v2782 = vadd.f32 0.0, %v2781
        %v2783 = vpop.f32.mrf.mxu0
        %2784 = vmatprep.mubr.f32.mxu0 0.0
        %2785 = vmatmul.mubr.f32.gmra.mxu0 %v2669
        %v2786 = vpop.f32.mrf.mxu0
        %v2787 = vadd.f32 0.0, %v2786
        %v2788 = vpop.f32.mrf.mxu0
        %2789 = vmatprep.mubr.f32.mxu0 0.0
        %2790 = vmatmul.mubr.f32.gmra.mxu0 %v2672
        %v2791 = vpop.f32.mrf.mxu0
        %v2792 = vadd.f32 0.0, %v2791
        %v2793 = vpop.f32.mrf.mxu0
        %2794 = vmatprep.mubr.f32.mxu0 0.0
        %2795 = vmatmul.mubr.f32.gmra.mxu0 %v2675
        %v2796 = vpop.f32.mrf.mxu0
        %v2797 = vadd.f32 0.0, %v2796
        %v2798 = vpop.f32.mrf.mxu0
        %2799 = vmatprep.mubr.f32.mxu0 0.0
        %2800 = vmatmul.mubr.f32.gmra.mxu0 %v2678
        %v2801 = vpop.f32.mrf.mxu0
        %v2802 = vadd.f32 0.0, %v2801
        %v2803 = vpop.f32.mrf.mxu0
        %2804 = vmatprep.mubr.f32.mxu0 0.0
        %2805 = vmatmul.mubr.f32.gmra.mxu0 %v2681
        %v2806 = vpop.f32.mrf.mxu0
        %v2807 = vadd.f32 0.0, %v2806
        %v2808 = vpop.f32.mrf.mxu0
        %2809 = vmatprep.mubr.f32.mxu0 0.0
        %2810 = vmatmul.mubr.f32.gmra.mxu0 %v2684
        %v2811 = vpop.f32.mrf.mxu0
        %v2812 = vadd.f32 0.0, %v2811
        %v2813 = vpop.f32.mrf.mxu0
        %2814 = vmatprep.mubr.f32.mxu0 0.0
        %2815 = vmatmul.mubr.f32.gmra.mxu0 %v2687
        %v2816 = vpop.f32.mrf.mxu0
        %v2817 = vadd.f32 0.0, %v2816
        %v2818 = vpop.f32.mrf.mxu0
        %2819 = vmatprep.mubr.f32.mxu0 0.0
        %2820 = vmatmul.mubr.f32.gmra.mxu0 %v2690
        %v2821 = vpop.f32.mrf.mxu0
        %v2822 = vadd.f32 0.0, %v2821
        %v2823 = vpop.f32.mrf.mxu0
        %2824 = vmatprep.mubr.f32.mxu0 0.0
        %2825 = vmatmul.mubr.f32.gmra.mxu0 %v2693
        %v2826 = vpop.f32.mrf.mxu0
        %v2827 = vadd.f32 0.0, %v2826
        %v2828 = vpop.f32.mrf.mxu0
        %2829 = vmatprep.mubr.f32.mxu0 0.0
        %2830 = vmatmul.mubr.f32.gmra.mxu0 %v2696
        %v2831 = vpop.f32.mrf.mxu0
        %v2832 = vadd.f32 0.0, %v2831
        %v2833 = vpop.f32.mrf.mxu0
        %2834 = vmatprep.mubr.f32.mxu0 0.0
        %2835 = vmatmul.mubr.f32.gmra.mxu0 %v2699
        %v2836 = vpop.f32.mrf.mxu0
        %v2837 = vadd.f32 0.0, %v2836
        %v2838 = vpop.f32.mrf.mxu0
        %2839 = vmatprep.mubr.f32.mxu0 0.0
        %2840 = vmatmul.mubr.f32.gmra.mxu0 %v2702
        %v2841 = vpop.f32.mrf.mxu0
        %v2842 = vadd.f32 0.0, %v2841
        %v2843 = vpop.f32.mrf.mxu0
        %2844 = vmatprep.mubr.f32.mxu0 0.0
        %2845 = vmatmul.mubr.f32.gmra.mxu0 %v2705
        %v2846 = vpop.f32.mrf.mxu0
        %v2847 = vadd.f32 0.0, %v2846
        %v2848 = vpop.f32.mrf.mxu0
        %2849 = vmatprep.mubr.f32.mxu0 0.0
        %2850 = vmatmul.mubr.f32.gmra.mxu0 %v2708
        %v2851 = vpop.f32.mrf.mxu0
        %v2852 = vadd.f32 0.0, %v2851
        %v2853 = vpop.f32.mrf.mxu0
        %2854 = vdwg.mxu0
        %2855 = vst [vmem:[%s603] sm:$0xff] %v2777
        %2856 = vst [vmem:[%s603 + $0x8] sm:$0xff] %v2782
        %2857 = vst [vmem:[%s603 + $0x10] sm:$0xff] %v2787
        %2858 = vst [vmem:[%s603 + $0x18] sm:$0xff] %v2792
        %2859 = vst [vmem:[%s603 + $0x20] sm:$0xff] %v2797
        %2860 = vst [vmem:[%s603 + $0x28] sm:$0xff] %v2802
        %2861 = vst [vmem:[%s603 + $0x30] sm:$0xff] %v2807
        %2862 = vst [vmem:[%s603 + $0x38] sm:$0xff] %v2812
        %2863 = vst [vmem:[%s603 + $0x40] sm:$0xff] %v2817
        %2864 = vst [vmem:[%s603 + $0x48] sm:$0xff] %v2822
        %2865 = vst [vmem:[%s603 + $0x50] sm:$0xff] %v2827
        %2866 = vst [vmem:[%s603 + $0x58] sm:$0xff] %v2832
        %2867 = vst [vmem:[%s603 + $0x60] sm:$0xff] %v2837
        %2868 = vst [vmem:[%s603 + $0x68] sm:$0xff] %v2842
        %2869 = vst [vmem:[%s603 + $0x70] sm:$0xff] %v2847
        %2870 = vst [vmem:[%s603 + $0x78] sm:$0xff] %v2852
        %p2871 = scmp.lt.s32.totalorder %s34, 1
        %s2872 = scalar_select %p2871, %s34, 1
        %s2873 = smul.addr %s2872, 2
        %s2874 = smul.addr %s2873, 4
        %s2875 = scalar_lea.vmem %s18, %s2874
        %s2876 = sand.u32 %s451, 1
        %s2877 = scalar_lea.sflag [#allocation3], %s2876
        %s2878 = sand.u32 %s451, 1
        %s2879 = smul.addr %s2878, 128
        %s2880 = scalar_lea.vmem [#allocation2], %s2879
        // Predicated region
        $region93: #{grad_forward.1} parent=91 // pred_check
          %p2881 = pneg %p435
        $region94: #{grad_forward.1} parent=91 // pred_check_branch
          %2883 = sbr.rel (%p2881) target = $region96
        $region95: #{grad_forward.1} parent=91 // pred_region
          _
        $region96: #{grad_forward.1} parent=91 // pred_fallthru
          _
        // Predicated region
        $region97: #{grad_forward.1} parent=91 // pred_check
          %p2884 = pneg %p461
        $region98: #{grad_forward.1} parent=91 // pred_check_branch
          %2886 = sbr.rel (%p2884) target = $region100
        $region99: #{grad_forward.1} parent=91 // pred_region
          %s2888 = ssub.s32 2048, 2048
          %2889 = vsyncadd %s2877, %s2888
          %s2890 = smul.addr %s34, 16
          %s2891 = smul.addr %s2890, 128
          %s2892 = scalar_lea.hbm %s19, %s2891
          %s2893 = sshll.u32 %s2880, 4
          %s2894 = int_to_ptr.vmem [resolvable:$true] %s2893
          %2899 = dma.vmem_to_hbm [thread:$0]  %s2894, 2048, %s2892, %s2877, 128, 128, 8
        $region100: #{grad_forward.1} parent=91 // pred_fallthru
          _
      $region92: #{grad_forward.1} parent=5 // pred_fallthru
        _
      %p2900 = scmp.le.s32.totalorder 2, %s29
      // Predicated region
      $region101: #{grad_forward.1} parent=5 // pred_check
        %p2901 = pneg %p2900
      $region102: #{grad_forward.1} parent=5 // pred_check_branch
        %2903 = sbr.rel (%p2901) target = $region104
      $region103: #{grad_forward.1} parent=5 // pred_region
        %s2904 = ssub.s32 %s29, 2
        // Predicated region
        $region105: #{grad_forward.1} parent=103 // pred_check
          %p2905 = pneg %p441
        $region106: #{grad_forward.1} parent=103 // pred_check_branch
          %2907 = sbr.rel (%p2905) target = $region108
        $region107: #{grad_forward.1} parent=103 // pred_region
          %p2908 = scmp.lt.s32.totalorder %s35, 1
          %s2909 = scalar_select %p2908, %s35, 1
          %s2910 = smul.addr %s2909, 2
          %s2911 = smul.addr %s2910, 4
          %s2912 = scalar_lea.vmem %s18, %s2911
        $region108: #{grad_forward.1} parent=103 // pred_fallthru
          _
        // Predicated region
        $region109: #{grad_forward.1} parent=103 // pred_check
          %p2913 = pneg %p467
        $region110: #{grad_forward.1} parent=103 // pred_check_branch
          %2915 = sbr.rel (%p2913) target = $region112
        $region111: #{grad_forward.1} parent=103 // pred_region
          %s2916 = sand.u32 %s452, 1
          %s2917 = scalar_lea.sflag [#allocation3], %s2916
          %s2918 = sand.u32 %s452, 1
          %s2919 = smul.addr %s2918, 128
          %s2920 = scalar_lea.vmem [#allocation2], %s2919
          %2921 = dma.done %s2917, 2048
        $region112: #{grad_forward.1} parent=103 // pred_fallthru
          _
      $region104: #{grad_forward.1} parent=5 // pred_fallthru
        _
    $region6: #{grad_forward.1} parent=1 // loop_footer
      %s33 = sadd.s32 1, %s29
    $region7: #{grad_forward.1} parent=1 // loop_footer_branch
      %28 = sbr.rel target = $region3
    $region8: #{grad_forward.1} parent=1 // loop_exit
      _
    %2922 = vsyncpa [#allocation3], 1
    %s2923 = scalar_lea.sflag [#allocation3], 1
    %2924 = vsyncpa %s2923, 1

</llo_original>
